<compile_context>
chip_gen: v7x
topology: tpu7x:2x2x1
jax: 0.10.0
libtpu: 0.0.40
codegen_flags: <defaults>
</compile_context>

<pallas_src>
import functools
import math

import numpy as np
import jax
import jax.numpy as jnp
from jax.experimental import pallas as pl
from jax.experimental.pallas import tpu as pltpu

EPS = 1e-5   # nn.BatchNorm1d default eps


def _adaptive_pool_slices(l_in, l_out):
    """PyTorch AdaptiveMaxPool1d window boundaries (static)."""
    slices = []
    for i in range(l_out):
        s = (i * l_in) // l_out
        e = -((-(i + 1) * l_in) // l_out)   # ceil((i+1)*l_in/l_out)
        slices.append((s, e))
    return tuple(slices)


# ---------------------------------------------------------------------------
# Fused kernel: conv (all branches) -> PReLU -> adaptive max pool ->
#               FC BatchNorm -> PReLU -> Linear -> softmax.
# ---------------------------------------------------------------------------
def _make_dcnn_kernel(B, n_br, k_pool, C, n_classes, n_taps):
    BK = B * k_pool

    def kernel(x_ref, w_ref, bias_ref, alpha_ref, sel_ref,
               scale_ref, shift_ref, wfc_ref, fcb_ref, alpha2_ref, o_ref):
        # --- conv: one MXU matmul for all branches, batch folded into M ------
        y = jnp.dot(x_ref[...], w_ref[...], preferred_element_type=jnp.float32)
        y = y + bias_ref[...]                               # conv bias (BN folded)
        y = jnp.where(y >= 0.0, y, alpha_ref[...] * y)      # per-branch PReLU

        alpha2 = alpha2_ref[0]                              # FC PReLU alpha (SMEM)
        class_cols = [None] * n_classes                     # per-class (BK, 1) sums
        for j in range(n_br):                               # static unroll, n_br=4
            yj = y[:, j * C:(j + 1) * C]                    # 128-lane aligned slice
            # AdaptiveMaxPool1d: gather every window's taps with a static 0/1
            # selector matmul (MXU slot), then an n_taps-way max (VPU).  Width-2
            # windows duplicate their last tap in the selector -> no mask/bias.
            g = jnp.dot(sel_ref[j], yj,
                        preferred_element_type=jnp.float32)  # (n_taps*BK, C)
            pooled = g[0:BK]
            for w in range(1, n_taps):
                pooled = jnp.maximum(pooled, g[w * BK:(w + 1) * BK])  # (BK, C)
            # FC BatchNorm (inference, affine) + PReLU on the pooled layout.
            a = pooled * scale_ref[j] + shift_ref[j]
            a = jnp.where(a >= 0.0, a, alpha2 * a)
            # Linear: per-class lane reduction against the layout-matched weight.
            for n in range(n_classes):
                t = jnp.sum(a * wfc_ref[n * n_br + j], axis=1, keepdims=True)
                class_cols[n] = t if class_cols[n] is None else class_cols[n] + t

        ls = jnp.concatenate(class_cols, axis=1)            # (BK, n_classes)
        # Per example: reduce its k_pool rows, add bias, softmax(dim=1).
        for b in range(B):
            row = jnp.sum(ls[b * k_pool:(b + 1) * k_pool, :],
                          axis=0, keepdims=True) + fcb_ref[...]   # (1, n_classes)
            m = jnp.max(row, axis=-1, keepdims=True)
            e = jnp.exp(row - m)
            o_ref[b:b + 1, :] = e / jnp.sum(e, axis=-1, keepdims=True)

    return kernel


def _dcnn_pallas(cols, w_all, bias_all, alpha_all, sel, scale_mat, shift_mat,
                 wfc, fcb_row, alpha2, *, B, n_br, k_pool, C, n_classes, n_taps):
    kernel = _make_dcnn_kernel(B, n_br, k_pool, C, n_classes, n_taps)
    vmem = pl.BlockSpec(memory_space=pltpu.MemorySpace.VMEM)
    smem = pl.BlockSpec(memory_space=pltpu.MemorySpace.SMEM)
    return pl.pallas_call(
        kernel,
        out_shape=jax.ShapeDtypeStruct((B, n_classes), jnp.float32),
        in_specs=[vmem] * 9 + [smem],
        out_specs=vmem,
    )(cols, w_all, bias_all, alpha_all, sel, scale_mat, shift_mat,
      wfc, fcb_row, alpha2)


# ---------------------------------------------------------------------------
# Parameter init (deterministic, shapes from DCNN.__init__ defaults)
# ---------------------------------------------------------------------------
def init_params(key, vocab_size=141, embedding_dim=5, n_gram=5, k_pool_size=16,
                n_fc_neurons=128, n_classes=2):
    keys = jax.random.split(key, 16)
    p = {}
    emb = jax.random.uniform(keys[0], (vocab_size, embedding_dim), jnp.float32,
                             -0.5, 0.5)
    emb = emb.at[0].set(0.0)  # padding_idx=0
    p["embed"] = emb

    filter_sizes = [f for f in range(n_gram + 1) if f > 1]   # [2, 3, 4, 5]
    p["branches"] = {}
    for i, f in enumerate(filter_sizes):
        kw, kb = jax.random.split(keys[1 + i])
        std = math.sqrt(2.0 / (n_fc_neurons * f))             # kaiming_normal, fan_out
        w = std * jax.random.normal(kw, (n_fc_neurons, embedding_dim, f), jnp.float32)
        bound = 1.0 / math.sqrt(embedding_dim * f)
        b = jax.random.uniform(kb, (n_fc_neurons,), jnp.float32, -bound, bound)
        p["branches"][f] = dict(
            w=w, b=b,
            bn_gamma=jnp.ones((n_fc_neurons,), jnp.float32),
            bn_beta=jnp.zeros((n_fc_neurons,), jnp.float32),
            bn_mean=jnp.zeros((n_fc_neurons,), jnp.float32),
            bn_var=jnp.ones((n_fc_neurons,), jnp.float32),
            prelu=jnp.float32(0.25),
        )

    feat = k_pool_size * len(filter_sizes) * n_fc_neurons     # 16 * 4 * 128 = 8192
    lim = math.sqrt(6.0 / (feat + n_classes))                 # xavier_uniform
    p["fc"] = dict(
        bn_gamma=jnp.ones((feat,), jnp.float32),
        bn_beta=jnp.zeros((feat,), jnp.float32),
        bn_mean=jnp.zeros((feat,), jnp.float32),
        bn_var=jnp.ones((feat,), jnp.float32),
        prelu=jnp.float32(0.25),
        w=jax.random.uniform(keys[10], (n_classes, feat), jnp.float32, -lim, lim),
        b=jax.random.uniform(keys[11], (n_classes,), jnp.float32,
                             -1.0 / math.sqrt(feat), 1.0 / math.sqrt(feat)),
    )
    return p


# ---------------------------------------------------------------------------
# Forward pass (glue in JAX, entire hot path in one Pallas kernel)
# ---------------------------------------------------------------------------
def dcnn_forward(params, x_ids, k_pool_size=16):
    emb = jnp.take(params["embed"], x_ids, axis=0)          # (B, L, E)
    B, L, E = emb.shape
    xp = jnp.pad(emb, ((0, 0), (1, 1), (0, 0)))             # Conv1d padding=1

    filter_sizes = sorted(params["branches"].keys())        # [2, 3, 4, 5]
    n_br = len(filter_sizes)
    f_max = max(filter_sizes)
    C = params["branches"][filter_sizes[0]]["w"].shape[0]
    l_out_max = L + 2 - min(filter_sizes) + 1
    L_pad = -(-l_out_max // 8) * 8
    K = f_max * E
    K_pad = -(-K // 8) * 8

    # --- shared im2col (built ONCE for all branches): X[b,t,k*E+e]=xp[b,t+k,e]
    xp_ext = jnp.pad(xp, ((0, 0), (0, L_pad + f_max - 1 - (L + 2)), (0, 0)))
    cols = jnp.stack([xp_ext[:, k:k + L_pad, :] for k in range(f_max)], axis=2)
    cols = cols.reshape(B, L_pad, K)
    cols = jnp.pad(cols, ((0, 0), (0, 0), (0, K_pad - K)))
    cols = cols.reshape(B * L_pad, K_pad)                   # batch folded into M

    # --- fused conv weights: f_max-tap layout per branch, BN folded, concat N
    w_blocks, b_blocks, a_blocks = [], [], []
    for f in filter_sizes:
        br = params["branches"][f]
        w = jnp.transpose(br["w"], (2, 1, 0))               # (f, E, C) tap-major
        w = jnp.pad(w, ((0, f_max - f), (0, 0), (0, 0))).reshape(K, C)
        w = jnp.pad(w, ((0, K_pad - K), (0, 0)))            # (K_pad, C)
        scale = br["bn_gamma"] / jnp.sqrt(br["bn_var"] + EPS)
        shift = br["bn_beta"] - br["bn_mean"] * scale
        w_blocks.append(w * scale[None, :])                 # fold BN scale
        b_blocks.append(br["b"] * scale + shift)            # fold BN shift
        a_blocks.append(jnp.full((C,), br["prelu"], jnp.float32))
    w_all = jnp.concatenate(w_blocks, axis=1)               # (K_pad, n_br*C)
    bias_all = jnp.concatenate(b_blocks)[None, :]           # (1, n_br*C)
    alpha_all = jnp.concatenate(a_blocks)[None, :]          # (1, n_br*C)

    # --- static 0/1 pooling selectors (one per branch).  Row (w, b, p) picks
    #     time row min(s_p + w, e_p - 1) of example b; windows never reference
    #     the padded/garbage rows t >= l_out_f, so no masking is needed. -------
    all_slices = [_adaptive_pool_slices(L + 2 - f + 1, k_pool_size)
                  for f in filter_sizes]
    n_taps = max(e - s for sl in all_slices for (s, e) in sl)
    sel_np = np.zeros((n_br, n_taps * B * k_pool_size, B * L_pad), np.float32)
    for j, sl in enumerate(all_slices):
        for p_idx, (s, e) in enumerate(sl):
            for w in range(n_taps):
                tap = min(s + w, e - 1)
                for b in range(B):
                    sel_np[j, w * B * k_pool_size + b * k_pool_size + p_idx,
                           b * L_pad + tap] = 1.0
    sel = jnp.asarray(sel_np)

    # --- FC head constants, permuted to the pooled (b*k_pool+p, c) layout so
    #     no transpose / no zero-padded 8192x128 weight is ever materialized.
    #     PyTorch flat feature index = c*(n_br*k_pool) + j*k_pool + p. ---------
    fc = params["fc"]
    n_classes = fc["w"].shape[0]

    def to_pooled_layout(v):                                  # (n_br*k_pool*C,)
        a = v.reshape(C, n_br, k_pool_size).transpose(1, 2, 0)  # (n_br, k_pool, C)
        a = jnp.broadcast_to(a[:, None], (n_br, B, k_pool_size, C))
        return a.reshape(n_br, B * k_pool_size, C)

    scale2 = fc["bn_gamma"] / jnp.sqrt(fc["bn_var"] + EPS)
    shift2 = fc["bn_beta"] - fc["bn_mean"] * scale2
    scale_mat = to_pooled_layout(scale2)                      # (n_br, B*k_pool, C)
    shift_mat = to_pooled_layout(shift2)
    wfc = jnp.concatenate(
        [to_pooled_layout(fc["w"][n]) for n in range(n_classes)],
        axis=0)                                               # (n_cls*n_br, BK, C)
    fcb_row = fc["b"][None, :]                                # (1, n_classes)
    alpha2 = jnp.reshape(jnp.asarray(fc["prelu"], jnp.float32), (1,))

    # TODO(synk): F.dropout(p=0.5) is training-mode RNG (identity here) and
    # BatchNorm uses running statistics -> inference semantics.
    probs = _dcnn_pallas(cols, w_all, bias_all, alpha_all, sel, scale_mat,
                         shift_mat, wfc, fcb_row, alpha2,
                         B=B, n_br=n_br, k_pool=k_pool_size, C=C,
                         n_classes=n_classes, n_taps=n_taps)
    return probs                                              # (B, n_classes)


# ---------------------------------------------------------------------------
# Pure-JAX reference (for correctness check only)
# ---------------------------------------------------------------------------
def _dcnn_reference(params, x_ids, k_pool_size=16):
    emb = jnp.take(params["embed"], x_ids, axis=0)           # (B, L, E)
    B, L, E = emb.shape
    x = jnp.transpose(emb, (0, 2, 1))                        # (B, E, L)
    outs = []
    for f in sorted(params["branches"].keys()):
        br = params["branches"][f]
        conv = jax.lax.conv_general_dilated(
            x, br["w"], window_strides=(1,), padding=[(1, 1)],
            dimension_numbers=("NCH", "OIH", "NCH"),
            precision=jax.lax.Precision.HIGHEST) + br["b"][None, :, None]
        bn = ((conv - br["bn_mean"][None, :, None])
              / jnp.sqrt(br["bn_var"][None, :, None] + EPS)
              * br["bn_gamma"][None, :, None] + br["bn_beta"][None, :, None])
        act = jnp.where(bn >= 0.0, bn, br["prelu"] * bn)
        l_out = act.shape[-1]
        pooled = jnp.stack(
            [jnp.max(act[:, :, s:e], axis=-1)
             for (s, e) in _adaptive_pool_slices(l_out, k_pool_size)], axis=-1)
        outs.append(pooled)                                  # (B, C, k_pool)
    flat = jnp.concatenate(outs, axis=2).reshape(B, -1)
    fc = params["fc"]
    bn = ((flat - fc["bn_mean"]) / jnp.sqrt(fc["bn_var"] + EPS)
          * fc["bn_gamma"] + fc["bn_beta"])
    act = jnp.where(bn >= 0.0, bn, fc["prelu"] * bn)
    logits = jnp.dot(act, fc["w"].T,
                     precision=jax.lax.Precision.HIGHEST) + fc["b"]
    return jax.nn.softmax(logits, axis=1)


if __name__ == "__main__":
    key = jax.random.PRNGKey(0)
    pkey, xkey = jax.random.split(key)
    params = init_params(pkey)

    B, L = 2, 32
    x_ids = jax.random.randint(xkey, (B, L), 0, 141, dtype=jnp.int32)

    fwd = jax.jit(functools.partial(dcnn_forward, k_pool_size=16))
    probs = jax.block_until_ready(fwd(params, x_ids))

    ref = _dcnn_reference(params, x_ids, k_pool_size=16)

    assert probs.shape == (B, 2), probs.shape
    assert bool(jnp.all(jnp.isfinite(probs)))
    assert bool(jnp.allclose(jnp.sum(probs, axis=1), 1.0, atol=1e-5))
    assert bool(jnp.allclose(probs, ref, atol=2e-3)), (probs, ref)
    print("KERNEL_OK")
</pallas_src>

<mosaic_0001>
module attributes {stable_mosaic.version = 11 : i64} {
  func.func @kernel(%arg0: memref<80x32xf32, #tpu.memory_space<vmem>>, %arg1: memref<32x512xf32, #tpu.memory_space<vmem>>, %arg2: memref<1x512xf32, #tpu.memory_space<vmem>>, %arg3: memref<1x512xf32, #tpu.memory_space<vmem>>, %arg4: memref<4x96x80xf32, #tpu.memory_space<vmem>>, %arg5: memref<4x32x128xf32, #tpu.memory_space<vmem>>, %arg6: memref<4x32x128xf32, #tpu.memory_space<vmem>>, %arg7: memref<8x32x128xf32, #tpu.memory_space<vmem>>, %arg8: memref<1x2xf32, #tpu.memory_space<vmem>>, %arg9: memref<1xf32, #tpu.memory_space<smem>>, %arg10: memref<2x2xf32, #tpu.memory_space<vmem>>) attributes {dimension_semantics = [], scalar_prefetch = 0 : i64, scratch_operands = 0 : i64, tpu.core_type = #tpu.core_type<tc>} {
    %c0 = arith.constant 0 : index
    %c0_0 = arith.constant 0 : index
    %0 = vector.load %arg0[%c0, %c0_0] : memref<80x32xf32, #tpu.memory_space<vmem>>, vector<80x32xf32>
    %c0_1 = arith.constant 0 : index
    %c0_2 = arith.constant 0 : index
    %1 = vector.load %arg1[%c0_1, %c0_2] : memref<32x512xf32, #tpu.memory_space<vmem>>, vector<32x512xf32>
    %cst = arith.constant dense<0.000000e+00> : vector<80x512xf32>
    %2 = tpu.matmul %0, %1, %cst {dimension_numbers = #tpu.dot_dimension_numbers<[1], [0], [0], [1], [0, 0, 1, 1], [], []>} : vector<80x32xf32>, vector<32x512xf32>, vector<80x512xf32> -> vector<80x512xf32>
    %c0_3 = arith.constant 0 : index
    %c0_4 = arith.constant 0 : index
    %3 = vector.load %arg2[%c0_3, %c0_4] : memref<1x512xf32, #tpu.memory_space<vmem>>, vector<1x512xf32>
    %4 = vector.broadcast %3 : vector<1x512xf32> to vector<80x512xf32>
    %5 = arith.addf %2, %4 : vector<80x512xf32>
    %cst_5 = arith.constant 0.000000e+00 : f32
    %6 = vector.broadcast %cst_5 : f32 to vector<80x512xf32>
    %7 = arith.cmpf oge, %5, %6 : vector<80x512xf32>
    %c0_6 = arith.constant 0 : index
    %c0_7 = arith.constant 0 : index
    %8 = vector.load %arg3[%c0_6, %c0_7] : memref<1x512xf32, #tpu.memory_space<vmem>>, vector<1x512xf32>
    %9 = vector.broadcast %8 : vector<1x512xf32> to vector<80x512xf32>
    %10 = arith.mulf %9, %5 : vector<80x512xf32>
    %11 = arith.select %7, %5, %10 : vector<80x512xi1>, vector<80x512xf32>
    %c0_8 = arith.constant 0 : index
    %12 = memref.load %arg9[%c0_8] : memref<1xf32, #tpu.memory_space<smem>>
    %13 = vector.extract_strided_slice %11 {offsets = [0, 0], sizes = [80, 128], strides = [1, 1]} : vector<80x512xf32> to vector<80x128xf32>
    %c0_9 = arith.constant 0 : index
    %c0_10 = arith.constant 0 : index
    %c0_11 = arith.constant 0 : index
    %14 = vector.load %arg4[%c0_9, %c0_10, %c0_11] : memref<4x96x80xf32, #tpu.memory_space<vmem>>, vector<1x96x80xf32>
    %15 = vector.shape_cast %14 : vector<1x96x80xf32> to vector<96x80xf32>
    %cst_12 = arith.constant dense<0.000000e+00> : vector<96x128xf32>
    %16 = tpu.matmul %15, %13, %cst_12 {dimension_numbers = #tpu.dot_dimension_numbers<[1], [0], [0], [1], [0, 0, 1, 1], [], []>} : vector<96x80xf32>, vector<80x128xf32>, vector<96x128xf32> -> vector<96x128xf32>
    %17 = vector.extract_strided_slice %16 {offsets = [0, 0], sizes = [32, 128], strides = [1, 1]} : vector<96x128xf32> to vector<32x128xf32>
    %18 = vector.extract_strided_slice %16 {offsets = [32, 0], sizes = [32, 128], strides = [1, 1]} : vector<96x128xf32> to vector<32x128xf32>
    %19 = arith.maximumf %17, %18 : vector<32x128xf32>
    %20 = vector.extract_strided_slice %16 {offsets = [64, 0], sizes = [32, 128], strides = [1, 1]} : vector<96x128xf32> to vector<32x128xf32>
    %21 = arith.maximumf %19, %20 : vector<32x128xf32>
    %c0_13 = arith.constant 0 : index
    %c0_14 = arith.constant 0 : index
    %c0_15 = arith.constant 0 : index
    %22 = vector.load %arg5[%c0_13, %c0_14, %c0_15] : memref<4x32x128xf32, #tpu.memory_space<vmem>>, vector<1x32x128xf32>
    %23 = vector.shape_cast %22 : vector<1x32x128xf32> to vector<32x128xf32>
    %24 = arith.mulf %21, %23 : vector<32x128xf32>
    %c0_16 = arith.constant 0 : index
    %c0_17 = arith.constant 0 : index
    %c0_18 = arith.constant 0 : index
    %25 = vector.load %arg6[%c0_16, %c0_17, %c0_18] : memref<4x32x128xf32, #tpu.memory_space<vmem>>, vector<1x32x128xf32>
    %26 = vector.shape_cast %25 : vector<1x32x128xf32> to vector<32x128xf32>
    %27 = arith.addf %24, %26 : vector<32x128xf32>
    %cst_19 = arith.constant 0.000000e+00 : f32
    %28 = vector.broadcast %cst_19 : f32 to vector<32x128xf32>
    %29 = arith.cmpf oge, %27, %28 : vector<32x128xf32>
    %30 = vector.broadcast %12 : f32 to vector<32x128xf32>
    %31 = arith.mulf %30, %27 : vector<32x128xf32>
    %32 = arith.select %29, %27, %31 : vector<32x128xi1>, vector<32x128xf32>
    %c0_20 = arith.constant 0 : index
    %c0_21 = arith.constant 0 : index
    %c0_22 = arith.constant 0 : index
    %33 = vector.load %arg7[%c0_20, %c0_21, %c0_22] : memref<8x32x128xf32, #tpu.memory_space<vmem>>, vector<1x32x128xf32>
    %34 = vector.shape_cast %33 : vector<1x32x128xf32> to vector<32x128xf32>
    %35 = arith.mulf %32, %34 : vector<32x128xf32>
    %cst_23 = arith.constant dense<0.000000e+00> : vector<32xf32>
    %36 = vector.multi_reduction <add>, %35, %cst_23 [1] : vector<32x128xf32> to vector<32xf32>
    %37 = vector.shape_cast %36 : vector<32xf32> to vector<32x1xf32>
    %c4 = arith.constant 4 : index
    %c0_24 = arith.constant 0 : index
    %c0_25 = arith.constant 0 : index
    %38 = vector.load %arg7[%c4, %c0_24, %c0_25] : memref<8x32x128xf32, #tpu.memory_space<vmem>>, vector<1x32x128xf32>
    %39 = vector.shape_cast %38 : vector<1x32x128xf32> to vector<32x128xf32>
    %40 = arith.mulf %32, %39 : vector<32x128xf32>
    %cst_26 = arith.constant dense<0.000000e+00> : vector<32xf32>
    %41 = vector.multi_reduction <add>, %40, %cst_26 [1] : vector<32x128xf32> to vector<32xf32>
    %42 = vector.shape_cast %41 : vector<32xf32> to vector<32x1xf32>
    %43 = vector.extract_strided_slice %11 {offsets = [0, 128], sizes = [80, 128], strides = [1, 1]} : vector<80x512xf32> to vector<80x128xf32>
    %c1 = arith.constant 1 : index
    %c0_27 = arith.constant 0 : index
    %c0_28 = arith.constant 0 : index
    %44 = vector.load %arg4[%c1, %c0_27, %c0_28] : memref<4x96x80xf32, #tpu.memory_space<vmem>>, vector<1x96x80xf32>
    %45 = vector.shape_cast %44 : vector<1x96x80xf32> to vector<96x80xf32>
    %cst_29 = arith.constant dense<0.000000e+00> : vector<96x128xf32>
    %46 = tpu.matmul %45, %43, %cst_29 {dimension_numbers = #tpu.dot_dimension_numbers<[1], [0], [0], [1], [0, 0, 1, 1], [], []>} : vector<96x80xf32>, vector<80x128xf32>, vector<96x128xf32> -> vector<96x128xf32>
    %47 = vector.extract_strided_slice %46 {offsets = [0, 0], sizes = [32, 128], strides = [1, 1]} : vector<96x128xf32> to vector<32x128xf32>
    %48 = vector.extract_strided_slice %46 {offsets = [32, 0], sizes = [32, 128], strides = [1, 1]} : vector<96x128xf32> to vector<32x128xf32>
    %49 = arith.maximumf %47, %48 : vector<32x128xf32>
    %50 = vector.extract_strided_slice %46 {offsets = [64, 0], sizes = [32, 128], strides = [1, 1]} : vector<96x128xf32> to vector<32x128xf32>
    %51 = arith.maximumf %49, %50 : vector<32x128xf32>
    %c1_30 = arith.constant 1 : index
    %c0_31 = arith.constant 0 : index
    %c0_32 = arith.constant 0 : index
    %52 = vector.load %arg5[%c1_30, %c0_31, %c0_32] : memref<4x32x128xf32, #tpu.memory_space<vmem>>, vector<1x32x128xf32>
    %53 = vector.shape_cast %52 : vector<1x32x128xf32> to vector<32x128xf32>
    %54 = arith.mulf %51, %53 : vector<32x128xf32>
    %c1_33 = arith.constant 1 : index
    %c0_34 = arith.constant 0 : index
    %c0_35 = arith.constant 0 : index
    %55 = vector.load %arg6[%c1_33, %c0_34, %c0_35] : memref<4x32x128xf32, #tpu.memory_space<vmem>>, vector<1x32x128xf32>
    %56 = vector.shape_cast %55 : vector<1x32x128xf32> to vector<32x128xf32>
    %57 = arith.addf %54, %56 : vector<32x128xf32>
    %cst_36 = arith.constant 0.000000e+00 : f32
    %58 = vector.broadcast %cst_36 : f32 to vector<32x128xf32>
    %59 = arith.cmpf oge, %57, %58 : vector<32x128xf32>
    %60 = vector.broadcast %12 : f32 to vector<32x128xf32>
    %61 = arith.mulf %60, %57 : vector<32x128xf32>
    %62 = arith.select %59, %57, %61 : vector<32x128xi1>, vector<32x128xf32>
    %c1_37 = arith.constant 1 : index
    %c0_38 = arith.constant 0 : index
    %c0_39 = arith.constant 0 : index
    %63 = vector.load %arg7[%c1_37, %c0_38, %c0_39] : memref<8x32x128xf32, #tpu.memory_space<vmem>>, vector<1x32x128xf32>
    %64 = vector.shape_cast %63 : vector<1x32x128xf32> to vector<32x128xf32>
    %65 = arith.mulf %62, %64 : vector<32x128xf32>
    %cst_40 = arith.constant dense<0.000000e+00> : vector<32xf32>
    %66 = vector.multi_reduction <add>, %65, %cst_40 [1] : vector<32x128xf32> to vector<32xf32>
    %67 = vector.shape_cast %66 : vector<32xf32> to vector<32x1xf32>
    %68 = arith.addf %37, %67 : vector<32x1xf32>
    %c5 = arith.constant 5 : index
    %c0_41 = arith.constant 0 : index
    %c0_42 = arith.constant 0 : index
    %69 = vector.load %arg7[%c5, %c0_41, %c0_42] : memref<8x32x128xf32, #tpu.memory_space<vmem>>, vector<1x32x128xf32>
    %70 = vector.shape_cast %69 : vector<1x32x128xf32> to vector<32x128xf32>
    %71 = arith.mulf %62, %70 : vector<32x128xf32>
    %cst_43 = arith.constant dense<0.000000e+00> : vector<32xf32>
    %72 = vector.multi_reduction <add>, %71, %cst_43 [1] : vector<32x128xf32> to vector<32xf32>
    %73 = vector.shape_cast %72 : vector<32xf32> to vector<32x1xf32>
    %74 = arith.addf %42, %73 : vector<32x1xf32>
    %75 = vector.extract_strided_slice %11 {offsets = [0, 256], sizes = [80, 128], strides = [1, 1]} : vector<80x512xf32> to vector<80x128xf32>
    %c2 = arith.constant 2 : index
    %c0_44 = arith.constant 0 : index
    %c0_45 = arith.constant 0 : index
    %76 = vector.load %arg4[%c2, %c0_44, %c0_45] : memref<4x96x80xf32, #tpu.memory_space<vmem>>, vector<1x96x80xf32>
    %77 = vector.shape_cast %76 : vector<1x96x80xf32> to vector<96x80xf32>
    %cst_46 = arith.constant dense<0.000000e+00> : vector<96x128xf32>
    %78 = tpu.matmul %77, %75, %cst_46 {dimension_numbers = #tpu.dot_dimension_numbers<[1], [0], [0], [1], [0, 0, 1, 1], [], []>} : vector<96x80xf32>, vector<80x128xf32>, vector<96x128xf32> -> vector<96x128xf32>
    %79 = vector.extract_strided_slice %78 {offsets = [0, 0], sizes = [32, 128], strides = [1, 1]} : vector<96x128xf32> to vector<32x128xf32>
    %80 = vector.extract_strided_slice %78 {offsets = [32, 0], sizes = [32, 128], strides = [1, 1]} : vector<96x128xf32> to vector<32x128xf32>
    %81 = arith.maximumf %79, %80 : vector<32x128xf32>
    %82 = vector.extract_strided_slice %78 {offsets = [64, 0], sizes = [32, 128], strides = [1, 1]} : vector<96x128xf32> to vector<32x128xf32>
    %83 = arith.maximumf %81, %82 : vector<32x128xf32>
    %c2_47 = arith.constant 2 : index
    %c0_48 = arith.constant 0 : index
    %c0_49 = arith.constant 0 : index
    %84 = vector.load %arg5[%c2_47, %c0_48, %c0_49] : memref<4x32x128xf32, #tpu.memory_space<vmem>>, vector<1x32x128xf32>
    %85 = vector.shape_cast %84 : vector<1x32x128xf32> to vector<32x128xf32>
    %86 = arith.mulf %83, %85 : vector<32x128xf32>
    %c2_50 = arith.constant 2 : index
    %c0_51 = arith.constant 0 : index
    %c0_52 = arith.constant 0 : index
    %87 = vector.load %arg6[%c2_50, %c0_51, %c0_52] : memref<4x32x128xf32, #tpu.memory_space<vmem>>, vector<1x32x128xf32>
    %88 = vector.shape_cast %87 : vector<1x32x128xf32> to vector<32x128xf32>
    %89 = arith.addf %86, %88 : vector<32x128xf32>
    %cst_53 = arith.constant 0.000000e+00 : f32
    %90 = vector.broadcast %cst_53 : f32 to vector<32x128xf32>
    %91 = arith.cmpf oge, %89, %90 : vector<32x128xf32>
    %92 = vector.broadcast %12 : f32 to vector<32x128xf32>
    %93 = arith.mulf %92, %89 : vector<32x128xf32>
    %94 = arith.select %91, %89, %93 : vector<32x128xi1>, vector<32x128xf32>
    %c2_54 = arith.constant 2 : index
    %c0_55 = arith.constant 0 : index
    %c0_56 = arith.constant 0 : index
    %95 = vector.load %arg7[%c2_54, %c0_55, %c0_56] : memref<8x32x128xf32, #tpu.memory_space<vmem>>, vector<1x32x128xf32>
    %96 = vector.shape_cast %95 : vector<1x32x128xf32> to vector<32x128xf32>
    %97 = arith.mulf %94, %96 : vector<32x128xf32>
    %cst_57 = arith.constant dense<0.000000e+00> : vector<32xf32>
    %98 = vector.multi_reduction <add>, %97, %cst_57 [1] : vector<32x128xf32> to vector<32xf32>
    %99 = vector.shape_cast %98 : vector<32xf32> to vector<32x1xf32>
    %100 = arith.addf %68, %99 : vector<32x1xf32>
    %c6 = arith.constant 6 : index
    %c0_58 = arith.constant 0 : index
    %c0_59 = arith.constant 0 : index
    %101 = vector.load %arg7[%c6, %c0_58, %c0_59] : memref<8x32x128xf32, #tpu.memory_space<vmem>>, vector<1x32x128xf32>
    %102 = vector.shape_cast %101 : vector<1x32x128xf32> to vector<32x128xf32>
    %103 = arith.mulf %94, %102 : vector<32x128xf32>
    %cst_60 = arith.constant dense<0.000000e+00> : vector<32xf32>
    %104 = vector.multi_reduction <add>, %103, %cst_60 [1] : vector<32x128xf32> to vector<32xf32>
    %105 = vector.shape_cast %104 : vector<32xf32> to vector<32x1xf32>
    %106 = arith.addf %74, %105 : vector<32x1xf32>
    %107 = vector.extract_strided_slice %11 {offsets = [0, 384], sizes = [80, 128], strides = [1, 1]} : vector<80x512xf32> to vector<80x128xf32>
    %c3 = arith.constant 3 : index
    %c0_61 = arith.constant 0 : index
    %c0_62 = arith.constant 0 : index
    %108 = vector.load %arg4[%c3, %c0_61, %c0_62] : memref<4x96x80xf32, #tpu.memory_space<vmem>>, vector<1x96x80xf32>
    %109 = vector.shape_cast %108 : vector<1x96x80xf32> to vector<96x80xf32>
    %cst_63 = arith.constant dense<0.000000e+00> : vector<96x128xf32>
    %110 = tpu.matmul %109, %107, %cst_63 {dimension_numbers = #tpu.dot_dimension_numbers<[1], [0], [0], [1], [0, 0, 1, 1], [], []>} : vector<96x80xf32>, vector<80x128xf32>, vector<96x128xf32> -> vector<96x128xf32>
    %111 = vector.extract_strided_slice %110 {offsets = [0, 0], sizes = [32, 128], strides = [1, 1]} : vector<96x128xf32> to vector<32x128xf32>
    %112 = vector.extract_strided_slice %110 {offsets = [32, 0], sizes = [32, 128], strides = [1, 1]} : vector<96x128xf32> to vector<32x128xf32>
    %113 = arith.maximumf %111, %112 : vector<32x128xf32>
    %114 = vector.extract_strided_slice %110 {offsets = [64, 0], sizes = [32, 128], strides = [1, 1]} : vector<96x128xf32> to vector<32x128xf32>
    %115 = arith.maximumf %113, %114 : vector<32x128xf32>
    %c3_64 = arith.constant 3 : index
    %c0_65 = arith.constant 0 : index
    %c0_66 = arith.constant 0 : index
    %116 = vector.load %arg5[%c3_64, %c0_65, %c0_66] : memref<4x32x128xf32, #tpu.memory_space<vmem>>, vector<1x32x128xf32>
    %117 = vector.shape_cast %116 : vector<1x32x128xf32> to vector<32x128xf32>
    %118 = arith.mulf %115, %117 : vector<32x128xf32>
    %c3_67 = arith.constant 3 : index
    %c0_68 = arith.constant 0 : index
    %c0_69 = arith.constant 0 : index
    %119 = vector.load %arg6[%c3_67, %c0_68, %c0_69] : memref<4x32x128xf32, #tpu.memory_space<vmem>>, vector<1x32x128xf32>
    %120 = vector.shape_cast %119 : vector<1x32x128xf32> to vector<32x128xf32>
    %121 = arith.addf %118, %120 : vector<32x128xf32>
    %cst_70 = arith.constant 0.000000e+00 : f32
    %122 = vector.broadcast %cst_70 : f32 to vector<32x128xf32>
    %123 = arith.cmpf oge, %121, %122 : vector<32x128xf32>
    %124 = vector.broadcast %12 : f32 to vector<32x128xf32>
    %125 = arith.mulf %124, %121 : vector<32x128xf32>
    %126 = arith.select %123, %121, %125 : vector<32x128xi1>, vector<32x128xf32>
    %c3_71 = arith.constant 3 : index
    %c0_72 = arith.constant 0 : index
    %c0_73 = arith.constant 0 : index
    %127 = vector.load %arg7[%c3_71, %c0_72, %c0_73] : memref<8x32x128xf32, #tpu.memory_space<vmem>>, vector<1x32x128xf32>
    %128 = vector.shape_cast %127 : vector<1x32x128xf32> to vector<32x128xf32>
    %129 = arith.mulf %126, %128 : vector<32x128xf32>
    %cst_74 = arith.constant dense<0.000000e+00> : vector<32xf32>
    %130 = vector.multi_reduction <add>, %129, %cst_74 [1] : vector<32x128xf32> to vector<32xf32>
    %131 = vector.shape_cast %130 : vector<32xf32> to vector<32x1xf32>
    %132 = arith.addf %100, %131 : vector<32x1xf32>
    %c7 = arith.constant 7 : index
    %c0_75 = arith.constant 0 : index
    %c0_76 = arith.constant 0 : index
    %133 = vector.load %arg7[%c7, %c0_75, %c0_76] : memref<8x32x128xf32, #tpu.memory_space<vmem>>, vector<1x32x128xf32>
    %134 = vector.shape_cast %133 : vector<1x32x128xf32> to vector<32x128xf32>
    %135 = arith.mulf %126, %134 : vector<32x128xf32>
    %cst_77 = arith.constant dense<0.000000e+00> : vector<32xf32>
    %136 = vector.multi_reduction <add>, %135, %cst_77 [1] : vector<32x128xf32> to vector<32xf32>
    %137 = vector.shape_cast %136 : vector<32xf32> to vector<32x1xf32>
    %138 = arith.addf %106, %137 : vector<32x1xf32>
    %139 = tpu.concatenate %132, %138 in 1 : vector<32x1xf32>, vector<32x1xf32> -> vector<32x2xf32>
    %140 = vector.extract_strided_slice %139 {offsets = [0, 0], sizes = [16, 2], strides = [1, 1]} : vector<32x2xf32> to vector<16x2xf32>
    %cst_78 = arith.constant dense<0.000000e+00> : vector<2xf32>
    %141 = vector.multi_reduction <add>, %140, %cst_78 [0] : vector<16x2xf32> to vector<2xf32>
    %142 = vector.shape_cast %141 : vector<2xf32> to vector<1x2xf32>
    %c0_79 = arith.constant 0 : index
    %c0_80 = arith.constant 0 : index
    %143 = vector.load %arg8[%c0_79, %c0_80] : memref<1x2xf32, #tpu.memory_space<vmem>>, vector<1x2xf32>
    %144 = arith.addf %142, %143 : vector<1x2xf32>
    %cst_81 = arith.constant dense<0xFF800000> : vector<1xf32>
    %145 = vector.multi_reduction <maximumf>, %144, %cst_81 [1] : vector<1x2xf32> to vector<1xf32>
    %146 = vector.shape_cast %145 : vector<1xf32> to vector<1x1xf32>
    %147 = vector.broadcast %146 : vector<1x1xf32> to vector<1x2xf32>
    %148 = arith.subf %144, %147 : vector<1x2xf32>
    %149 = math.exp %148 : vector<1x2xf32>
    %cst_82 = arith.constant dense<0.000000e+00> : vector<1xf32>
    %150 = vector.multi_reduction <add>, %149, %cst_82 [1] : vector<1x2xf32> to vector<1xf32>
    %151 = vector.shape_cast %150 : vector<1xf32> to vector<1x1xf32>
    %152 = vector.broadcast %151 : vector<1x1xf32> to vector<1x2xf32>
    %153 = arith.divf %149, %152 : vector<1x2xf32>
    %c0_83 = arith.constant 0 : index
    %c0_84 = arith.constant 0 : index
    %154 = vector.load %arg10[%c0_83, %c0_84] : memref<2x2xf32, #tpu.memory_space<vmem>>, vector<1x2xf32>
    tpu.vector_store %arg10[%c0_83, %c0_84], %153 {strides = array<i32>} : memref<2x2xf32, #tpu.memory_space<vmem>>, vector<1x2xf32>,
    %155 = vector.extract_strided_slice %139 {offsets = [16, 0], sizes = [16, 2], strides = [1, 1]} : vector<32x2xf32> to vector<16x2xf32>
    %cst_85 = arith.constant dense<0.000000e+00> : vector<2xf32>
    %156 = vector.multi_reduction <add>, %155, %cst_85 [0] : vector<16x2xf32> to vector<2xf32>
    %157 = vector.shape_cast %156 : vector<2xf32> to vector<1x2xf32>
    %c0_86 = arith.constant 0 : index
    %c0_87 = arith.constant 0 : index
    %158 = vector.load %arg8[%c0_86, %c0_87] : memref<1x2xf32, #tpu.memory_space<vmem>>, vector<1x2xf32>
    %159 = arith.addf %157, %158 : vector<1x2xf32>
    %cst_88 = arith.constant dense<0xFF800000> : vector<1xf32>
    %160 = vector.multi_reduction <maximumf>, %159, %cst_88 [1] : vector<1x2xf32> to vector<1xf32>
    %161 = vector.shape_cast %160 : vector<1xf32> to vector<1x1xf32>
    %162 = vector.broadcast %161 : vector<1x1xf32> to vector<1x2xf32>
    %163 = arith.subf %159, %162 : vector<1x2xf32>
    %164 = math.exp %163 : vector<1x2xf32>
    %cst_89 = arith.constant dense<0.000000e+00> : vector<1xf32>
    %165 = vector.multi_reduction <add>, %164, %cst_89 [1] : vector<1x2xf32> to vector<1xf32>
    %166 = vector.shape_cast %165 : vector<1xf32> to vector<1x1xf32>
    %167 = vector.broadcast %166 : vector<1x1xf32> to vector<1x2xf32>
    %168 = arith.divf %164, %167 : vector<1x2xf32>
    %c1_90 = arith.constant 1 : index
    %c0_91 = arith.constant 0 : index
    %169 = vector.load %arg10[%c1_90, %c0_91] : memref<2x2xf32, #tpu.memory_space<vmem>>, vector<1x2xf32>
    tpu.vector_store %arg10[%c1_90, %c0_91], %168 {strides = array<i32>} : memref<2x2xf32, #tpu.memory_space<vmem>>, vector<1x2xf32>,
    return
  }
}

</mosaic_0001>

<llo_original>
// kernel: squeeze.2
$region0: #{squeeze.2}
  %s0 = inlined_call_operand.vmem [shape: f32[8192], index: 0, kind: input, shape index: {}]
  %s1 = inlined_call_operand.vmem [shape: f32[128,4,16], index: 1, kind: output, shape index: {}]
  $region1: #{squeeze.2} parent=0
    #allocation0 [shape = 'u8[524288]{0}', space=vmem, size = 0x80000, scoped, tag = 'scoped mem for output reshape']
    %v2 = vld [vmem:[%s0] sm:$0xff]
    %vm3 = vcmask 130048
    %4 = vst.msk [vmem:[#allocation0] ss:$16 sm:$0x3] %vm3, %v2
    %5 = vst.msk [vmem:[#allocation0] ss:$16 sm:$0xc] %vm3, %v2
    %6 = vst.msk [vmem:[#allocation0] ss:$16 sm:$0x30] %vm3, %v2
    %7 = vst.msk [vmem:[#allocation0] ss:$16 sm:$0xc0] %vm3, %v2
    %s8 = scalar_lea.vmem %s0, 8
    %v9 = vld [vmem:[%s8] sm:$0xff]
    %vm10 = vcmask 130048
    %s11 = scalar_lea.vmem [#allocation0], 128
    %12 = vst.msk [vmem:[%s11] ss:$16 sm:$0x3] %vm10, %v9
    %s13 = scalar_lea.vmem [#allocation0], 128
    %14 = vst.msk [vmem:[%s13] ss:$16 sm:$0xc] %vm10, %v9
    %s15 = scalar_lea.vmem [#allocation0], 128
    %16 = vst.msk [vmem:[%s15] ss:$16 sm:$0x30] %vm10, %v9
    %s17 = scalar_lea.vmem [#allocation0], 128
    %18 = vst.msk [vmem:[%s17] ss:$16 sm:$0xc0] %vm10, %v9
    %s19 = scalar_lea.vmem %s0, 16
    %v20 = vld [vmem:[%s19] sm:$0xff]
    %vm21 = vcmask 130048
    %s22 = scalar_lea.vmem [#allocation0], 256
    %23 = vst.msk [vmem:[%s22] ss:$16 sm:$0x3] %vm21, %v20
    %s24 = scalar_lea.vmem [#allocation0], 256
    %25 = vst.msk [vmem:[%s24] ss:$16 sm:$0xc] %vm21, %v20
    %s26 = scalar_lea.vmem [#allocation0], 256
    %27 = vst.msk [vmem:[%s26] ss:$16 sm:$0x30] %vm21, %v20
    %s28 = scalar_lea.vmem [#allocation0], 256
    %29 = vst.msk [vmem:[%s28] ss:$16 sm:$0xc0] %vm21, %v20
    %s30 = scalar_lea.vmem %s0, 24
    %v31 = vld [vmem:[%s30] sm:$0xff]
    %vm32 = vcmask 130048
    %s33 = scalar_lea.vmem [#allocation0], 384
    %34 = vst.msk [vmem:[%s33] ss:$16 sm:$0x3] %vm32, %v31
    %s35 = scalar_lea.vmem [#allocation0], 384
    %36 = vst.msk [vmem:[%s35] ss:$16 sm:$0xc] %vm32, %v31
    %s37 = scalar_lea.vmem [#allocation0], 384
    %38 = vst.msk [vmem:[%s37] ss:$16 sm:$0x30] %vm32, %v31
    %s39 = scalar_lea.vmem [#allocation0], 384
    %40 = vst.msk [vmem:[%s39] ss:$16 sm:$0xc0] %vm32, %v31
    %s41 = scalar_lea.vmem %s0, 32
    %v42 = vld [vmem:[%s41] sm:$0xff]
    %vm43 = vcmask 130048
    %s44 = scalar_lea.vmem [#allocation0], 512
    %45 = vst.msk [vmem:[%s44] ss:$16 sm:$0x3] %vm43, %v42
    %s46 = scalar_lea.vmem [#allocation0], 512
    %47 = vst.msk [vmem:[%s46] ss:$16 sm:$0xc] %vm43, %v42
    %s48 = scalar_lea.vmem [#allocation0], 512
    %49 = vst.msk [vmem:[%s48] ss:$16 sm:$0x30] %vm43, %v42
    %s50 = scalar_lea.vmem [#allocation0], 512
    %51 = vst.msk [vmem:[%s50] ss:$16 sm:$0xc0] %vm43, %v42
    %s52 = scalar_lea.vmem %s0, 40
    %v53 = vld [vmem:[%s52] sm:$0xff]
    %vm54 = vcmask 130048
    %s55 = scalar_lea.vmem [#allocation0], 640
    %56 = vst.msk [vmem:[%s55] ss:$16 sm:$0x3] %vm54, %v53
    %s57 = scalar_lea.vmem [#allocation0], 640
    %58 = vst.msk [vmem:[%s57] ss:$16 sm:$0xc] %vm54, %v53
    %s59 = scalar_lea.vmem [#allocation0], 640
    %60 = vst.msk [vmem:[%s59] ss:$16 sm:$0x30] %vm54, %v53
    %s61 = scalar_lea.vmem [#allocation0], 640
    %62 = vst.msk [vmem:[%s61] ss:$16 sm:$0xc0] %vm54, %v53
    %s63 = scalar_lea.vmem %s0, 48
    %v64 = vld [vmem:[%s63] sm:$0xff]
    %vm65 = vcmask 130048
    %s66 = scalar_lea.vmem [#allocation0], 768
    %67 = vst.msk [vmem:[%s66] ss:$16 sm:$0x3] %vm65, %v64
    %s68 = scalar_lea.vmem [#allocation0], 768
    %69 = vst.msk [vmem:[%s68] ss:$16 sm:$0xc] %vm65, %v64
    %s70 = scalar_lea.vmem [#allocation0], 768
    %71 = vst.msk [vmem:[%s70] ss:$16 sm:$0x30] %vm65, %v64
    %s72 = scalar_lea.vmem [#allocation0], 768
    %73 = vst.msk [vmem:[%s72] ss:$16 sm:$0xc0] %vm65, %v64
    %s74 = scalar_lea.vmem %s0, 56
    %v75 = vld [vmem:[%s74] sm:$0xff]
    %vm76 = vcmask 130048
    %s77 = scalar_lea.vmem [#allocation0], 896
    %78 = vst.msk [vmem:[%s77] ss:$16 sm:$0x3] %vm76, %v75
    %s79 = scalar_lea.vmem [#allocation0], 896
    %80 = vst.msk [vmem:[%s79] ss:$16 sm:$0xc] %vm76, %v75
    %s81 = scalar_lea.vmem [#allocation0], 896
    %82 = vst.msk [vmem:[%s81] ss:$16 sm:$0x30] %vm76, %v75
    %s83 = scalar_lea.vmem [#allocation0], 896
    %84 = vst.msk [vmem:[%s83] ss:$16 sm:$0xc0] %vm76, %v75
    %v85 = vld [vmem:[%s0] sm:$0xff]
    %86 = vrot.lane.b32.xlu0 %v85, 112
    %v87 = vpop.permute.xlu0 %86
    %vm88 = vcmask 130048
    %s89 = scalar_lea.vmem [#allocation0], 1
    %90 = vst.msk [vmem:[%s89] ss:$16 sm:$0x3] %vm88, %v87
    %s91 = scalar_lea.vmem [#allocation0], 1
    %92 = vst.msk [vmem:[%s91] ss:$16 sm:$0xc] %vm88, %v87
    %s93 = scalar_lea.vmem [#allocation0], 1
    %94 = vst.msk [vmem:[%s93] ss:$16 sm:$0x30] %vm88, %v87
    %s95 = scalar_lea.vmem [#allocation0], 1
    %96 = vst.msk [vmem:[%s95] ss:$16 sm:$0xc0] %vm88, %v87
    %s97 = scalar_lea.vmem %s0, 8
    %v98 = vld [vmem:[%s97] sm:$0xff]
    %99 = vrot.lane.b32.xlu0 %v98, 112
    %v100 = vpop.permute.xlu0 %99
    %vm101 = vcmask 130048
    %s102 = scalar_lea.vmem [#allocation0], 129
    %103 = vst.msk [vmem:[%s102] ss:$16 sm:$0x3] %vm101, %v100
    %s104 = scalar_lea.vmem [#allocation0], 129
    %105 = vst.msk [vmem:[%s104] ss:$16 sm:$0xc] %vm101, %v100
    %s106 = scalar_lea.vmem [#allocation0], 129
    %107 = vst.msk [vmem:[%s106] ss:$16 sm:$0x30] %vm101, %v100
    %s108 = scalar_lea.vmem [#allocation0], 129
    %109 = vst.msk [vmem:[%s108] ss:$16 sm:$0xc0] %vm101, %v100
    %s110 = scalar_lea.vmem %s0, 16
    %v111 = vld [vmem:[%s110] sm:$0xff]
    %112 = vrot.lane.b32.xlu0 %v111, 112
    %v113 = vpop.permute.xlu0 %112
    %vm114 = vcmask 130048
    %s115 = scalar_lea.vmem [#allocation0], 257
    %116 = vst.msk [vmem:[%s115] ss:$16 sm:$0x3] %vm114, %v113
    %s117 = scalar_lea.vmem [#allocation0], 257
    %118 = vst.msk [vmem:[%s117] ss:$16 sm:$0xc] %vm114, %v113
    %s119 = scalar_lea.vmem [#allocation0], 257
    %120 = vst.msk [vmem:[%s119] ss:$16 sm:$0x30] %vm114, %v113
    %s121 = scalar_lea.vmem [#allocation0], 257
    %122 = vst.msk [vmem:[%s121] ss:$16 sm:$0xc0] %vm114, %v113
    %s123 = scalar_lea.vmem %s0, 24
    %v124 = vld [vmem:[%s123] sm:$0xff]
    %125 = vrot.lane.b32.xlu0 %v124, 112
    %v126 = vpop.permute.xlu0 %125
    %vm127 = vcmask 130048
    %s128 = scalar_lea.vmem [#allocation0], 385
    %129 = vst.msk [vmem:[%s128] ss:$16 sm:$0x3] %vm127, %v126
    %s130 = scalar_lea.vmem [#allocation0], 385
    %131 = vst.msk [vmem:[%s130] ss:$16 sm:$0xc] %vm127, %v126
    %s132 = scalar_lea.vmem [#allocation0], 385
    %133 = vst.msk [vmem:[%s132] ss:$16 sm:$0x30] %vm127, %v126
    %s134 = scalar_lea.vmem [#allocation0], 385
    %135 = vst.msk [vmem:[%s134] ss:$16 sm:$0xc0] %vm127, %v126
    %s136 = scalar_lea.vmem %s0, 32
    %v137 = vld [vmem:[%s136] sm:$0xff]
    %138 = vrot.lane.b32.xlu0 %v137, 112
    %v139 = vpop.permute.xlu0 %138
    %vm140 = vcmask 130048
    %s141 = scalar_lea.vmem [#allocation0], 513
    %142 = vst.msk [vmem:[%s141] ss:$16 sm:$0x3] %vm140, %v139
    %s143 = scalar_lea.vmem [#allocation0], 513
    %144 = vst.msk [vmem:[%s143] ss:$16 sm:$0xc] %vm140, %v139
    %s145 = scalar_lea.vmem [#allocation0], 513
    %146 = vst.msk [vmem:[%s145] ss:$16 sm:$0x30] %vm140, %v139
    %s147 = scalar_lea.vmem [#allocation0], 513
    %148 = vst.msk [vmem:[%s147] ss:$16 sm:$0xc0] %vm140, %v139
    %s149 = scalar_lea.vmem %s0, 40
    %v150 = vld [vmem:[%s149] sm:$0xff]
    %151 = vrot.lane.b32.xlu0 %v150, 112
    %v152 = vpop.permute.xlu0 %151
    %vm153 = vcmask 130048
    %s154 = scalar_lea.vmem [#allocation0], 641
    %155 = vst.msk [vmem:[%s154] ss:$16 sm:$0x3] %vm153, %v152
    %s156 = scalar_lea.vmem [#allocation0], 641
    %157 = vst.msk [vmem:[%s156] ss:$16 sm:$0xc] %vm153, %v152
    %s158 = scalar_lea.vmem [#allocation0], 641
    %159 = vst.msk [vmem:[%s158] ss:$16 sm:$0x30] %vm153, %v152
    %s160 = scalar_lea.vmem [#allocation0], 641
    %161 = vst.msk [vmem:[%s160] ss:$16 sm:$0xc0] %vm153, %v152
    %s162 = scalar_lea.vmem %s0, 48
    %v163 = vld [vmem:[%s162] sm:$0xff]
    %164 = vrot.lane.b32.xlu0 %v163, 112
    %v165 = vpop.permute.xlu0 %164
    %vm166 = vcmask 130048
    %s167 = scalar_lea.vmem [#allocation0], 769
    %168 = vst.msk [vmem:[%s167] ss:$16 sm:$0x3] %vm166, %v165
    %s169 = scalar_lea.vmem [#allocation0], 769
    %170 = vst.msk [vmem:[%s169] ss:$16 sm:$0xc] %vm166, %v165
    %s171 = scalar_lea.vmem [#allocation0], 769
    %172 = vst.msk [vmem:[%s171] ss:$16 sm:$0x30] %vm166, %v165
    %s173 = scalar_lea.vmem [#allocation0], 769
    %174 = vst.msk [vmem:[%s173] ss:$16 sm:$0xc0] %vm166, %v165
    %s175 = scalar_lea.vmem %s0, 56
    %v176 = vld [vmem:[%s175] sm:$0xff]
    %177 = vrot.lane.b32.xlu0 %v176, 112
    %v178 = vpop.permute.xlu0 %177
    %vm179 = vcmask 130048
    %s180 = scalar_lea.vmem [#allocation0], 897
    %181 = vst.msk [vmem:[%s180] ss:$16 sm:$0x3] %vm179, %v178
    %s182 = scalar_lea.vmem [#allocation0], 897
    %183 = vst.msk [vmem:[%s182] ss:$16 sm:$0xc] %vm179, %v178
    %s184 = scalar_lea.vmem [#allocation0], 897
    %185 = vst.msk [vmem:[%s184] ss:$16 sm:$0x30] %vm179, %v178
    %s186 = scalar_lea.vmem [#allocation0], 897
    %187 = vst.msk [vmem:[%s186] ss:$16 sm:$0xc0] %vm179, %v178
    %v188 = vld [vmem:[%s0] sm:$0xff]
    %189 = vrot.lane.b32.xlu0 %v188, 96
    %v190 = vpop.permute.xlu0 %189
    %vm191 = vcmask 130048
    %s192 = scalar_lea.vmem [#allocation0], 2
    %193 = vst.msk [vmem:[%s192] ss:$16 sm:$0x3] %vm191, %v190
    %s194 = scalar_lea.vmem [#allocation0], 2
    %195 = vst.msk [vmem:[%s194] ss:$16 sm:$0xc] %vm191, %v190
    %s196 = scalar_lea.vmem [#allocation0], 2
    %197 = vst.msk [vmem:[%s196] ss:$16 sm:$0x30] %vm191, %v190
    %s198 = scalar_lea.vmem [#allocation0], 2
    %199 = vst.msk [vmem:[%s198] ss:$16 sm:$0xc0] %vm191, %v190
    %s200 = scalar_lea.vmem %s0, 8
    %v201 = vld [vmem:[%s200] sm:$0xff]
    %202 = vrot.lane.b32.xlu0 %v201, 96
    %v203 = vpop.permute.xlu0 %202
    %vm204 = vcmask 130048
    %s205 = scalar_lea.vmem [#allocation0], 130
    %206 = vst.msk [vmem:[%s205] ss:$16 sm:$0x3] %vm204, %v203
    %s207 = scalar_lea.vmem [#allocation0], 130
    %208 = vst.msk [vmem:[%s207] ss:$16 sm:$0xc] %vm204, %v203
    %s209 = scalar_lea.vmem [#allocation0], 130
    %210 = vst.msk [vmem:[%s209] ss:$16 sm:$0x30] %vm204, %v203
    %s211 = scalar_lea.vmem [#allocation0], 130
    %212 = vst.msk [vmem:[%s211] ss:$16 sm:$0xc0] %vm204, %v203
    %s213 = scalar_lea.vmem %s0, 16
    %v214 = vld [vmem:[%s213] sm:$0xff]
    %215 = vrot.lane.b32.xlu0 %v214, 96
    %v216 = vpop.permute.xlu0 %215
    %vm217 = vcmask 130048
    %s218 = scalar_lea.vmem [#allocation0], 258
    %219 = vst.msk [vmem:[%s218] ss:$16 sm:$0x3] %vm217, %v216
    %s220 = scalar_lea.vmem [#allocation0], 258
    %221 = vst.msk [vmem:[%s220] ss:$16 sm:$0xc] %vm217, %v216
    %s222 = scalar_lea.vmem [#allocation0], 258
    %223 = vst.msk [vmem:[%s222] ss:$16 sm:$0x30] %vm217, %v216
    %s224 = scalar_lea.vmem [#allocation0], 258
    %225 = vst.msk [vmem:[%s224] ss:$16 sm:$0xc0] %vm217, %v216
    %s226 = scalar_lea.vmem %s0, 24
    %v227 = vld [vmem:[%s226] sm:$0xff]
    %228 = vrot.lane.b32.xlu0 %v227, 96
    %v229 = vpop.permute.xlu0 %228
    %vm230 = vcmask 130048
    %s231 = scalar_lea.vmem [#allocation0], 386
    %232 = vst.msk [vmem:[%s231] ss:$16 sm:$0x3] %vm230, %v229
    %s233 = scalar_lea.vmem [#allocation0], 386
    %234 = vst.msk [vmem:[%s233] ss:$16 sm:$0xc] %vm230, %v229
    %s235 = scalar_lea.vmem [#allocation0], 386
    %236 = vst.msk [vmem:[%s235] ss:$16 sm:$0x30] %vm230, %v229
    %s237 = scalar_lea.vmem [#allocation0], 386
    %238 = vst.msk [vmem:[%s237] ss:$16 sm:$0xc0] %vm230, %v229
    %s239 = scalar_lea.vmem %s0, 32
    %v240 = vld [vmem:[%s239] sm:$0xff]
    %241 = vrot.lane.b32.xlu0 %v240, 96
    %v242 = vpop.permute.xlu0 %241
    %vm243 = vcmask 130048
    %s244 = scalar_lea.vmem [#allocation0], 514
    %245 = vst.msk [vmem:[%s244] ss:$16 sm:$0x3] %vm243, %v242
    %s246 = scalar_lea.vmem [#allocation0], 514
    %247 = vst.msk [vmem:[%s246] ss:$16 sm:$0xc] %vm243, %v242
    %s248 = scalar_lea.vmem [#allocation0], 514
    %249 = vst.msk [vmem:[%s248] ss:$16 sm:$0x30] %vm243, %v242
    %s250 = scalar_lea.vmem [#allocation0], 514
    %251 = vst.msk [vmem:[%s250] ss:$16 sm:$0xc0] %vm243, %v242
    %s252 = scalar_lea.vmem %s0, 40
    %v253 = vld [vmem:[%s252] sm:$0xff]
    %254 = vrot.lane.b32.xlu0 %v253, 96
    %v255 = vpop.permute.xlu0 %254
    %vm256 = vcmask 130048
    %s257 = scalar_lea.vmem [#allocation0], 642
    %258 = vst.msk [vmem:[%s257] ss:$16 sm:$0x3] %vm256, %v255
    %s259 = scalar_lea.vmem [#allocation0], 642
    %260 = vst.msk [vmem:[%s259] ss:$16 sm:$0xc] %vm256, %v255
    %s261 = scalar_lea.vmem [#allocation0], 642
    %262 = vst.msk [vmem:[%s261] ss:$16 sm:$0x30] %vm256, %v255
    %s263 = scalar_lea.vmem [#allocation0], 642
    %264 = vst.msk [vmem:[%s263] ss:$16 sm:$0xc0] %vm256, %v255
    %s265 = scalar_lea.vmem %s0, 48
    %v266 = vld [vmem:[%s265] sm:$0xff]
    %267 = vrot.lane.b32.xlu0 %v266, 96
    %v268 = vpop.permute.xlu0 %267
    %vm269 = vcmask 130048
    %s270 = scalar_lea.vmem [#allocation0], 770
    %271 = vst.msk [vmem:[%s270] ss:$16 sm:$0x3] %vm269, %v268
    %s272 = scalar_lea.vmem [#allocation0], 770
    %273 = vst.msk [vmem:[%s272] ss:$16 sm:$0xc] %vm269, %v268
    %s274 = scalar_lea.vmem [#allocation0], 770
    %275 = vst.msk [vmem:[%s274] ss:$16 sm:$0x30] %vm269, %v268
    %s276 = scalar_lea.vmem [#allocation0], 770
    %277 = vst.msk [vmem:[%s276] ss:$16 sm:$0xc0] %vm269, %v268
    %s278 = scalar_lea.vmem %s0, 56
    %v279 = vld [vmem:[%s278] sm:$0xff]
    %280 = vrot.lane.b32.xlu0 %v279, 96
    %v281 = vpop.permute.xlu0 %280
    %vm282 = vcmask 130048
    %s283 = scalar_lea.vmem [#allocation0], 898
    %284 = vst.msk [vmem:[%s283] ss:$16 sm:$0x3] %vm282, %v281
    %s285 = scalar_lea.vmem [#allocation0], 898
    %286 = vst.msk [vmem:[%s285] ss:$16 sm:$0xc] %vm282, %v281
    %s287 = scalar_lea.vmem [#allocation0], 898
    %288 = vst.msk [vmem:[%s287] ss:$16 sm:$0x30] %vm282, %v281
    %s289 = scalar_lea.vmem [#allocation0], 898
    %290 = vst.msk [vmem:[%s289] ss:$16 sm:$0xc0] %vm282, %v281
    %v291 = vld [vmem:[%s0] sm:$0xff]
    %292 = vrot.lane.b32.xlu0 %v291, 80
    %v293 = vpop.permute.xlu0 %292
    %vm294 = vcmask 130048
    %s295 = scalar_lea.vmem [#allocation0], 3
    %296 = vst.msk [vmem:[%s295] ss:$16 sm:$0x3] %vm294, %v293
    %s297 = scalar_lea.vmem [#allocation0], 3
    %298 = vst.msk [vmem:[%s297] ss:$16 sm:$0xc] %vm294, %v293
    %s299 = scalar_lea.vmem [#allocation0], 3
    %300 = vst.msk [vmem:[%s299] ss:$16 sm:$0x30] %vm294, %v293
    %s301 = scalar_lea.vmem [#allocation0], 3
    %302 = vst.msk [vmem:[%s301] ss:$16 sm:$0xc0] %vm294, %v293
    %s303 = scalar_lea.vmem %s0, 8
    %v304 = vld [vmem:[%s303] sm:$0xff]
    %305 = vrot.lane.b32.xlu0 %v304, 80
    %v306 = vpop.permute.xlu0 %305
    %vm307 = vcmask 130048
    %s308 = scalar_lea.vmem [#allocation0], 131
    %309 = vst.msk [vmem:[%s308] ss:$16 sm:$0x3] %vm307, %v306
    %s310 = scalar_lea.vmem [#allocation0], 131
    %311 = vst.msk [vmem:[%s310] ss:$16 sm:$0xc] %vm307, %v306
    %s312 = scalar_lea.vmem [#allocation0], 131
    %313 = vst.msk [vmem:[%s312] ss:$16 sm:$0x30] %vm307, %v306
    %s314 = scalar_lea.vmem [#allocation0], 131
    %315 = vst.msk [vmem:[%s314] ss:$16 sm:$0xc0] %vm307, %v306
    %s316 = scalar_lea.vmem %s0, 16
    %v317 = vld [vmem:[%s316] sm:$0xff]
    %318 = vrot.lane.b32.xlu0 %v317, 80
    %v319 = vpop.permute.xlu0 %318
    %vm320 = vcmask 130048
    %s321 = scalar_lea.vmem [#allocation0], 259
    %322 = vst.msk [vmem:[%s321] ss:$16 sm:$0x3] %vm320, %v319
    %s323 = scalar_lea.vmem [#allocation0], 259
    %324 = vst.msk [vmem:[%s323] ss:$16 sm:$0xc] %vm320, %v319
    %s325 = scalar_lea.vmem [#allocation0], 259
    %326 = vst.msk [vmem:[%s325] ss:$16 sm:$0x30] %vm320, %v319
    %s327 = scalar_lea.vmem [#allocation0], 259
    %328 = vst.msk [vmem:[%s327] ss:$16 sm:$0xc0] %vm320, %v319
    %s329 = scalar_lea.vmem %s0, 24
    %v330 = vld [vmem:[%s329] sm:$0xff]
    %331 = vrot.lane.b32.xlu0 %v330, 80
    %v332 = vpop.permute.xlu0 %331
    %vm333 = vcmask 130048
    %s334 = scalar_lea.vmem [#allocation0], 387
    %335 = vst.msk [vmem:[%s334] ss:$16 sm:$0x3] %vm333, %v332
    %s336 = scalar_lea.vmem [#allocation0], 387
    %337 = vst.msk [vmem:[%s336] ss:$16 sm:$0xc] %vm333, %v332
    %s338 = scalar_lea.vmem [#allocation0], 387
    %339 = vst.msk [vmem:[%s338] ss:$16 sm:$0x30] %vm333, %v332
    %s340 = scalar_lea.vmem [#allocation0], 387
    %341 = vst.msk [vmem:[%s340] ss:$16 sm:$0xc0] %vm333, %v332
    %s342 = scalar_lea.vmem %s0, 32
    %v343 = vld [vmem:[%s342] sm:$0xff]
    %344 = vrot.lane.b32.xlu0 %v343, 80
    %v345 = vpop.permute.xlu0 %344
    %vm346 = vcmask 130048
    %s347 = scalar_lea.vmem [#allocation0], 515
    %348 = vst.msk [vmem:[%s347] ss:$16 sm:$0x3] %vm346, %v345
    %s349 = scalar_lea.vmem [#allocation0], 515
    %350 = vst.msk [vmem:[%s349] ss:$16 sm:$0xc] %vm346, %v345
    %s351 = scalar_lea.vmem [#allocation0], 515
    %352 = vst.msk [vmem:[%s351] ss:$16 sm:$0x30] %vm346, %v345
    %s353 = scalar_lea.vmem [#allocation0], 515
    %354 = vst.msk [vmem:[%s353] ss:$16 sm:$0xc0] %vm346, %v345
    %s355 = scalar_lea.vmem %s0, 40
    %v356 = vld [vmem:[%s355] sm:$0xff]
    %357 = vrot.lane.b32.xlu0 %v356, 80
    %v358 = vpop.permute.xlu0 %357
    %vm359 = vcmask 130048
    %s360 = scalar_lea.vmem [#allocation0], 643
    %361 = vst.msk [vmem:[%s360] ss:$16 sm:$0x3] %vm359, %v358
    %s362 = scalar_lea.vmem [#allocation0], 643
    %363 = vst.msk [vmem:[%s362] ss:$16 sm:$0xc] %vm359, %v358
    %s364 = scalar_lea.vmem [#allocation0], 643
    %365 = vst.msk [vmem:[%s364] ss:$16 sm:$0x30] %vm359, %v358
    %s366 = scalar_lea.vmem [#allocation0], 643
    %367 = vst.msk [vmem:[%s366] ss:$16 sm:$0xc0] %vm359, %v358
    %s368 = scalar_lea.vmem %s0, 48
    %v369 = vld [vmem:[%s368] sm:$0xff]
    %370 = vrot.lane.b32.xlu0 %v369, 80
    %v371 = vpop.permute.xlu0 %370
    %vm372 = vcmask 130048
    %s373 = scalar_lea.vmem [#allocation0], 771
    %374 = vst.msk [vmem:[%s373] ss:$16 sm:$0x3] %vm372, %v371
    %s375 = scalar_lea.vmem [#allocation0], 771
    %376 = vst.msk [vmem:[%s375] ss:$16 sm:$0xc] %vm372, %v371
    %s377 = scalar_lea.vmem [#allocation0], 771
    %378 = vst.msk [vmem:[%s377] ss:$16 sm:$0x30] %vm372, %v371
    %s379 = scalar_lea.vmem [#allocation0], 771
    %380 = vst.msk [vmem:[%s379] ss:$16 sm:$0xc0] %vm372, %v371
    %s381 = scalar_lea.vmem %s0, 56
    %v382 = vld [vmem:[%s381] sm:$0xff]
    %383 = vrot.lane.b32.xlu0 %v382, 80
    %v384 = vpop.permute.xlu0 %383
    %vm385 = vcmask 130048
    %s386 = scalar_lea.vmem [#allocation0], 899
    %387 = vst.msk [vmem:[%s386] ss:$16 sm:$0x3] %vm385, %v384
    %s388 = scalar_lea.vmem [#allocation0], 899
    %389 = vst.msk [vmem:[%s388] ss:$16 sm:$0xc] %vm385, %v384
    %s390 = scalar_lea.vmem [#allocation0], 899
    %391 = vst.msk [vmem:[%s390] ss:$16 sm:$0x30] %vm385, %v384
    %s392 = scalar_lea.vmem [#allocation0], 899
    %393 = vst.msk [vmem:[%s392] ss:$16 sm:$0xc0] %vm385, %v384
    %v394 = vld [vmem:[%s0] sm:$0xff]
    %395 = vrot.lane.b32.xlu0 %v394, 64
    %v396 = vpop.permute.xlu0 %395
    %vm397 = vcmask 130048
    %s398 = scalar_lea.vmem [#allocation0], 8
    %399 = vst.msk [vmem:[%s398] ss:$16 sm:$0x3] %vm397, %v396
    %s400 = scalar_lea.vmem [#allocation0], 8
    %401 = vst.msk [vmem:[%s400] ss:$16 sm:$0xc] %vm397, %v396
    %s402 = scalar_lea.vmem [#allocation0], 8
    %403 = vst.msk [vmem:[%s402] ss:$16 sm:$0x30] %vm397, %v396
    %s404 = scalar_lea.vmem [#allocation0], 8
    %405 = vst.msk [vmem:[%s404] ss:$16 sm:$0xc0] %vm397, %v396
    %s406 = scalar_lea.vmem %s0, 8
    %v407 = vld [vmem:[%s406] sm:$0xff]
    %408 = vrot.lane.b32.xlu0 %v407, 64
    %v409 = vpop.permute.xlu0 %408
    %vm410 = vcmask 130048
    %s411 = scalar_lea.vmem [#allocation0], 136
    %412 = vst.msk [vmem:[%s411] ss:$16 sm:$0x3] %vm410, %v409
    %s413 = scalar_lea.vmem [#allocation0], 136
    %414 = vst.msk [vmem:[%s413] ss:$16 sm:$0xc] %vm410, %v409
    %s415 = scalar_lea.vmem [#allocation0], 136
    %416 = vst.msk [vmem:[%s415] ss:$16 sm:$0x30] %vm410, %v409
    %s417 = scalar_lea.vmem [#allocation0], 136
    %418 = vst.msk [vmem:[%s417] ss:$16 sm:$0xc0] %vm410, %v409
    %s419 = scalar_lea.vmem %s0, 16
    %v420 = vld [vmem:[%s419] sm:$0xff]
    %421 = vrot.lane.b32.xlu0 %v420, 64
    %v422 = vpop.permute.xlu0 %421
    %vm423 = vcmask 130048
    %s424 = scalar_lea.vmem [#allocation0], 264
    %425 = vst.msk [vmem:[%s424] ss:$16 sm:$0x3] %vm423, %v422
    %s426 = scalar_lea.vmem [#allocation0], 264
    %427 = vst.msk [vmem:[%s426] ss:$16 sm:$0xc] %vm423, %v422
    %s428 = scalar_lea.vmem [#allocation0], 264
    %429 = vst.msk [vmem:[%s428] ss:$16 sm:$0x30] %vm423, %v422
    %s430 = scalar_lea.vmem [#allocation0], 264
    %431 = vst.msk [vmem:[%s430] ss:$16 sm:$0xc0] %vm423, %v422
    %s432 = scalar_lea.vmem %s0, 24
    %v433 = vld [vmem:[%s432] sm:$0xff]
    %434 = vrot.lane.b32.xlu0 %v433, 64
    %v435 = vpop.permute.xlu0 %434
    %vm436 = vcmask 130048
    %s437 = scalar_lea.vmem [#allocation0], 392
    %438 = vst.msk [vmem:[%s437] ss:$16 sm:$0x3] %vm436, %v435
    %s439 = scalar_lea.vmem [#allocation0], 392
    %440 = vst.msk [vmem:[%s439] ss:$16 sm:$0xc] %vm436, %v435
    %s441 = scalar_lea.vmem [#allocation0], 392
    %442 = vst.msk [vmem:[%s441] ss:$16 sm:$0x30] %vm436, %v435
    %s443 = scalar_lea.vmem [#allocation0], 392
    %444 = vst.msk [vmem:[%s443] ss:$16 sm:$0xc0] %vm436, %v435
    %s445 = scalar_lea.vmem %s0, 32
    %v446 = vld [vmem:[%s445] sm:$0xff]
    %447 = vrot.lane.b32.xlu0 %v446, 64
    %v448 = vpop.permute.xlu0 %447
    %vm449 = vcmask 130048
    %s450 = scalar_lea.vmem [#allocation0], 520
    %451 = vst.msk [vmem:[%s450] ss:$16 sm:$0x3] %vm449, %v448
    %s452 = scalar_lea.vmem [#allocation0], 520
    %453 = vst.msk [vmem:[%s452] ss:$16 sm:$0xc] %vm449, %v448
    %s454 = scalar_lea.vmem [#allocation0], 520
    %455 = vst.msk [vmem:[%s454] ss:$16 sm:$0x30] %vm449, %v448
    %s456 = scalar_lea.vmem [#allocation0], 520
    %457 = vst.msk [vmem:[%s456] ss:$16 sm:$0xc0] %vm449, %v448
    %s458 = scalar_lea.vmem %s0, 40
    %v459 = vld [vmem:[%s458] sm:$0xff]
    %460 = vrot.lane.b32.xlu0 %v459, 64
    %v461 = vpop.permute.xlu0 %460
    %vm462 = vcmask 130048
    %s463 = scalar_lea.vmem [#allocation0], 648
    %464 = vst.msk [vmem:[%s463] ss:$16 sm:$0x3] %vm462, %v461
    %s465 = scalar_lea.vmem [#allocation0], 648
    %466 = vst.msk [vmem:[%s465] ss:$16 sm:$0xc] %vm462, %v461
    %s467 = scalar_lea.vmem [#allocation0], 648
    %468 = vst.msk [vmem:[%s467] ss:$16 sm:$0x30] %vm462, %v461
    %s469 = scalar_lea.vmem [#allocation0], 648
    %470 = vst.msk [vmem:[%s469] ss:$16 sm:$0xc0] %vm462, %v461
    %s471 = scalar_lea.vmem %s0, 48
    %v472 = vld [vmem:[%s471] sm:$0xff]
    %473 = vrot.lane.b32.xlu0 %v472, 64
    %v474 = vpop.permute.xlu0 %473
    %vm475 = vcmask 130048
    %s476 = scalar_lea.vmem [#allocation0], 776
    %477 = vst.msk [vmem:[%s476] ss:$16 sm:$0x3] %vm475, %v474
    %s478 = scalar_lea.vmem [#allocation0], 776
    %479 = vst.msk [vmem:[%s478] ss:$16 sm:$0xc] %vm475, %v474
    %s480 = scalar_lea.vmem [#allocation0], 776
    %481 = vst.msk [vmem:[%s480] ss:$16 sm:$0x30] %vm475, %v474
    %s482 = scalar_lea.vmem [#allocation0], 776
    %483 = vst.msk [vmem:[%s482] ss:$16 sm:$0xc0] %vm475, %v474
    %s484 = scalar_lea.vmem %s0, 56
    %v485 = vld [vmem:[%s484] sm:$0xff]
    %486 = vrot.lane.b32.xlu0 %v485, 64
    %v487 = vpop.permute.xlu0 %486
    %vm488 = vcmask 130048
    %s489 = scalar_lea.vmem [#allocation0], 904
    %490 = vst.msk [vmem:[%s489] ss:$16 sm:$0x3] %vm488, %v487
    %s491 = scalar_lea.vmem [#allocation0], 904
    %492 = vst.msk [vmem:[%s491] ss:$16 sm:$0xc] %vm488, %v487
    %s493 = scalar_lea.vmem [#allocation0], 904
    %494 = vst.msk [vmem:[%s493] ss:$16 sm:$0x30] %vm488, %v487
    %s495 = scalar_lea.vmem [#allocation0], 904
    %496 = vst.msk [vmem:[%s495] ss:$16 sm:$0xc0] %vm488, %v487
    %v497 = vld [vmem:[%s0] sm:$0xff]
    %498 = vrot.lane.b32.xlu0 %v497, 48
    %v499 = vpop.permute.xlu0 %498
    %vm500 = vcmask 130048
    %s501 = scalar_lea.vmem [#allocation0], 9
    %502 = vst.msk [vmem:[%s501] ss:$16 sm:$0x3] %vm500, %v499
    %s503 = scalar_lea.vmem [#allocation0], 9
    %504 = vst.msk [vmem:[%s503] ss:$16 sm:$0xc] %vm500, %v499
    %s505 = scalar_lea.vmem [#allocation0], 9
    %506 = vst.msk [vmem:[%s505] ss:$16 sm:$0x30] %vm500, %v499
    %s507 = scalar_lea.vmem [#allocation0], 9
    %508 = vst.msk [vmem:[%s507] ss:$16 sm:$0xc0] %vm500, %v499
    %s509 = scalar_lea.vmem %s0, 8
    %v510 = vld [vmem:[%s509] sm:$0xff]
    %511 = vrot.lane.b32.xlu0 %v510, 48
    %v512 = vpop.permute.xlu0 %511
    %vm513 = vcmask 130048
    %s514 = scalar_lea.vmem [#allocation0], 137
    %515 = vst.msk [vmem:[%s514] ss:$16 sm:$0x3] %vm513, %v512
    %s516 = scalar_lea.vmem [#allocation0], 137
    %517 = vst.msk [vmem:[%s516] ss:$16 sm:$0xc] %vm513, %v512
    %s518 = scalar_lea.vmem [#allocation0], 137
    %519 = vst.msk [vmem:[%s518] ss:$16 sm:$0x30] %vm513, %v512
    %s520 = scalar_lea.vmem [#allocation0], 137
    %521 = vst.msk [vmem:[%s520] ss:$16 sm:$0xc0] %vm513, %v512
    %s522 = scalar_lea.vmem %s0, 16
    %v523 = vld [vmem:[%s522] sm:$0xff]
    %524 = vrot.lane.b32.xlu0 %v523, 48
    %v525 = vpop.permute.xlu0 %524
    %vm526 = vcmask 130048
    %s527 = scalar_lea.vmem [#allocation0], 265
    %528 = vst.msk [vmem:[%s527] ss:$16 sm:$0x3] %vm526, %v525
    %s529 = scalar_lea.vmem [#allocation0], 265
    %530 = vst.msk [vmem:[%s529] ss:$16 sm:$0xc] %vm526, %v525
    %s531 = scalar_lea.vmem [#allocation0], 265
    %532 = vst.msk [vmem:[%s531] ss:$16 sm:$0x30] %vm526, %v525
    %s533 = scalar_lea.vmem [#allocation0], 265
    %534 = vst.msk [vmem:[%s533] ss:$16 sm:$0xc0] %vm526, %v525
    %s535 = scalar_lea.vmem %s0, 24
    %v536 = vld [vmem:[%s535] sm:$0xff]
    %537 = vrot.lane.b32.xlu0 %v536, 48
    %v538 = vpop.permute.xlu0 %537
    %vm539 = vcmask 130048
    %s540 = scalar_lea.vmem [#allocation0], 393
    %541 = vst.msk [vmem:[%s540] ss:$16 sm:$0x3] %vm539, %v538
    %s542 = scalar_lea.vmem [#allocation0], 393
    %543 = vst.msk [vmem:[%s542] ss:$16 sm:$0xc] %vm539, %v538
    %s544 = scalar_lea.vmem [#allocation0], 393
    %545 = vst.msk [vmem:[%s544] ss:$16 sm:$0x30] %vm539, %v538
    %s546 = scalar_lea.vmem [#allocation0], 393
    %547 = vst.msk [vmem:[%s546] ss:$16 sm:$0xc0] %vm539, %v538
    %s548 = scalar_lea.vmem %s0, 32
    %v549 = vld [vmem:[%s548] sm:$0xff]
    %550 = vrot.lane.b32.xlu0 %v549, 48
    %v551 = vpop.permute.xlu0 %550
    %vm552 = vcmask 130048
    %s553 = scalar_lea.vmem [#allocation0], 521
    %554 = vst.msk [vmem:[%s553] ss:$16 sm:$0x3] %vm552, %v551
    %s555 = scalar_lea.vmem [#allocation0], 521
    %556 = vst.msk [vmem:[%s555] ss:$16 sm:$0xc] %vm552, %v551
    %s557 = scalar_lea.vmem [#allocation0], 521
    %558 = vst.msk [vmem:[%s557] ss:$16 sm:$0x30] %vm552, %v551
    %s559 = scalar_lea.vmem [#allocation0], 521
    %560 = vst.msk [vmem:[%s559] ss:$16 sm:$0xc0] %vm552, %v551
    %s561 = scalar_lea.vmem %s0, 40
    %v562 = vld [vmem:[%s561] sm:$0xff]
    %563 = vrot.lane.b32.xlu0 %v562, 48
    %v564 = vpop.permute.xlu0 %563
    %vm565 = vcmask 130048
    %s566 = scalar_lea.vmem [#allocation0], 649
    %567 = vst.msk [vmem:[%s566] ss:$16 sm:$0x3] %vm565, %v564
    %s568 = scalar_lea.vmem [#allocation0], 649
    %569 = vst.msk [vmem:[%s568] ss:$16 sm:$0xc] %vm565, %v564
    %s570 = scalar_lea.vmem [#allocation0], 649
    %571 = vst.msk [vmem:[%s570] ss:$16 sm:$0x30] %vm565, %v564
    %s572 = scalar_lea.vmem [#allocation0], 649
    %573 = vst.msk [vmem:[%s572] ss:$16 sm:$0xc0] %vm565, %v564
    %s574 = scalar_lea.vmem %s0, 48
    %v575 = vld [vmem:[%s574] sm:$0xff]
    %576 = vrot.lane.b32.xlu0 %v575, 48
    %v577 = vpop.permute.xlu0 %576
    %vm578 = vcmask 130048
    %s579 = scalar_lea.vmem [#allocation0], 777
    %580 = vst.msk [vmem:[%s579] ss:$16 sm:$0x3] %vm578, %v577
    %s581 = scalar_lea.vmem [#allocation0], 777
    %582 = vst.msk [vmem:[%s581] ss:$16 sm:$0xc] %vm578, %v577
    %s583 = scalar_lea.vmem [#allocation0], 777
    %584 = vst.msk [vmem:[%s583] ss:$16 sm:$0x30] %vm578, %v577
    %s585 = scalar_lea.vmem [#allocation0], 777
    %586 = vst.msk [vmem:[%s585] ss:$16 sm:$0xc0] %vm578, %v577
    %s587 = scalar_lea.vmem %s0, 56
    %v588 = vld [vmem:[%s587] sm:$0xff]
    %589 = vrot.lane.b32.xlu0 %v588, 48
    %v590 = vpop.permute.xlu0 %589
    %vm591 = vcmask 130048
    %s592 = scalar_lea.vmem [#allocation0], 905
    %593 = vst.msk [vmem:[%s592] ss:$16 sm:$0x3] %vm591, %v590
    %s594 = scalar_lea.vmem [#allocation0], 905
    %595 = vst.msk [vmem:[%s594] ss:$16 sm:$0xc] %vm591, %v590
    %s596 = scalar_lea.vmem [#allocation0], 905
    %597 = vst.msk [vmem:[%s596] ss:$16 sm:$0x30] %vm591, %v590
    %s598 = scalar_lea.vmem [#allocation0], 905
    %599 = vst.msk [vmem:[%s598] ss:$16 sm:$0xc0] %vm591, %v590
    %v600 = vld [vmem:[%s0] sm:$0xff]
    %601 = vrot.lane.b32.xlu0 %v600, 32
    %v602 = vpop.permute.xlu0 %601
    %vm603 = vcmask 130048
    %s604 = scalar_lea.vmem [#allocation0], 10
    %605 = vst.msk [vmem:[%s604] ss:$16 sm:$0x3] %vm603, %v602
    %s606 = scalar_lea.vmem [#allocation0], 10
    %607 = vst.msk [vmem:[%s606] ss:$16 sm:$0xc] %vm603, %v602
    %s608 = scalar_lea.vmem [#allocation0], 10
    %609 = vst.msk [vmem:[%s608] ss:$16 sm:$0x30] %vm603, %v602
    %s610 = scalar_lea.vmem [#allocation0], 10
    %611 = vst.msk [vmem:[%s610] ss:$16 sm:$0xc0] %vm603, %v602
    %s612 = scalar_lea.vmem %s0, 8
    %v613 = vld [vmem:[%s612] sm:$0xff]
    %614 = vrot.lane.b32.xlu0 %v613, 32
    %v615 = vpop.permute.xlu0 %614
    %vm616 = vcmask 130048
    %s617 = scalar_lea.vmem [#allocation0], 138
    %618 = vst.msk [vmem:[%s617] ss:$16 sm:$0x3] %vm616, %v615
    %s619 = scalar_lea.vmem [#allocation0], 138
    %620 = vst.msk [vmem:[%s619] ss:$16 sm:$0xc] %vm616, %v615
    %s621 = scalar_lea.vmem [#allocation0], 138
    %622 = vst.msk [vmem:[%s621] ss:$16 sm:$0x30] %vm616, %v615
    %s623 = scalar_lea.vmem [#allocation0], 138
    %624 = vst.msk [vmem:[%s623] ss:$16 sm:$0xc0] %vm616, %v615
    %s625 = scalar_lea.vmem %s0, 16
    %v626 = vld [vmem:[%s625] sm:$0xff]
    %627 = vrot.lane.b32.xlu0 %v626, 32
    %v628 = vpop.permute.xlu0 %627
    %vm629 = vcmask 130048
    %s630 = scalar_lea.vmem [#allocation0], 266
    %631 = vst.msk [vmem:[%s630] ss:$16 sm:$0x3] %vm629, %v628
    %s632 = scalar_lea.vmem [#allocation0], 266
    %633 = vst.msk [vmem:[%s632] ss:$16 sm:$0xc] %vm629, %v628
    %s634 = scalar_lea.vmem [#allocation0], 266
    %635 = vst.msk [vmem:[%s634] ss:$16 sm:$0x30] %vm629, %v628
    %s636 = scalar_lea.vmem [#allocation0], 266
    %637 = vst.msk [vmem:[%s636] ss:$16 sm:$0xc0] %vm629, %v628
    %s638 = scalar_lea.vmem %s0, 24
    %v639 = vld [vmem:[%s638] sm:$0xff]
    %640 = vrot.lane.b32.xlu0 %v639, 32
    %v641 = vpop.permute.xlu0 %640
    %vm642 = vcmask 130048
    %s643 = scalar_lea.vmem [#allocation0], 394
    %644 = vst.msk [vmem:[%s643] ss:$16 sm:$0x3] %vm642, %v641
    %s645 = scalar_lea.vmem [#allocation0], 394
    %646 = vst.msk [vmem:[%s645] ss:$16 sm:$0xc] %vm642, %v641
    %s647 = scalar_lea.vmem [#allocation0], 394
    %648 = vst.msk [vmem:[%s647] ss:$16 sm:$0x30] %vm642, %v641
    %s649 = scalar_lea.vmem [#allocation0], 394
    %650 = vst.msk [vmem:[%s649] ss:$16 sm:$0xc0] %vm642, %v641
    %s651 = scalar_lea.vmem %s0, 32
    %v652 = vld [vmem:[%s651] sm:$0xff]
    %653 = vrot.lane.b32.xlu0 %v652, 32
    %v654 = vpop.permute.xlu0 %653
    %vm655 = vcmask 130048
    %s656 = scalar_lea.vmem [#allocation0], 522
    %657 = vst.msk [vmem:[%s656] ss:$16 sm:$0x3] %vm655, %v654
    %s658 = scalar_lea.vmem [#allocation0], 522
    %659 = vst.msk [vmem:[%s658] ss:$16 sm:$0xc] %vm655, %v654
    %s660 = scalar_lea.vmem [#allocation0], 522
    %661 = vst.msk [vmem:[%s660] ss:$16 sm:$0x30] %vm655, %v654
    %s662 = scalar_lea.vmem [#allocation0], 522
    %663 = vst.msk [vmem:[%s662] ss:$16 sm:$0xc0] %vm655, %v654
    %s664 = scalar_lea.vmem %s0, 40
    %v665 = vld [vmem:[%s664] sm:$0xff]
    %666 = vrot.lane.b32.xlu0 %v665, 32
    %v667 = vpop.permute.xlu0 %666
    %vm668 = vcmask 130048
    %s669 = scalar_lea.vmem [#allocation0], 650
    %670 = vst.msk [vmem:[%s669] ss:$16 sm:$0x3] %vm668, %v667
    %s671 = scalar_lea.vmem [#allocation0], 650
    %672 = vst.msk [vmem:[%s671] ss:$16 sm:$0xc] %vm668, %v667
    %s673 = scalar_lea.vmem [#allocation0], 650
    %674 = vst.msk [vmem:[%s673] ss:$16 sm:$0x30] %vm668, %v667
    %s675 = scalar_lea.vmem [#allocation0], 650
    %676 = vst.msk [vmem:[%s675] ss:$16 sm:$0xc0] %vm668, %v667
    %s677 = scalar_lea.vmem %s0, 48
    %v678 = vld [vmem:[%s677] sm:$0xff]
    %679 = vrot.lane.b32.xlu0 %v678, 32
    %v680 = vpop.permute.xlu0 %679
    %vm681 = vcmask 130048
    %s682 = scalar_lea.vmem [#allocation0], 778
    %683 = vst.msk [vmem:[%s682] ss:$16 sm:$0x3] %vm681, %v680
    %s684 = scalar_lea.vmem [#allocation0], 778
    %685 = vst.msk [vmem:[%s684] ss:$16 sm:$0xc] %vm681, %v680
    %s686 = scalar_lea.vmem [#allocation0], 778
    %687 = vst.msk [vmem:[%s686] ss:$16 sm:$0x30] %vm681, %v680
    %s688 = scalar_lea.vmem [#allocation0], 778
    %689 = vst.msk [vmem:[%s688] ss:$16 sm:$0xc0] %vm681, %v680
    %s690 = scalar_lea.vmem %s0, 56
    %v691 = vld [vmem:[%s690] sm:$0xff]
    %692 = vrot.lane.b32.xlu0 %v691, 32
    %v693 = vpop.permute.xlu0 %692
    %vm694 = vcmask 130048
    %s695 = scalar_lea.vmem [#allocation0], 906
    %696 = vst.msk [vmem:[%s695] ss:$16 sm:$0x3] %vm694, %v693
    %s697 = scalar_lea.vmem [#allocation0], 906
    %698 = vst.msk [vmem:[%s697] ss:$16 sm:$0xc] %vm694, %v693
    %s699 = scalar_lea.vmem [#allocation0], 906
    %700 = vst.msk [vmem:[%s699] ss:$16 sm:$0x30] %vm694, %v693
    %s701 = scalar_lea.vmem [#allocation0], 906
    %702 = vst.msk [vmem:[%s701] ss:$16 sm:$0xc0] %vm694, %v693
    %v703 = vld [vmem:[%s0] sm:$0xff]
    %704 = vrot.lane.b32.xlu0 %v703, 16
    %v705 = vpop.permute.xlu0 %704
    %vm706 = vcmask 130048
    %s707 = scalar_lea.vmem [#allocation0], 11
    %708 = vst.msk [vmem:[%s707] ss:$16 sm:$0x3] %vm706, %v705
    %s709 = scalar_lea.vmem [#allocation0], 11
    %710 = vst.msk [vmem:[%s709] ss:$16 sm:$0xc] %vm706, %v705
    %s711 = scalar_lea.vmem [#allocation0], 11
    %712 = vst.msk [vmem:[%s711] ss:$16 sm:$0x30] %vm706, %v705
    %s713 = scalar_lea.vmem [#allocation0], 11
    %714 = vst.msk [vmem:[%s713] ss:$16 sm:$0xc0] %vm706, %v705
    %s715 = scalar_lea.vmem %s0, 8
    %v716 = vld [vmem:[%s715] sm:$0xff]
    %717 = vrot.lane.b32.xlu0 %v716, 16
    %v718 = vpop.permute.xlu0 %717
    %vm719 = vcmask 130048
    %s720 = scalar_lea.vmem [#allocation0], 139
    %721 = vst.msk [vmem:[%s720] ss:$16 sm:$0x3] %vm719, %v718
    %s722 = scalar_lea.vmem [#allocation0], 139
    %723 = vst.msk [vmem:[%s722] ss:$16 sm:$0xc] %vm719, %v718
    %s724 = scalar_lea.vmem [#allocation0], 139
    %725 = vst.msk [vmem:[%s724] ss:$16 sm:$0x30] %vm719, %v718
    %s726 = scalar_lea.vmem [#allocation0], 139
    %727 = vst.msk [vmem:[%s726] ss:$16 sm:$0xc0] %vm719, %v718
    %s728 = scalar_lea.vmem %s0, 16
    %v729 = vld [vmem:[%s728] sm:$0xff]
    %730 = vrot.lane.b32.xlu0 %v729, 16
    %v731 = vpop.permute.xlu0 %730
    %vm732 = vcmask 130048
    %s733 = scalar_lea.vmem [#allocation0], 267
    %734 = vst.msk [vmem:[%s733] ss:$16 sm:$0x3] %vm732, %v731
    %s735 = scalar_lea.vmem [#allocation0], 267
    %736 = vst.msk [vmem:[%s735] ss:$16 sm:$0xc] %vm732, %v731
    %s737 = scalar_lea.vmem [#allocation0], 267
    %738 = vst.msk [vmem:[%s737] ss:$16 sm:$0x30] %vm732, %v731
    %s739 = scalar_lea.vmem [#allocation0], 267
    %740 = vst.msk [vmem:[%s739] ss:$16 sm:$0xc0] %vm732, %v731
    %s741 = scalar_lea.vmem %s0, 24
    %v742 = vld [vmem:[%s741] sm:$0xff]
    %743 = vrot.lane.b32.xlu0 %v742, 16
    %v744 = vpop.permute.xlu0 %743
    %vm745 = vcmask 130048
    %s746 = scalar_lea.vmem [#allocation0], 395
    %747 = vst.msk [vmem:[%s746] ss:$16 sm:$0x3] %vm745, %v744
    %s748 = scalar_lea.vmem [#allocation0], 395
    %749 = vst.msk [vmem:[%s748] ss:$16 sm:$0xc] %vm745, %v744
    %s750 = scalar_lea.vmem [#allocation0], 395
    %751 = vst.msk [vmem:[%s750] ss:$16 sm:$0x30] %vm745, %v744
    %s752 = scalar_lea.vmem [#allocation0], 395
    %753 = vst.msk [vmem:[%s752] ss:$16 sm:$0xc0] %vm745, %v744
    %s754 = scalar_lea.vmem %s0, 32
    %v755 = vld [vmem:[%s754] sm:$0xff]
    %756 = vrot.lane.b32.xlu0 %v755, 16
    %v757 = vpop.permute.xlu0 %756
    %vm758 = vcmask 130048
    %s759 = scalar_lea.vmem [#allocation0], 523
    %760 = vst.msk [vmem:[%s759] ss:$16 sm:$0x3] %vm758, %v757
    %s761 = scalar_lea.vmem [#allocation0], 523
    %762 = vst.msk [vmem:[%s761] ss:$16 sm:$0xc] %vm758, %v757
    %s763 = scalar_lea.vmem [#allocation0], 523
    %764 = vst.msk [vmem:[%s763] ss:$16 sm:$0x30] %vm758, %v757
    %s765 = scalar_lea.vmem [#allocation0], 523
    %766 = vst.msk [vmem:[%s765] ss:$16 sm:$0xc0] %vm758, %v757
    %s767 = scalar_lea.vmem %s0, 40
    %v768 = vld [vmem:[%s767] sm:$0xff]
    %769 = vrot.lane.b32.xlu0 %v768, 16
    %v770 = vpop.permute.xlu0 %769
    %vm771 = vcmask 130048
    %s772 = scalar_lea.vmem [#allocation0], 651
    %773 = vst.msk [vmem:[%s772] ss:$16 sm:$0x3] %vm771, %v770
    %s774 = scalar_lea.vmem [#allocation0], 651
    %775 = vst.msk [vmem:[%s774] ss:$16 sm:$0xc] %vm771, %v770
    %s776 = scalar_lea.vmem [#allocation0], 651
    %777 = vst.msk [vmem:[%s776] ss:$16 sm:$0x30] %vm771, %v770
    %s778 = scalar_lea.vmem [#allocation0], 651
    %779 = vst.msk [vmem:[%s778] ss:$16 sm:$0xc0] %vm771, %v770
    %s780 = scalar_lea.vmem %s0, 48
    %v781 = vld [vmem:[%s780] sm:$0xff]
    %782 = vrot.lane.b32.xlu0 %v781, 16
    %v783 = vpop.permute.xlu0 %782
    %vm784 = vcmask 130048
    %s785 = scalar_lea.vmem [#allocation0], 779
    %786 = vst.msk [vmem:[%s785] ss:$16 sm:$0x3] %vm784, %v783
    %s787 = scalar_lea.vmem [#allocation0], 779
    %788 = vst.msk [vmem:[%s787] ss:$16 sm:$0xc] %vm784, %v783
    %s789 = scalar_lea.vmem [#allocation0], 779
    %790 = vst.msk [vmem:[%s789] ss:$16 sm:$0x30] %vm784, %v783
    %s791 = scalar_lea.vmem [#allocation0], 779
    %792 = vst.msk [vmem:[%s791] ss:$16 sm:$0xc0] %vm784, %v783
    %s793 = scalar_lea.vmem %s0, 56
    %v794 = vld [vmem:[%s793] sm:$0xff]
    %795 = vrot.lane.b32.xlu0 %v794, 16
    %v796 = vpop.permute.xlu0 %795
    %vm797 = vcmask 130048
    %s798 = scalar_lea.vmem [#allocation0], 907
    %799 = vst.msk [vmem:[%s798] ss:$16 sm:$0x3] %vm797, %v796
    %s800 = scalar_lea.vmem [#allocation0], 907
    %801 = vst.msk [vmem:[%s800] ss:$16 sm:$0xc] %vm797, %v796
    %s802 = scalar_lea.vmem [#allocation0], 907
    %803 = vst.msk [vmem:[%s802] ss:$16 sm:$0x30] %vm797, %v796
    %s804 = scalar_lea.vmem [#allocation0], 907
    %805 = vst.msk [vmem:[%s804] ss:$16 sm:$0xc0] %vm797, %v796
    %s807 = sshllo.u32 0, 4
    %v809 = vld [vmem:[#allocation0] sm:%s807]
    %s810 = sshllo.u32 0, 4
    %811 = vst [vmem:[%s1] sm:%s810] %v809
    %s812 = scalar_lea.vmem [#allocation0], 8
    %v813 = vld [vmem:[%s812] sm:%s807]
    %s814 = sshllo.u32 0, 4
    %s815 = scalar_lea.vmem %s1, 4
    %816 = vst [vmem:[%s815] sm:%s814] %v813
    %s817 = scalar_lea.vmem [#allocation0], 16
    %v818 = vld [vmem:[%s817] sm:%s807]
    %s819 = sshllo.u32 0, 4
    %s820 = smul.addr 4, 2
    %s821 = scalar_lea.vmem %s1, %s820
    %822 = vst [vmem:[%s821] sm:%s819] %v818
    %s823 = scalar_lea.vmem [#allocation0], 24
    %v824 = vld [vmem:[%s823] sm:%s807]
    %s825 = sshllo.u32 0, 4
    %s826 = smul.addr 4, 3
    %s827 = scalar_lea.vmem %s1, %s826
    %828 = vst [vmem:[%s827] sm:%s825] %v824
    %s829 = scalar_lea.vmem [#allocation0], 32
    %v830 = vld [vmem:[%s829] sm:%s807]
    %s831 = sshllo.u32 0, 4
    %s832 = smul.addr 4, 4
    %s833 = scalar_lea.vmem %s1, %s832
    %834 = vst [vmem:[%s833] sm:%s831] %v830
    %s835 = scalar_lea.vmem [#allocation0], 40
    %v836 = vld [vmem:[%s835] sm:%s807]
    %s837 = sshllo.u32 0, 4
    %s838 = smul.addr 4, 5
    %s839 = scalar_lea.vmem %s1, %s838
    %840 = vst [vmem:[%s839] sm:%s837] %v836
    %s841 = scalar_lea.vmem [#allocation0], 48
    %v842 = vld [vmem:[%s841] sm:%s807]
    %s843 = sshllo.u32 0, 4
    %s844 = smul.addr 4, 6
    %s845 = scalar_lea.vmem %s1, %s844
    %846 = vst [vmem:[%s845] sm:%s843] %v842
    %s847 = scalar_lea.vmem [#allocation0], 56
    %v848 = vld [vmem:[%s847] sm:%s807]
    %s849 = sshllo.u32 0, 4
    %s850 = smul.addr 4, 7
    %s851 = scalar_lea.vmem %s1, %s850
    %852 = vst [vmem:[%s851] sm:%s849] %v848
    %s853 = scalar_lea.vmem [#allocation0], 64
    %v854 = vld [vmem:[%s853] sm:%s807]
    %s855 = sshllo.u32 0, 4
    %s856 = smul.addr 4, 8
    %s857 = scalar_lea.vmem %s1, %s856
    %858 = vst [vmem:[%s857] sm:%s855] %v854
    %s859 = scalar_lea.vmem [#allocation0], 72
    %v860 = vld [vmem:[%s859] sm:%s807]
    %s861 = sshllo.u32 0, 4
    %s862 = smul.addr 4, 9
    %s863 = scalar_lea.vmem %s1, %s862
    %864 = vst [vmem:[%s863] sm:%s861] %v860
    %s865 = scalar_lea.vmem [#allocation0], 80
    %v866 = vld [vmem:[%s865] sm:%s807]
    %s867 = sshllo.u32 0, 4
    %s868 = smul.addr 4, 10
    %s869 = scalar_lea.vmem %s1, %s868
    %870 = vst [vmem:[%s869] sm:%s867] %v866
    %s871 = scalar_lea.vmem [#allocation0], 88
    %v872 = vld [vmem:[%s871] sm:%s807]
    %s873 = sshllo.u32 0, 4
    %s874 = smul.addr 4, 11
    %s875 = scalar_lea.vmem %s1, %s874
    %876 = vst [vmem:[%s875] sm:%s873] %v872
    %s877 = scalar_lea.vmem [#allocation0], 96
    %v878 = vld [vmem:[%s877] sm:%s807]
    %s879 = sshllo.u32 0, 4
    %s880 = smul.addr 4, 12
    %s881 = scalar_lea.vmem %s1, %s880
    %882 = vst [vmem:[%s881] sm:%s879] %v878
    %s883 = scalar_lea.vmem [#allocation0], 104
    %v884 = vld [vmem:[%s883] sm:%s807]
    %s885 = sshllo.u32 0, 4
    %s886 = smul.addr 4, 13
    %s887 = scalar_lea.vmem %s1, %s886
    %888 = vst [vmem:[%s887] sm:%s885] %v884
    %s889 = scalar_lea.vmem [#allocation0], 112
    %v890 = vld [vmem:[%s889] sm:%s807]
    %s891 = sshllo.u32 0, 4
    %s892 = smul.addr 4, 14
    %s893 = scalar_lea.vmem %s1, %s892
    %894 = vst [vmem:[%s893] sm:%s891] %v890
    %s895 = scalar_lea.vmem [#allocation0], 120
    %v896 = vld [vmem:[%s895] sm:%s807]
    %s897 = sshllo.u32 0, 4
    %s898 = smul.addr 4, 15
    %s899 = scalar_lea.vmem %s1, %s898
    %900 = vst [vmem:[%s899] sm:%s897] %v896
    %s901 = scalar_lea.vmem [#allocation0], 128
    %v902 = vld [vmem:[%s901] sm:%s807]
    %s903 = sshllo.u32 0, 4
    %s904 = smul.addr 4, 16
    %s905 = scalar_lea.vmem %s1, %s904
    %906 = vst [vmem:[%s905] sm:%s903] %v902
    %s907 = scalar_lea.vmem [#allocation0], 136
    %v908 = vld [vmem:[%s907] sm:%s807]
    %s909 = sshllo.u32 0, 4
    %s910 = smul.addr 4, 17
    %s911 = scalar_lea.vmem %s1, %s910
    %912 = vst [vmem:[%s911] sm:%s909] %v908
    %s913 = scalar_lea.vmem [#allocation0], 144
    %v914 = vld [vmem:[%s913] sm:%s807]
    %s915 = sshllo.u32 0, 4
    %s916 = smul.addr 4, 18
    %s917 = scalar_lea.vmem %s1, %s916
    %918 = vst [vmem:[%s917] sm:%s915] %v914
    %s919 = scalar_lea.vmem [#allocation0], 152
    %v920 = vld [vmem:[%s919] sm:%s807]
    %s921 = sshllo.u32 0, 4
    %s922 = smul.addr 4, 19
    %s923 = scalar_lea.vmem %s1, %s922
    %924 = vst [vmem:[%s923] sm:%s921] %v920
    %s925 = scalar_lea.vmem [#allocation0], 160
    %v926 = vld [vmem:[%s925] sm:%s807]
    %s927 = sshllo.u32 0, 4
    %s928 = smul.addr 4, 20
    %s929 = scalar_lea.vmem %s1, %s928
    %930 = vst [vmem:[%s929] sm:%s927] %v926
    %s931 = scalar_lea.vmem [#allocation0], 168
    %v932 = vld [vmem:[%s931] sm:%s807]
    %s933 = sshllo.u32 0, 4
    %s934 = smul.addr 4, 21
    %s935 = scalar_lea.vmem %s1, %s934
    %936 = vst [vmem:[%s935] sm:%s933] %v932
    %s937 = scalar_lea.vmem [#allocation0], 176
    %v938 = vld [vmem:[%s937] sm:%s807]
    %s939 = sshllo.u32 0, 4
    %s940 = smul.addr 4, 22
    %s941 = scalar_lea.vmem %s1, %s940
    %942 = vst [vmem:[%s941] sm:%s939] %v938
    %s943 = scalar_lea.vmem [#allocation0], 184
    %v944 = vld [vmem:[%s943] sm:%s807]
    %s945 = sshllo.u32 0, 4
    %s946 = smul.addr 4, 23
    %s947 = scalar_lea.vmem %s1, %s946
    %948 = vst [vmem:[%s947] sm:%s945] %v944
    %s949 = scalar_lea.vmem [#allocation0], 192
    %v950 = vld [vmem:[%s949] sm:%s807]
    %s951 = sshllo.u32 0, 4
    %s952 = smul.addr 4, 24
    %s953 = scalar_lea.vmem %s1, %s952
    %954 = vst [vmem:[%s953] sm:%s951] %v950
    %s955 = scalar_lea.vmem [#allocation0], 200
    %v956 = vld [vmem:[%s955] sm:%s807]
    %s957 = sshllo.u32 0, 4
    %s958 = smul.addr 4, 25
    %s959 = scalar_lea.vmem %s1, %s958
    %960 = vst [vmem:[%s959] sm:%s957] %v956
    %s961 = scalar_lea.vmem [#allocation0], 208
    %v962 = vld [vmem:[%s961] sm:%s807]
    %s963 = sshllo.u32 0, 4
    %s964 = smul.addr 4, 26
    %s965 = scalar_lea.vmem %s1, %s964
    %966 = vst [vmem:[%s965] sm:%s963] %v962
    %s967 = scalar_lea.vmem [#allocation0], 216
    %v968 = vld [vmem:[%s967] sm:%s807]
    %s969 = sshllo.u32 0, 4
    %s970 = smul.addr 4, 27
    %s971 = scalar_lea.vmem %s1, %s970
    %972 = vst [vmem:[%s971] sm:%s969] %v968
    %s973 = scalar_lea.vmem [#allocation0], 224
    %v974 = vld [vmem:[%s973] sm:%s807]
    %s975 = sshllo.u32 0, 4
    %s976 = smul.addr 4, 28
    %s977 = scalar_lea.vmem %s1, %s976
    %978 = vst [vmem:[%s977] sm:%s975] %v974
    %s979 = scalar_lea.vmem [#allocation0], 232
    %v980 = vld [vmem:[%s979] sm:%s807]
    %s981 = sshllo.u32 0, 4
    %s982 = smul.addr 4, 29
    %s983 = scalar_lea.vmem %s1, %s982
    %984 = vst [vmem:[%s983] sm:%s981] %v980
    %s985 = scalar_lea.vmem [#allocation0], 240
    %v986 = vld [vmem:[%s985] sm:%s807]
    %s987 = sshllo.u32 0, 4
    %s988 = smul.addr 4, 30
    %s989 = scalar_lea.vmem %s1, %s988
    %990 = vst [vmem:[%s989] sm:%s987] %v986
    %s991 = scalar_lea.vmem [#allocation0], 248
    %v992 = vld [vmem:[%s991] sm:%s807]
    %s993 = sshllo.u32 0, 4
    %s994 = smul.addr 4, 31
    %s995 = scalar_lea.vmem %s1, %s994
    %996 = vst [vmem:[%s995] sm:%s993] %v992
    %s997 = scalar_lea.vmem [#allocation0], 256
    %v998 = vld [vmem:[%s997] sm:%s807]
    %s999 = sshllo.u32 0, 4
    %s1000 = smul.addr 4, 32
    %s1001 = scalar_lea.vmem %s1, %s1000
    %1002 = vst [vmem:[%s1001] sm:%s999] %v998
    %s1003 = scalar_lea.vmem [#allocation0], 264
    %v1004 = vld [vmem:[%s1003] sm:%s807]
    %s1005 = sshllo.u32 0, 4
    %s1006 = smul.addr 4, 33
    %s1007 = scalar_lea.vmem %s1, %s1006
    %1008 = vst [vmem:[%s1007] sm:%s1005] %v1004
    %s1009 = scalar_lea.vmem [#allocation0], 272
    %v1010 = vld [vmem:[%s1009] sm:%s807]
    %s1011 = sshllo.u32 0, 4
    %s1012 = smul.addr 4, 34
    %s1013 = scalar_lea.vmem %s1, %s1012
    %1014 = vst [vmem:[%s1013] sm:%s1011] %v1010
    %s1015 = scalar_lea.vmem [#allocation0], 280
    %v1016 = vld [vmem:[%s1015] sm:%s807]
    %s1017 = sshllo.u32 0, 4
    %s1018 = smul.addr 4, 35
    %s1019 = scalar_lea.vmem %s1, %s1018
    %1020 = vst [vmem:[%s1019] sm:%s1017] %v1016
    %s1021 = scalar_lea.vmem [#allocation0], 288
    %v1022 = vld [vmem:[%s1021] sm:%s807]
    %s1023 = sshllo.u32 0, 4
    %s1024 = smul.addr 4, 36
    %s1025 = scalar_lea.vmem %s1, %s1024
    %1026 = vst [vmem:[%s1025] sm:%s1023] %v1022
    %s1027 = scalar_lea.vmem [#allocation0], 296
    %v1028 = vld [vmem:[%s1027] sm:%s807]
    %s1029 = sshllo.u32 0, 4
    %s1030 = smul.addr 4, 37
    %s1031 = scalar_lea.vmem %s1, %s1030
    %1032 = vst [vmem:[%s1031] sm:%s1029] %v1028
    %s1033 = scalar_lea.vmem [#allocation0], 304
    %v1034 = vld [vmem:[%s1033] sm:%s807]
    %s1035 = sshllo.u32 0, 4
    %s1036 = smul.addr 4, 38
    %s1037 = scalar_lea.vmem %s1, %s1036
    %1038 = vst [vmem:[%s1037] sm:%s1035] %v1034
    %s1039 = scalar_lea.vmem [#allocation0], 312
    %v1040 = vld [vmem:[%s1039] sm:%s807]
    %s1041 = sshllo.u32 0, 4
    %s1042 = smul.addr 4, 39
    %s1043 = scalar_lea.vmem %s1, %s1042
    %1044 = vst [vmem:[%s1043] sm:%s1041] %v1040
    %s1045 = scalar_lea.vmem [#allocation0], 320
    %v1046 = vld [vmem:[%s1045] sm:%s807]
    %s1047 = sshllo.u32 0, 4
    %s1048 = smul.addr 4, 40
    %s1049 = scalar_lea.vmem %s1, %s1048
    %1050 = vst [vmem:[%s1049] sm:%s1047] %v1046
    %s1051 = scalar_lea.vmem [#allocation0], 328
    %v1052 = vld [vmem:[%s1051] sm:%s807]
    %s1053 = sshllo.u32 0, 4
    %s1054 = smul.addr 4, 41
    %s1055 = scalar_lea.vmem %s1, %s1054
    %1056 = vst [vmem:[%s1055] sm:%s1053] %v1052
    %s1057 = scalar_lea.vmem [#allocation0], 336
    %v1058 = vld [vmem:[%s1057] sm:%s807]
    %s1059 = sshllo.u32 0, 4
    %s1060 = smul.addr 4, 42
    %s1061 = scalar_lea.vmem %s1, %s1060
    %1062 = vst [vmem:[%s1061] sm:%s1059] %v1058
    %s1063 = scalar_lea.vmem [#allocation0], 344
    %v1064 = vld [vmem:[%s1063] sm:%s807]
    %s1065 = sshllo.u32 0, 4
    %s1066 = smul.addr 4, 43
    %s1067 = scalar_lea.vmem %s1, %s1066
    %1068 = vst [vmem:[%s1067] sm:%s1065] %v1064
    %s1069 = scalar_lea.vmem [#allocation0], 352
    %v1070 = vld [vmem:[%s1069] sm:%s807]
    %s1071 = sshllo.u32 0, 4
    %s1072 = smul.addr 4, 44
    %s1073 = scalar_lea.vmem %s1, %s1072
    %1074 = vst [vmem:[%s1073] sm:%s1071] %v1070
    %s1075 = scalar_lea.vmem [#allocation0], 360
    %v1076 = vld [vmem:[%s1075] sm:%s807]
    %s1077 = sshllo.u32 0, 4
    %s1078 = smul.addr 4, 45
    %s1079 = scalar_lea.vmem %s1, %s1078
    %1080 = vst [vmem:[%s1079] sm:%s1077] %v1076
    %s1081 = scalar_lea.vmem [#allocation0], 368
    %v1082 = vld [vmem:[%s1081] sm:%s807]
    %s1083 = sshllo.u32 0, 4
    %s1084 = smul.addr 4, 46
    %s1085 = scalar_lea.vmem %s1, %s1084
    %1086 = vst [vmem:[%s1085] sm:%s1083] %v1082
    %s1087 = scalar_lea.vmem [#allocation0], 376
    %v1088 = vld [vmem:[%s1087] sm:%s807]
    %s1089 = sshllo.u32 0, 4
    %s1090 = smul.addr 4, 47
    %s1091 = scalar_lea.vmem %s1, %s1090
    %1092 = vst [vmem:[%s1091] sm:%s1089] %v1088
    %s1093 = scalar_lea.vmem [#allocation0], 384
    %v1094 = vld [vmem:[%s1093] sm:%s807]
    %s1095 = sshllo.u32 0, 4
    %s1096 = smul.addr 4, 48
    %s1097 = scalar_lea.vmem %s1, %s1096
    %1098 = vst [vmem:[%s1097] sm:%s1095] %v1094
    %s1099 = scalar_lea.vmem [#allocation0], 392
    %v1100 = vld [vmem:[%s1099] sm:%s807]
    %s1101 = sshllo.u32 0, 4
    %s1102 = smul.addr 4, 49
    %s1103 = scalar_lea.vmem %s1, %s1102
    %1104 = vst [vmem:[%s1103] sm:%s1101] %v1100
    %s1105 = scalar_lea.vmem [#allocation0], 400
    %v1106 = vld [vmem:[%s1105] sm:%s807]
    %s1107 = sshllo.u32 0, 4
    %s1108 = smul.addr 4, 50
    %s1109 = scalar_lea.vmem %s1, %s1108
    %1110 = vst [vmem:[%s1109] sm:%s1107] %v1106
    %s1111 = scalar_lea.vmem [#allocation0], 408
    %v1112 = vld [vmem:[%s1111] sm:%s807]
    %s1113 = sshllo.u32 0, 4
    %s1114 = smul.addr 4, 51
    %s1115 = scalar_lea.vmem %s1, %s1114
    %1116 = vst [vmem:[%s1115] sm:%s1113] %v1112
    %s1117 = scalar_lea.vmem [#allocation0], 416
    %v1118 = vld [vmem:[%s1117] sm:%s807]
    %s1119 = sshllo.u32 0, 4
    %s1120 = smul.addr 4, 52
    %s1121 = scalar_lea.vmem %s1, %s1120
    %1122 = vst [vmem:[%s1121] sm:%s1119] %v1118
    %s1123 = scalar_lea.vmem [#allocation0], 424
    %v1124 = vld [vmem:[%s1123] sm:%s807]
    %s1125 = sshllo.u32 0, 4
    %s1126 = smul.addr 4, 53
    %s1127 = scalar_lea.vmem %s1, %s1126
    %1128 = vst [vmem:[%s1127] sm:%s1125] %v1124
    %s1129 = scalar_lea.vmem [#allocation0], 432
    %v1130 = vld [vmem:[%s1129] sm:%s807]
    %s1131 = sshllo.u32 0, 4
    %s1132 = smul.addr 4, 54
    %s1133 = scalar_lea.vmem %s1, %s1132
    %1134 = vst [vmem:[%s1133] sm:%s1131] %v1130
    %s1135 = scalar_lea.vmem [#allocation0], 440
    %v1136 = vld [vmem:[%s1135] sm:%s807]
    %s1137 = sshllo.u32 0, 4
    %s1138 = smul.addr 4, 55
    %s1139 = scalar_lea.vmem %s1, %s1138
    %1140 = vst [vmem:[%s1139] sm:%s1137] %v1136
    %s1141 = scalar_lea.vmem [#allocation0], 448
    %v1142 = vld [vmem:[%s1141] sm:%s807]
    %s1143 = sshllo.u32 0, 4
    %s1144 = smul.addr 4, 56
    %s1145 = scalar_lea.vmem %s1, %s1144
    %1146 = vst [vmem:[%s1145] sm:%s1143] %v1142
    %s1147 = scalar_lea.vmem [#allocation0], 456
    %v1148 = vld [vmem:[%s1147] sm:%s807]
    %s1149 = sshllo.u32 0, 4
    %s1150 = smul.addr 4, 57
    %s1151 = scalar_lea.vmem %s1, %s1150
    %1152 = vst [vmem:[%s1151] sm:%s1149] %v1148
    %s1153 = scalar_lea.vmem [#allocation0], 464
    %v1154 = vld [vmem:[%s1153] sm:%s807]
    %s1155 = sshllo.u32 0, 4
    %s1156 = smul.addr 4, 58
    %s1157 = scalar_lea.vmem %s1, %s1156
    %1158 = vst [vmem:[%s1157] sm:%s1155] %v1154
    %s1159 = scalar_lea.vmem [#allocation0], 472
    %v1160 = vld [vmem:[%s1159] sm:%s807]
    %s1161 = sshllo.u32 0, 4
    %s1162 = smul.addr 4, 59
    %s1163 = scalar_lea.vmem %s1, %s1162
    %1164 = vst [vmem:[%s1163] sm:%s1161] %v1160
    %s1165 = scalar_lea.vmem [#allocation0], 480
    %v1166 = vld [vmem:[%s1165] sm:%s807]
    %s1167 = sshllo.u32 0, 4
    %s1168 = smul.addr 4, 60
    %s1169 = scalar_lea.vmem %s1, %s1168
    %1170 = vst [vmem:[%s1169] sm:%s1167] %v1166
    %s1171 = scalar_lea.vmem [#allocation0], 488
    %v1172 = vld [vmem:[%s1171] sm:%s807]
    %s1173 = sshllo.u32 0, 4
    %s1174 = smul.addr 4, 61
    %s1175 = scalar_lea.vmem %s1, %s1174
    %1176 = vst [vmem:[%s1175] sm:%s1173] %v1172
    %s1177 = scalar_lea.vmem [#allocation0], 496
    %v1178 = vld [vmem:[%s1177] sm:%s807]
    %s1179 = sshllo.u32 0, 4
    %s1180 = smul.addr 4, 62
    %s1181 = scalar_lea.vmem %s1, %s1180
    %1182 = vst [vmem:[%s1181] sm:%s1179] %v1178
    %s1183 = scalar_lea.vmem [#allocation0], 504
    %v1184 = vld [vmem:[%s1183] sm:%s807]
    %s1185 = sshllo.u32 0, 4
    %s1186 = smul.addr 4, 63
    %s1187 = scalar_lea.vmem %s1, %s1186
    %1188 = vst [vmem:[%s1187] sm:%s1185] %v1184
    %s1189 = scalar_lea.vmem [#allocation0], 512
    %v1190 = vld [vmem:[%s1189] sm:%s807]
    %s1191 = sshllo.u32 0, 4
    %s1192 = smul.addr 4, 64
    %s1193 = scalar_lea.vmem %s1, %s1192
    %1194 = vst [vmem:[%s1193] sm:%s1191] %v1190
    %s1195 = scalar_lea.vmem [#allocation0], 520
    %v1196 = vld [vmem:[%s1195] sm:%s807]
    %s1197 = sshllo.u32 0, 4
    %s1198 = smul.addr 4, 65
    %s1199 = scalar_lea.vmem %s1, %s1198
    %1200 = vst [vmem:[%s1199] sm:%s1197] %v1196
    %s1201 = scalar_lea.vmem [#allocation0], 528
    %v1202 = vld [vmem:[%s1201] sm:%s807]
    %s1203 = sshllo.u32 0, 4
    %s1204 = smul.addr 4, 66
    %s1205 = scalar_lea.vmem %s1, %s1204
    %1206 = vst [vmem:[%s1205] sm:%s1203] %v1202
    %s1207 = scalar_lea.vmem [#allocation0], 536
    %v1208 = vld [vmem:[%s1207] sm:%s807]
    %s1209 = sshllo.u32 0, 4
    %s1210 = smul.addr 4, 67
    %s1211 = scalar_lea.vmem %s1, %s1210
    %1212 = vst [vmem:[%s1211] sm:%s1209] %v1208
    %s1213 = scalar_lea.vmem [#allocation0], 544
    %v1214 = vld [vmem:[%s1213] sm:%s807]
    %s1215 = sshllo.u32 0, 4
    %s1216 = smul.addr 4, 68
    %s1217 = scalar_lea.vmem %s1, %s1216
    %1218 = vst [vmem:[%s1217] sm:%s1215] %v1214
    %s1219 = scalar_lea.vmem [#allocation0], 552
    %v1220 = vld [vmem:[%s1219] sm:%s807]
    %s1221 = sshllo.u32 0, 4
    %s1222 = smul.addr 4, 69
    %s1223 = scalar_lea.vmem %s1, %s1222
    %1224 = vst [vmem:[%s1223] sm:%s1221] %v1220
    %s1225 = scalar_lea.vmem [#allocation0], 560
    %v1226 = vld [vmem:[%s1225] sm:%s807]
    %s1227 = sshllo.u32 0, 4
    %s1228 = smul.addr 4, 70
    %s1229 = scalar_lea.vmem %s1, %s1228
    %1230 = vst [vmem:[%s1229] sm:%s1227] %v1226
    %s1231 = scalar_lea.vmem [#allocation0], 568
    %v1232 = vld [vmem:[%s1231] sm:%s807]
    %s1233 = sshllo.u32 0, 4
    %s1234 = smul.addr 4, 71
    %s1235 = scalar_lea.vmem %s1, %s1234
    %1236 = vst [vmem:[%s1235] sm:%s1233] %v1232
    %s1237 = scalar_lea.vmem [#allocation0], 576
    %v1238 = vld [vmem:[%s1237] sm:%s807]
    %s1239 = sshllo.u32 0, 4
    %s1240 = smul.addr 4, 72
    %s1241 = scalar_lea.vmem %s1, %s1240
    %1242 = vst [vmem:[%s1241] sm:%s1239] %v1238
    %s1243 = scalar_lea.vmem [#allocation0], 584
    %v1244 = vld [vmem:[%s1243] sm:%s807]
    %s1245 = sshllo.u32 0, 4
    %s1246 = smul.addr 4, 73
    %s1247 = scalar_lea.vmem %s1, %s1246
    %1248 = vst [vmem:[%s1247] sm:%s1245] %v1244
    %s1249 = scalar_lea.vmem [#allocation0], 592
    %v1250 = vld [vmem:[%s1249] sm:%s807]
    %s1251 = sshllo.u32 0, 4
    %s1252 = smul.addr 4, 74
    %s1253 = scalar_lea.vmem %s1, %s1252
    %1254 = vst [vmem:[%s1253] sm:%s1251] %v1250
    %s1255 = scalar_lea.vmem [#allocation0], 600
    %v1256 = vld [vmem:[%s1255] sm:%s807]
    %s1257 = sshllo.u32 0, 4
    %s1258 = smul.addr 4, 75
    %s1259 = scalar_lea.vmem %s1, %s1258
    %1260 = vst [vmem:[%s1259] sm:%s1257] %v1256
    %s1261 = scalar_lea.vmem [#allocation0], 608
    %v1262 = vld [vmem:[%s1261] sm:%s807]
    %s1263 = sshllo.u32 0, 4
    %s1264 = smul.addr 4, 76
    %s1265 = scalar_lea.vmem %s1, %s1264
    %1266 = vst [vmem:[%s1265] sm:%s1263] %v1262
    %s1267 = scalar_lea.vmem [#allocation0], 616
    %v1268 = vld [vmem:[%s1267] sm:%s807]
    %s1269 = sshllo.u32 0, 4
    %s1270 = smul.addr 4, 77
    %s1271 = scalar_lea.vmem %s1, %s1270
    %1272 = vst [vmem:[%s1271] sm:%s1269] %v1268
    %s1273 = scalar_lea.vmem [#allocation0], 624
    %v1274 = vld [vmem:[%s1273] sm:%s807]
    %s1275 = sshllo.u32 0, 4
    %s1276 = smul.addr 4, 78
    %s1277 = scalar_lea.vmem %s1, %s1276
    %1278 = vst [vmem:[%s1277] sm:%s1275] %v1274
    %s1279 = scalar_lea.vmem [#allocation0], 632
    %v1280 = vld [vmem:[%s1279] sm:%s807]
    %s1281 = sshllo.u32 0, 4
    %s1282 = smul.addr 4, 79
    %s1283 = scalar_lea.vmem %s1, %s1282
    %1284 = vst [vmem:[%s1283] sm:%s1281] %v1280
    %s1285 = scalar_lea.vmem [#allocation0], 640
    %v1286 = vld [vmem:[%s1285] sm:%s807]
    %s1287 = sshllo.u32 0, 4
    %s1288 = smul.addr 4, 80
    %s1289 = scalar_lea.vmem %s1, %s1288
    %1290 = vst [vmem:[%s1289] sm:%s1287] %v1286
    %s1291 = scalar_lea.vmem [#allocation0], 648
    %v1292 = vld [vmem:[%s1291] sm:%s807]
    %s1293 = sshllo.u32 0, 4
    %s1294 = smul.addr 4, 81
    %s1295 = scalar_lea.vmem %s1, %s1294
    %1296 = vst [vmem:[%s1295] sm:%s1293] %v1292
    %s1297 = scalar_lea.vmem [#allocation0], 656
    %v1298 = vld [vmem:[%s1297] sm:%s807]
    %s1299 = sshllo.u32 0, 4
    %s1300 = smul.addr 4, 82
    %s1301 = scalar_lea.vmem %s1, %s1300
    %1302 = vst [vmem:[%s1301] sm:%s1299] %v1298
    %s1303 = scalar_lea.vmem [#allocation0], 664
    %v1304 = vld [vmem:[%s1303] sm:%s807]
    %s1305 = sshllo.u32 0, 4
    %s1306 = smul.addr 4, 83
    %s1307 = scalar_lea.vmem %s1, %s1306
    %1308 = vst [vmem:[%s1307] sm:%s1305] %v1304
    %s1309 = scalar_lea.vmem [#allocation0], 672
    %v1310 = vld [vmem:[%s1309] sm:%s807]
    %s1311 = sshllo.u32 0, 4
    %s1312 = smul.addr 4, 84
    %s1313 = scalar_lea.vmem %s1, %s1312
    %1314 = vst [vmem:[%s1313] sm:%s1311] %v1310
    %s1315 = scalar_lea.vmem [#allocation0], 680
    %v1316 = vld [vmem:[%s1315] sm:%s807]
    %s1317 = sshllo.u32 0, 4
    %s1318 = smul.addr 4, 85
    %s1319 = scalar_lea.vmem %s1, %s1318
    %1320 = vst [vmem:[%s1319] sm:%s1317] %v1316
    %s1321 = scalar_lea.vmem [#allocation0], 688
    %v1322 = vld [vmem:[%s1321] sm:%s807]
    %s1323 = sshllo.u32 0, 4
    %s1324 = smul.addr 4, 86
    %s1325 = scalar_lea.vmem %s1, %s1324
    %1326 = vst [vmem:[%s1325] sm:%s1323] %v1322
    %s1327 = scalar_lea.vmem [#allocation0], 696
    %v1328 = vld [vmem:[%s1327] sm:%s807]
    %s1329 = sshllo.u32 0, 4
    %s1330 = smul.addr 4, 87
    %s1331 = scalar_lea.vmem %s1, %s1330
    %1332 = vst [vmem:[%s1331] sm:%s1329] %v1328
    %s1333 = scalar_lea.vmem [#allocation0], 704
    %v1334 = vld [vmem:[%s1333] sm:%s807]
    %s1335 = sshllo.u32 0, 4
    %s1336 = smul.addr 4, 88
    %s1337 = scalar_lea.vmem %s1, %s1336
    %1338 = vst [vmem:[%s1337] sm:%s1335] %v1334
    %s1339 = scalar_lea.vmem [#allocation0], 712
    %v1340 = vld [vmem:[%s1339] sm:%s807]
    %s1341 = sshllo.u32 0, 4
    %s1342 = smul.addr 4, 89
    %s1343 = scalar_lea.vmem %s1, %s1342
    %1344 = vst [vmem:[%s1343] sm:%s1341] %v1340
    %s1345 = scalar_lea.vmem [#allocation0], 720
    %v1346 = vld [vmem:[%s1345] sm:%s807]
    %s1347 = sshllo.u32 0, 4
    %s1348 = smul.addr 4, 90
    %s1349 = scalar_lea.vmem %s1, %s1348
    %1350 = vst [vmem:[%s1349] sm:%s1347] %v1346
    %s1351 = scalar_lea.vmem [#allocation0], 728
    %v1352 = vld [vmem:[%s1351] sm:%s807]
    %s1353 = sshllo.u32 0, 4
    %s1354 = smul.addr 4, 91
    %s1355 = scalar_lea.vmem %s1, %s1354
    %1356 = vst [vmem:[%s1355] sm:%s1353] %v1352
    %s1357 = scalar_lea.vmem [#allocation0], 736
    %v1358 = vld [vmem:[%s1357] sm:%s807]
    %s1359 = sshllo.u32 0, 4
    %s1360 = smul.addr 4, 92
    %s1361 = scalar_lea.vmem %s1, %s1360
    %1362 = vst [vmem:[%s1361] sm:%s1359] %v1358
    %s1363 = scalar_lea.vmem [#allocation0], 744
    %v1364 = vld [vmem:[%s1363] sm:%s807]
    %s1365 = sshllo.u32 0, 4
    %s1366 = smul.addr 4, 93
    %s1367 = scalar_lea.vmem %s1, %s1366
    %1368 = vst [vmem:[%s1367] sm:%s1365] %v1364
    %s1369 = scalar_lea.vmem [#allocation0], 752
    %v1370 = vld [vmem:[%s1369] sm:%s807]
    %s1371 = sshllo.u32 0, 4
    %s1372 = smul.addr 4, 94
    %s1373 = scalar_lea.vmem %s1, %s1372
    %1374 = vst [vmem:[%s1373] sm:%s1371] %v1370
    %s1375 = scalar_lea.vmem [#allocation0], 760
    %v1376 = vld [vmem:[%s1375] sm:%s807]
    %s1377 = sshllo.u32 0, 4
    %s1378 = smul.addr 4, 95
    %s1379 = scalar_lea.vmem %s1, %s1378
    %1380 = vst [vmem:[%s1379] sm:%s1377] %v1376
    %s1381 = scalar_lea.vmem [#allocation0], 768
    %v1382 = vld [vmem:[%s1381] sm:%s807]
    %s1383 = sshllo.u32 0, 4
    %s1384 = smul.addr 4, 96
    %s1385 = scalar_lea.vmem %s1, %s1384
    %1386 = vst [vmem:[%s1385] sm:%s1383] %v1382
    %s1387 = scalar_lea.vmem [#allocation0], 776
    %v1388 = vld [vmem:[%s1387] sm:%s807]
    %s1389 = sshllo.u32 0, 4
    %s1390 = smul.addr 4, 97
    %s1391 = scalar_lea.vmem %s1, %s1390
    %1392 = vst [vmem:[%s1391] sm:%s1389] %v1388
    %s1393 = scalar_lea.vmem [#allocation0], 784
    %v1394 = vld [vmem:[%s1393] sm:%s807]
    %s1395 = sshllo.u32 0, 4
    %s1396 = smul.addr 4, 98
    %s1397 = scalar_lea.vmem %s1, %s1396
    %1398 = vst [vmem:[%s1397] sm:%s1395] %v1394
    %s1399 = scalar_lea.vmem [#allocation0], 792
    %v1400 = vld [vmem:[%s1399] sm:%s807]
    %s1401 = sshllo.u32 0, 4
    %s1402 = smul.addr 4, 99
    %s1403 = scalar_lea.vmem %s1, %s1402
    %1404 = vst [vmem:[%s1403] sm:%s1401] %v1400
    %s1405 = scalar_lea.vmem [#allocation0], 800
    %v1406 = vld [vmem:[%s1405] sm:%s807]
    %s1407 = sshllo.u32 0, 4
    %s1408 = smul.addr 4, 100
    %s1409 = scalar_lea.vmem %s1, %s1408
    %1410 = vst [vmem:[%s1409] sm:%s1407] %v1406
    %s1411 = scalar_lea.vmem [#allocation0], 808
    %v1412 = vld [vmem:[%s1411] sm:%s807]
    %s1413 = sshllo.u32 0, 4
    %s1414 = smul.addr 4, 101
    %s1415 = scalar_lea.vmem %s1, %s1414
    %1416 = vst [vmem:[%s1415] sm:%s1413] %v1412
    %s1417 = scalar_lea.vmem [#allocation0], 816
    %v1418 = vld [vmem:[%s1417] sm:%s807]
    %s1419 = sshllo.u32 0, 4
    %s1420 = smul.addr 4, 102
    %s1421 = scalar_lea.vmem %s1, %s1420
    %1422 = vst [vmem:[%s1421] sm:%s1419] %v1418
    %s1423 = scalar_lea.vmem [#allocation0], 824
    %v1424 = vld [vmem:[%s1423] sm:%s807]
    %s1425 = sshllo.u32 0, 4
    %s1426 = smul.addr 4, 103
    %s1427 = scalar_lea.vmem %s1, %s1426
    %1428 = vst [vmem:[%s1427] sm:%s1425] %v1424
    %s1429 = scalar_lea.vmem [#allocation0], 832
    %v1430 = vld [vmem:[%s1429] sm:%s807]
    %s1431 = sshllo.u32 0, 4
    %s1432 = smul.addr 4, 104
    %s1433 = scalar_lea.vmem %s1, %s1432
    %1434 = vst [vmem:[%s1433] sm:%s1431] %v1430
    %s1435 = scalar_lea.vmem [#allocation0], 840
    %v1436 = vld [vmem:[%s1435] sm:%s807]
    %s1437 = sshllo.u32 0, 4
    %s1438 = smul.addr 4, 105
    %s1439 = scalar_lea.vmem %s1, %s1438
    %1440 = vst [vmem:[%s1439] sm:%s1437] %v1436
    %s1441 = scalar_lea.vmem [#allocation0], 848
    %v1442 = vld [vmem:[%s1441] sm:%s807]
    %s1443 = sshllo.u32 0, 4
    %s1444 = smul.addr 4, 106
    %s1445 = scalar_lea.vmem %s1, %s1444
    %1446 = vst [vmem:[%s1445] sm:%s1443] %v1442
    %s1447 = scalar_lea.vmem [#allocation0], 856
    %v1448 = vld [vmem:[%s1447] sm:%s807]
    %s1449 = sshllo.u32 0, 4
    %s1450 = smul.addr 4, 107
    %s1451 = scalar_lea.vmem %s1, %s1450
    %1452 = vst [vmem:[%s1451] sm:%s1449] %v1448
    %s1453 = scalar_lea.vmem [#allocation0], 864
    %v1454 = vld [vmem:[%s1453] sm:%s807]
    %s1455 = sshllo.u32 0, 4
    %s1456 = smul.addr 4, 108
    %s1457 = scalar_lea.vmem %s1, %s1456
    %1458 = vst [vmem:[%s1457] sm:%s1455] %v1454
    %s1459 = scalar_lea.vmem [#allocation0], 872
    %v1460 = vld [vmem:[%s1459] sm:%s807]
    %s1461 = sshllo.u32 0, 4
    %s1462 = smul.addr 4, 109
    %s1463 = scalar_lea.vmem %s1, %s1462
    %1464 = vst [vmem:[%s1463] sm:%s1461] %v1460
    %s1465 = scalar_lea.vmem [#allocation0], 880
    %v1466 = vld [vmem:[%s1465] sm:%s807]
    %s1467 = sshllo.u32 0, 4
    %s1468 = smul.addr 4, 110
    %s1469 = scalar_lea.vmem %s1, %s1468
    %1470 = vst [vmem:[%s1469] sm:%s1467] %v1466
    %s1471 = scalar_lea.vmem [#allocation0], 888
    %v1472 = vld [vmem:[%s1471] sm:%s807]
    %s1473 = sshllo.u32 0, 4
    %s1474 = smul.addr 4, 111
    %s1475 = scalar_lea.vmem %s1, %s1474
    %1476 = vst [vmem:[%s1475] sm:%s1473] %v1472
    %s1477 = scalar_lea.vmem [#allocation0], 896
    %v1478 = vld [vmem:[%s1477] sm:%s807]
    %s1479 = sshllo.u32 0, 4
    %s1480 = smul.addr 4, 112
    %s1481 = scalar_lea.vmem %s1, %s1480
    %1482 = vst [vmem:[%s1481] sm:%s1479] %v1478
    %s1483 = scalar_lea.vmem [#allocation0], 904
    %v1484 = vld [vmem:[%s1483] sm:%s807]
    %s1485 = sshllo.u32 0, 4
    %s1486 = smul.addr 4, 113
    %s1487 = scalar_lea.vmem %s1, %s1486
    %1488 = vst [vmem:[%s1487] sm:%s1485] %v1484
    %s1489 = scalar_lea.vmem [#allocation0], 912
    %v1490 = vld [vmem:[%s1489] sm:%s807]
    %s1491 = sshllo.u32 0, 4
    %s1492 = smul.addr 4, 114
    %s1493 = scalar_lea.vmem %s1, %s1492
    %1494 = vst [vmem:[%s1493] sm:%s1491] %v1490
    %s1495 = scalar_lea.vmem [#allocation0], 920
    %v1496 = vld [vmem:[%s1495] sm:%s807]
    %s1497 = sshllo.u32 0, 4
    %s1498 = smul.addr 4, 115
    %s1499 = scalar_lea.vmem %s1, %s1498
    %1500 = vst [vmem:[%s1499] sm:%s1497] %v1496
    %s1501 = scalar_lea.vmem [#allocation0], 928
    %v1502 = vld [vmem:[%s1501] sm:%s807]
    %s1503 = sshllo.u32 0, 4
    %s1504 = smul.addr 4, 116
    %s1505 = scalar_lea.vmem %s1, %s1504
    %1506 = vst [vmem:[%s1505] sm:%s1503] %v1502
    %s1507 = scalar_lea.vmem [#allocation0], 936
    %v1508 = vld [vmem:[%s1507] sm:%s807]
    %s1509 = sshllo.u32 0, 4
    %s1510 = smul.addr 4, 117
    %s1511 = scalar_lea.vmem %s1, %s1510
    %1512 = vst [vmem:[%s1511] sm:%s1509] %v1508
    %s1513 = scalar_lea.vmem [#allocation0], 944
    %v1514 = vld [vmem:[%s1513] sm:%s807]
    %s1515 = sshllo.u32 0, 4
    %s1516 = smul.addr 4, 118
    %s1517 = scalar_lea.vmem %s1, %s1516
    %1518 = vst [vmem:[%s1517] sm:%s1515] %v1514
    %s1519 = scalar_lea.vmem [#allocation0], 952
    %v1520 = vld [vmem:[%s1519] sm:%s807]
    %s1521 = sshllo.u32 0, 4
    %s1522 = smul.addr 4, 119
    %s1523 = scalar_lea.vmem %s1, %s1522
    %1524 = vst [vmem:[%s1523] sm:%s1521] %v1520
    %s1525 = scalar_lea.vmem [#allocation0], 960
    %v1526 = vld [vmem:[%s1525] sm:%s807]
    %s1527 = sshllo.u32 0, 4
    %s1528 = smul.addr 4, 120
    %s1529 = scalar_lea.vmem %s1, %s1528
    %1530 = vst [vmem:[%s1529] sm:%s1527] %v1526
    %s1531 = scalar_lea.vmem [#allocation0], 968
    %v1532 = vld [vmem:[%s1531] sm:%s807]
    %s1533 = sshllo.u32 0, 4
    %s1534 = smul.addr 4, 121
    %s1535 = scalar_lea.vmem %s1, %s1534
    %1536 = vst [vmem:[%s1535] sm:%s1533] %v1532
    %s1537 = scalar_lea.vmem [#allocation0], 976
    %v1538 = vld [vmem:[%s1537] sm:%s807]
    %s1539 = sshllo.u32 0, 4
    %s1540 = smul.addr 4, 122
    %s1541 = scalar_lea.vmem %s1, %s1540
    %1542 = vst [vmem:[%s1541] sm:%s1539] %v1538
    %s1543 = scalar_lea.vmem [#allocation0], 984
    %v1544 = vld [vmem:[%s1543] sm:%s807]
    %s1545 = sshllo.u32 0, 4
    %s1546 = smul.addr 4, 123
    %s1547 = scalar_lea.vmem %s1, %s1546
    %1548 = vst [vmem:[%s1547] sm:%s1545] %v1544
    %s1549 = scalar_lea.vmem [#allocation0], 992
    %v1550 = vld [vmem:[%s1549] sm:%s807]
    %s1551 = sshllo.u32 0, 4
    %s1552 = smul.addr 4, 124
    %s1553 = scalar_lea.vmem %s1, %s1552
    %1554 = vst [vmem:[%s1553] sm:%s1551] %v1550
    %s1555 = scalar_lea.vmem [#allocation0], 1000
    %v1556 = vld [vmem:[%s1555] sm:%s807]
    %s1557 = sshllo.u32 0, 4
    %s1558 = smul.addr 4, 125
    %s1559 = scalar_lea.vmem %s1, %s1558
    %1560 = vst [vmem:[%s1559] sm:%s1557] %v1556
    %s1561 = scalar_lea.vmem [#allocation0], 1008
    %v1562 = vld [vmem:[%s1561] sm:%s807]
    %s1563 = sshllo.u32 0, 4
    %s1564 = smul.addr 4, 126
    %s1565 = scalar_lea.vmem %s1, %s1564
    %1566 = vst [vmem:[%s1565] sm:%s1563] %v1562
    %s1567 = scalar_lea.vmem [#allocation0], 1016
    %v1568 = vld [vmem:[%s1567] sm:%s807]
    %s1569 = sshllo.u32 0, 4
    %s1570 = smul.addr 4, 127
    %s1571 = scalar_lea.vmem %s1, %s1570
    %1572 = vst [vmem:[%s1571] sm:%s1569] %v1568

// kernel: dcnn_forward.1
$region0: #{dcnn_forward.1}
  #allocation0 [shape = 'u32[]', space=smem, size = 0x4, offset = 0x4, fixed_abs, tag = 'smem constant byte address 0x4 - core index']
  #allocation1 [shape = 'u32[144,128]{1,0:T(1,128)}', space=vmem, size = 0x12000, scoped, tag = 'internal scratch']
  #allocation2 [shape = 'f32[1]{0:T(128)S(6)}', space=smem, size = 0x200, scoped, tag = 'scoped memory for dcnn_forward.1']
  %s0 = inlined_call_operand.vmem [shape: f32[80,32], index: 0, kind: input, shape index: {}]
  %s1 = inlined_call_operand.vmem [shape: f32[32,512], index: 1, kind: input, shape index: {}]
  %s2 = inlined_call_operand.vmem [shape: f32[1,512], index: 2, kind: input, shape index: {}]
  %s3 = inlined_call_operand.vmem [shape: f32[1,512], index: 3, kind: input, shape index: {}]
  %s4 = inlined_call_operand.vmem [shape: f32[4,96,80], index: 4, kind: input, shape index: {}]
  %s5 = inlined_call_operand.vmem [shape: f32[4,32,128], index: 5, kind: input, shape index: {}]
  %s6 = inlined_call_operand.vmem [shape: f32[4,32,128], index: 6, kind: input, shape index: {}]
  %s7 = inlined_call_operand.vmem [shape: f32[8,32,128], index: 7, kind: input, shape index: {}]
  %s8 = inlined_call_operand.vmem [shape: f32[1,2], index: 8, kind: input, shape index: {}]
  %s9 = inlined_call_operand.<no memory space> [shape: f32[1], index: 9, kind: input, shape index: {}]
  %s10 = inlined_call_operand.hbm [shape: f32[2,2], index: 10, kind: output, shape index: {}]
  %s11 = sld [smem:[#allocation0]]
  $region50: #{dcnn_forward.1} parent=0
    _
  %s13 = ssub.s32 1, %s11
  %s14 = scalar_select 0, %s13, %s11
  %15 = sst [smem:[#allocation2]] %s9
  $region1: #{dcnn_forward.1} parent=0
    #allocation3 [shape = 'u8[1024]{0}', space=vmem, size = 0x400, scoped, tag = 'output window, operand 0, single buffered']
    #allocation4 [shape = 's32[1]{0}', space=sflag, size = 0x4, scoped, tag = 'scoped memory for dcnn_forward.1']
    %16 = vsyncpa [#allocation4], 0
    // Predicated region
    $region2: #{dcnn_forward.1} parent=1 // pred_check
      _
    $region3: #{dcnn_forward.1} parent=1 // pred_check_branch
      %18 = sbr.rel (0) target = $region5
    $region4: #{dcnn_forward.1} parent=1 // pred_region
      _
    $region5: #{dcnn_forward.1} parent=1 // pred_fallthru
      _
    // Predicated region
    $region6: #{dcnn_forward.1} parent=1 // pred_check
      _
    $region7: #{dcnn_forward.1} parent=1 // pred_check_branch
      %20 = sbr.rel (0) target = $region9
    $region8: #{dcnn_forward.1} parent=1 // pred_region
      _
    $region9: #{dcnn_forward.1} parent=1 // pred_fallthru
      _
    // Predicated region
    $region10: #{dcnn_forward.1} parent=1 // pred_check
      _
    $region11: #{dcnn_forward.1} parent=1 // pred_check_branch
      %22 = sbr.rel (0) target = $region13
    $region12: #{dcnn_forward.1} parent=1 // pred_region
      _
    $region13: #{dcnn_forward.1} parent=1 // pred_fallthru
      _
    // Predicated region
    $region14: #{dcnn_forward.1} parent=1 // pred_check
      _
    $region15: #{dcnn_forward.1} parent=1 // pred_check_branch
      %24 = sbr.rel (0) target = $region17
    $region16: #{dcnn_forward.1} parent=1 // pred_region
      _
    $region17: #{dcnn_forward.1} parent=1 // pred_fallthru
      _
    // Predicated region
    $region18: #{dcnn_forward.1} parent=1 // pred_check
      _
    $region19: #{dcnn_forward.1} parent=1 // pred_check_branch
      %26 = sbr.rel (0) target = $region21
    $region20: #{dcnn_forward.1} parent=1 // pred_region
      _
    $region21: #{dcnn_forward.1} parent=1 // pred_fallthru
      _
    // Predicated region
    $region22: #{dcnn_forward.1} parent=1 // pred_check
      _
    $region23: #{dcnn_forward.1} parent=1 // pred_check_branch
      %28 = sbr.rel (0) target = $region25
    $region24: #{dcnn_forward.1} parent=1 // pred_region
      _
    $region25: #{dcnn_forward.1} parent=1 // pred_fallthru
      _
    // Predicated region
    $region26: #{dcnn_forward.1} parent=1 // pred_check
      _
    $region27: #{dcnn_forward.1} parent=1 // pred_check_branch
      %30 = sbr.rel (0) target = $region29
    $region28: #{dcnn_forward.1} parent=1 // pred_region
      _
    $region29: #{dcnn_forward.1} parent=1 // pred_fallthru
      _
    // Predicated region
    $region30: #{dcnn_forward.1} parent=1 // pred_check
      _
    $region31: #{dcnn_forward.1} parent=1 // pred_check_branch
      %32 = sbr.rel (0) target = $region33
    $region32: #{dcnn_forward.1} parent=1 // pred_region
      _
    $region33: #{dcnn_forward.1} parent=1 // pred_fallthru
      _
    // Predicated region
    $region34: #{dcnn_forward.1} parent=1 // pred_check
      _
    $region35: #{dcnn_forward.1} parent=1 // pred_check_branch
      %34 = sbr.rel (0) target = $region37
    $region36: #{dcnn_forward.1} parent=1 // pred_region
      _
    $region37: #{dcnn_forward.1} parent=1 // pred_fallthru
      _
    // Predicated region
    $region38: #{dcnn_forward.1} parent=1 // pred_check
      _
    $region39: #{dcnn_forward.1} parent=1 // pred_check_branch
      %36 = sbr.rel (0) target = $region41
    $region40: #{dcnn_forward.1} parent=1 // pred_region
      _
    $region41: #{dcnn_forward.1} parent=1 // pred_fallthru
      _
    %v37 = vld [vmem:[%s0] sm:$0xff]
    %v38 = vld [vmem:[%s0 + $0x8] sm:$0xff]
    %v39 = vld [vmem:[%s0 + $0x10] sm:$0xff]
    %v40 = vld [vmem:[%s0 + $0x18] sm:$0xff]
    %v41 = vld [vmem:[%s0 + $0x20] sm:$0xff]
    %v42 = vld [vmem:[%s0 + $0x28] sm:$0xff]
    %v43 = vld [vmem:[%s0 + $0x30] sm:$0xff]
    %v44 = vld [vmem:[%s0 + $0x38] sm:$0xff]
    %v45 = vld [vmem:[%s0 + $0x40] sm:$0xff]
    %v46 = vld [vmem:[%s0 + $0x48] sm:$0xff]
    %v47 = vld [vmem:[%s1] sm:$0xff]
    %v48 = vld [vmem:[%s1 + $0x8] sm:$0xff]
    %v49 = vld [vmem:[%s1 + $0x10] sm:$0xff]
    %v50 = vld [vmem:[%s1 + $0x18] sm:$0xff]
    %v51 = vld [vmem:[%s1 + $0x20] sm:$0xff]
    %v52 = vld [vmem:[%s1 + $0x28] sm:$0xff]
    %v53 = vld [vmem:[%s1 + $0x30] sm:$0xff]
    %v54 = vld [vmem:[%s1 + $0x38] sm:$0xff]
    %v55 = vld [vmem:[%s1 + $0x40] sm:$0xff]
    %v56 = vld [vmem:[%s1 + $0x48] sm:$0xff]
    %v57 = vld [vmem:[%s1 + $0x50] sm:$0xff]
    %v58 = vld [vmem:[%s1 + $0x58] sm:$0xff]
    %v59 = vld [vmem:[%s1 + $0x60] sm:$0xff]
    %v60 = vld [vmem:[%s1 + $0x68] sm:$0xff]
    %v61 = vld [vmem:[%s1 + $0x70] sm:$0xff]
    %v62 = vld [vmem:[%s1 + $0x78] sm:$0xff]
    %v63 = vld [vmem:[%s2] sm:$0xf]
    %v65 = vlaneseq
    %v66 = vshrl.u32 %v65, 7
    %v67 = vsub.s32 0, %v66
    %v68 = vrot.slane %v63, %v67
    %v69 = vlaneseq
    %v70 = vshrl.u32 %v69, 7
    %v71 = vsub.s32 1, %v70
    %v72 = vrot.slane %v63, %v71
    %v73 = vlaneseq
    %v74 = vshrl.u32 %v73, 7
    %v75 = vsub.s32 2, %v74
    %v76 = vrot.slane %v63, %v75
    %v77 = vlaneseq
    %v78 = vshrl.u32 %v77, 7
    %v79 = vsub.s32 3, %v78
    %v80 = vrot.slane %v63, %v79
    %vm85 = vcmask 261120
    %v87 = vsel %vm85, %v37, 0
    %v90 = vsel %vm85, %v38, 0
    %v93 = vsel %vm85, %v39, 0
    %v96 = vsel %vm85, %v40, 0
    %v99 = vsel %vm85, %v41, 0
    %v102 = vsel %vm85, %v42, 0
    %v105 = vsel %vm85, %v43, 0
    %v108 = vsel %vm85, %v44, 0
    %v111 = vsel %vm85, %v45, 0
    %v114 = vsel %vm85, %v46, 0
    %116 = vmatprep.subr.mxu0 %v48
    %117 = vmatpush1.msra.mxu0 %v47
    %118 = vmatprep.subr.mxu0 %v52
    %119 = vmatpush1.msra.mxu0 %v51
    %120 = vmatprep.subr.mxu0 %v56
    %121 = vmatpush1.msra.mxu0 %v55
    %122 = vmatprep.subr.mxu0 %v60
    %123 = vmatpush1.msra.mxu0 %v59
    %124 = vmatprep.subr.mxu0 0.0
    %125 = vmatpush1.msra.mxu0 0.0
    %126 = vmatprep.subr.mxu0 0.0
    %127 = vmatpush1.msra.mxu0 0.0
    %128 = vmatprep.subr.mxu0 0.0
    %129 = vmatpush1.msra.mxu0 0.0
    %130 = vmatprep.subr.mxu0 0.0
    %131 = vmatpush1.msra.mxu0 0.0
    %132 = vmatprep.subr.mxu0 0.0
    %133 = vmatpush1.msra.mxu0 0.0
    %134 = vmatprep.subr.mxu0 0.0
    %135 = vmatpush1.msra.mxu0 0.0
    %136 = vmatprep.subr.mxu0 0.0
    %137 = vmatpush1.msra.mxu0 0.0
    %138 = vmatprep.subr.mxu0 0.0
    %139 = vmatpush1.msra.mxu0 0.0
    %140 = vmatprep.subr.mxu0 0.0
    %141 = vmatpush1.msra.mxu0 0.0
    %142 = vmatprep.subr.mxu0 0.0
    %143 = vmatpush1.msra.mxu0 0.0
    %144 = vmatprep.subr.mxu0 0.0
    %145 = vmatpush1.msra.mxu0 0.0
    %146 = vmatprep.subr.mxu0 0.0
    %147 = vmatpush1.msra.mxu0 0.0
    %148 = vmatprep.subr.mxu0 0.0
    %149 = vmatpush1.msra.mxu0 0.0
    %150 = vmatprep.subr.mxu0 0.0
    %151 = vmatpush1.msra.mxu0 0.0
    %152 = vmatprep.subr.mxu0 0.0
    %153 = vmatpush1.msra.mxu0 0.0
    %154 = vmatprep.subr.mxu0 0.0
    %155 = vmatpush1.msra.mxu0 0.0
    %156 = vmatprep.subr.mxu0 0.0
    %157 = vmatpush1.msra.mxu0 0.0
    %158 = vmatprep.subr.mxu0 0.0
    %159 = vmatpush1.msra.mxu0 0.0
    %160 = vmatprep.subr.mxu0 0.0
    %161 = vmatpush1.msra.mxu0 0.0
    %162 = vmatprep.subr.mxu0 0.0
    %163 = vmatpush1.msra.mxu0 0.0
    %164 = vmatprep.subr.mxu0 0.0
    %165 = vmatpush1.msra.mxu0 0.0
    %166 = vmatprep.subr.mxu0 0.0
    %167 = vmatpush1.msra.mxu0 0.0
    %168 = vmatprep.subr.mxu0 0.0
    %169 = vmatpush1.msra.mxu0 0.0
    %170 = vmatprep.subr.mxu0 0.0
    %171 = vmatpush1.msra.mxu0 0.0
    %172 = vmatprep.subr.mxu0 0.0
    %173 = vmatpush1.msra.mxu0 0.0
    %174 = vmatprep.subr.mxu0 0.0
    %175 = vmatpush1.msra.mxu0 0.0
    %176 = vmatprep.subr.mxu0 0.0
    %177 = vmatpush1.msra.mxu0 0.0
    %178 = vmatprep.subr.mxu0 0.0
    %179 = vmatpush1.msra.mxu0 0.0
    %180 = vmatprep.mubr.f32.mxu0 0.0
    %181 = vmatmul.mubr.f32.gmra.mrb[0].mxu0 %v87
    %v182 = vpop.f32.mrb[0].mxu0
    %v183 = vadd.f32 %v68, %v182
    %v184 = vpop.f32.mrb[0].mxu0
    %v185 = vadd.f32 %v72, %v184
    %186 = vmatprep.mubr.f32.mxu0 0.0
    %187 = vmatmul.mubr.f32.gmra.mrb[0].mxu0 %v90
    %v188 = vpop.f32.mrb[0].mxu0
    %v189 = vadd.f32 %v68, %v188
    %v190 = vpop.f32.mrb[0].mxu0
    %v191 = vadd.f32 %v72, %v190
    %192 = vmatprep.mubr.f32.mxu0 0.0
    %193 = vmatmul.mubr.f32.gmra.mrb[0].mxu0 %v93
    %v194 = vpop.f32.mrb[0].mxu0
    %v195 = vadd.f32 %v68, %v194
    %v196 = vpop.f32.mrb[0].mxu0
    %v197 = vadd.f32 %v72, %v196
    %198 = vmatprep.mubr.f32.mxu0 0.0
    %199 = vmatmul.mubr.f32.gmra.mrb[0].mxu0 %v96
    %v200 = vpop.f32.mrb[0].mxu0
    %v201 = vadd.f32 %v68, %v200
    %v202 = vpop.f32.mrb[0].mxu0
    %v203 = vadd.f32 %v72, %v202
    %204 = vmatprep.mubr.f32.mxu0 0.0
    %205 = vmatmul.mubr.f32.gmra.mrb[0].mxu0 %v99
    %v206 = vpop.f32.mrb[0].mxu0
    %v207 = vadd.f32 %v68, %v206
    %v208 = vpop.f32.mrb[0].mxu0
    %v209 = vadd.f32 %v72, %v208
    %210 = vmatprep.mubr.f32.mxu0 0.0
    %211 = vmatmul.mubr.f32.gmra.mrb[0].mxu0 %v102
    %v212 = vpop.f32.mrb[0].mxu0
    %v213 = vadd.f32 %v68, %v212
    %v214 = vpop.f32.mrb[0].mxu0
    %v215 = vadd.f32 %v72, %v214
    %216 = vmatprep.mubr.f32.mxu0 0.0
    %217 = vmatmul.mubr.f32.gmra.mrb[0].mxu0 %v105
    %v218 = vpop.f32.mrb[0].mxu0
    %v219 = vadd.f32 %v68, %v218
    %v220 = vpop.f32.mrb[0].mxu0
    %v221 = vadd.f32 %v72, %v220
    %222 = vmatprep.mubr.f32.mxu0 0.0
    %223 = vmatmul.mubr.f32.gmra.mrb[0].mxu0 %v108
    %v224 = vpop.f32.mrb[0].mxu0
    %v225 = vadd.f32 %v68, %v224
    %v226 = vpop.f32.mrb[0].mxu0
    %v227 = vadd.f32 %v72, %v226
    %228 = vmatprep.mubr.f32.mxu0 0.0
    %229 = vmatmul.mubr.f32.gmra.mrb[0].mxu0 %v111
    %v230 = vpop.f32.mrb[0].mxu0
    %v231 = vadd.f32 %v68, %v230
    %v232 = vpop.f32.mrb[0].mxu0
    %v233 = vadd.f32 %v72, %v232
    %234 = vmatprep.mubr.f32.mxu0 0.0
    %235 = vmatmul.mubr.f32.gmra.mrb[0].mxu0 %v114
    %v236 = vpop.f32.mrb[0].mxu0
    %v237 = vadd.f32 %v68, %v236
    %v238 = vpop.f32.mrb[0].mxu0
    %v239 = vadd.f32 %v72, %v238
    %240 = vdwg.mxu0
    %241 = vmatprep.subr.mxu0 %v50
    %242 = vmatpush1.msra.mxu0 %v49
    %243 = vmatprep.subr.mxu0 %v54
    %244 = vmatpush1.msra.mxu0 %v53
    %245 = vmatprep.subr.mxu0 %v58
    %246 = vmatpush1.msra.mxu0 %v57
    %247 = vmatprep.subr.mxu0 %v62
    %248 = vmatpush1.msra.mxu0 %v61
    %249 = vmatprep.subr.mxu0 0.0
    %250 = vmatpush1.msra.mxu0 0.0
    %251 = vmatprep.subr.mxu0 0.0
    %252 = vmatpush1.msra.mxu0 0.0
    %253 = vmatprep.subr.mxu0 0.0
    %254 = vmatpush1.msra.mxu0 0.0
    %255 = vmatprep.subr.mxu0 0.0
    %256 = vmatpush1.msra.mxu0 0.0
    %257 = vmatprep.subr.mxu0 0.0
    %258 = vmatpush1.msra.mxu0 0.0
    %259 = vmatprep.subr.mxu0 0.0
    %260 = vmatpush1.msra.mxu0 0.0
    %261 = vmatprep.subr.mxu0 0.0
    %262 = vmatpush1.msra.mxu0 0.0
    %263 = vmatprep.subr.mxu0 0.0
    %264 = vmatpush1.msra.mxu0 0.0
    %265 = vmatprep.subr.mxu0 0.0
    %266 = vmatpush1.msra.mxu0 0.0
    %267 = vmatprep.subr.mxu0 0.0
    %268 = vmatpush1.msra.mxu0 0.0
    %269 = vmatprep.subr.mxu0 0.0
    %270 = vmatpush1.msra.mxu0 0.0
    %271 = vmatprep.subr.mxu0 0.0
    %272 = vmatpush1.msra.mxu0 0.0
    %273 = vmatprep.subr.mxu0 0.0
    %274 = vmatpush1.msra.mxu0 0.0
    %275 = vmatprep.subr.mxu0 0.0
    %276 = vmatpush1.msra.mxu0 0.0
    %277 = vmatprep.subr.mxu0 0.0
    %278 = vmatpush1.msra.mxu0 0.0
    %279 = vmatprep.subr.mxu0 0.0
    %280 = vmatpush1.msra.mxu0 0.0
    %281 = vmatprep.subr.mxu0 0.0
    %282 = vmatpush1.msra.mxu0 0.0
    %283 = vmatprep.subr.mxu0 0.0
    %284 = vmatpush1.msra.mxu0 0.0
    %285 = vmatprep.subr.mxu0 0.0
    %286 = vmatpush1.msra.mxu0 0.0
    %287 = vmatprep.subr.mxu0 0.0
    %288 = vmatpush1.msra.mxu0 0.0
    %289 = vmatprep.subr.mxu0 0.0
    %290 = vmatpush1.msra.mxu0 0.0
    %291 = vmatprep.subr.mxu0 0.0
    %292 = vmatpush1.msra.mxu0 0.0
    %293 = vmatprep.subr.mxu0 0.0
    %294 = vmatpush1.msra.mxu0 0.0
    %295 = vmatprep.subr.mxu0 0.0
    %296 = vmatpush1.msra.mxu0 0.0
    %297 = vmatprep.subr.mxu0 0.0
    %298 = vmatpush1.msra.mxu0 0.0
    %299 = vmatprep.subr.mxu0 0.0
    %300 = vmatpush1.msra.mxu0 0.0
    %301 = vmatprep.subr.mxu0 0.0
    %302 = vmatpush1.msra.mxu0 0.0
    %303 = vmatprep.subr.mxu0 0.0
    %304 = vmatpush1.msra.mxu0 0.0
    %305 = vmatprep.mubr.f32.mxu0 0.0
    %306 = vmatmul.mubr.f32.gmra.mrb[0].mxu0 %v87
    %v307 = vpop.f32.mrb[0].mxu0
    %v308 = vadd.f32 %v76, %v307
    %v309 = vpop.f32.mrb[0].mxu0
    %v310 = vadd.f32 %v80, %v309
    %311 = vmatprep.mubr.f32.mxu0 0.0
    %312 = vmatmul.mubr.f32.gmra.mrb[0].mxu0 %v90
    %v313 = vpop.f32.mrb[0].mxu0
    %v314 = vadd.f32 %v76, %v313
    %v315 = vpop.f32.mrb[0].mxu0
    %v316 = vadd.f32 %v80, %v315
    %317 = vmatprep.mubr.f32.mxu0 0.0
    %318 = vmatmul.mubr.f32.gmra.mrb[0].mxu0 %v93
    %v319 = vpop.f32.mrb[0].mxu0
    %v320 = vadd.f32 %v76, %v319
    %v321 = vpop.f32.mrb[0].mxu0
    %v322 = vadd.f32 %v80, %v321
    %323 = vmatprep.mubr.f32.mxu0 0.0
    %324 = vmatmul.mubr.f32.gmra.mrb[0].mxu0 %v96
    %v325 = vpop.f32.mrb[0].mxu0
    %v326 = vadd.f32 %v76, %v325
    %v327 = vpop.f32.mrb[0].mxu0
    %v328 = vadd.f32 %v80, %v327
    %329 = vmatprep.mubr.f32.mxu0 0.0
    %330 = vmatmul.mubr.f32.gmra.mrb[0].mxu0 %v99
    %v331 = vpop.f32.mrb[0].mxu0
    %v332 = vadd.f32 %v76, %v331
    %v333 = vpop.f32.mrb[0].mxu0
    %v334 = vadd.f32 %v80, %v333
    %335 = vmatprep.mubr.f32.mxu0 0.0
    %336 = vmatmul.mubr.f32.gmra.mrb[0].mxu0 %v102
    %v337 = vpop.f32.mrb[0].mxu0
    %v338 = vadd.f32 %v76, %v337
    %v339 = vpop.f32.mrb[0].mxu0
    %v340 = vadd.f32 %v80, %v339
    %341 = vmatprep.mubr.f32.mxu0 0.0
    %342 = vmatmul.mubr.f32.gmra.mrb[0].mxu0 %v105
    %v343 = vpop.f32.mrb[0].mxu0
    %v344 = vadd.f32 %v76, %v343
    %v345 = vpop.f32.mrb[0].mxu0
    %v346 = vadd.f32 %v80, %v345
    %347 = vmatprep.mubr.f32.mxu0 0.0
    %348 = vmatmul.mubr.f32.gmra.mrb[0].mxu0 %v108
    %v349 = vpop.f32.mrb[0].mxu0
    %v350 = vadd.f32 %v76, %v349
    %v351 = vpop.f32.mrb[0].mxu0
    %v352 = vadd.f32 %v80, %v351
    %353 = vmatprep.mubr.f32.mxu0 0.0
    %354 = vmatmul.mubr.f32.gmra.mrb[0].mxu0 %v111
    %v355 = vpop.f32.mrb[0].mxu0
    %v356 = vadd.f32 %v76, %v355
    %v357 = vpop.f32.mrb[0].mxu0
    %v358 = vadd.f32 %v80, %v357
    %359 = vmatprep.mubr.f32.mxu0 0.0
    %360 = vmatmul.mubr.f32.gmra.mrb[0].mxu0 %v114
    %v361 = vpop.f32.mrb[0].mxu0
    %v362 = vadd.f32 %v76, %v361
    %v363 = vpop.f32.mrb[0].mxu0
    %v364 = vadd.f32 %v80, %v363
    %365 = vdwg.mxu0
    %vm366 = vcmp.ge.f32.partialorder %v183, 0.0
    %vm367 = vcmp.ge.f32.partialorder %v185, 0.0
    %vm368 = vcmp.ge.f32.partialorder %v308, 0.0
    %vm369 = vcmp.ge.f32.partialorder %v310, 0.0
    %vm370 = vcmp.ge.f32.partialorder %v189, 0.0
    %vm371 = vcmp.ge.f32.partialorder %v191, 0.0
    %vm372 = vcmp.ge.f32.partialorder %v314, 0.0
    %vm373 = vcmp.ge.f32.partialorder %v316, 0.0
    %vm374 = vcmp.ge.f32.partialorder %v195, 0.0
    %vm375 = vcmp.ge.f32.partialorder %v197, 0.0
    %vm376 = vcmp.ge.f32.partialorder %v320, 0.0
    %vm377 = vcmp.ge.f32.partialorder %v322, 0.0
    %vm378 = vcmp.ge.f32.partialorder %v201, 0.0
    %vm379 = vcmp.ge.f32.partialorder %v203, 0.0
    %vm380 = vcmp.ge.f32.partialorder %v326, 0.0
    %vm381 = vcmp.ge.f32.partialorder %v328, 0.0
    %vm382 = vcmp.ge.f32.partialorder %v207, 0.0
    %vm383 = vcmp.ge.f32.partialorder %v209, 0.0
    %vm384 = vcmp.ge.f32.partialorder %v332, 0.0
    %vm385 = vcmp.ge.f32.partialorder %v334, 0.0
    %vm386 = vcmp.ge.f32.partialorder %v213, 0.0
    %vm387 = vcmp.ge.f32.partialorder %v215, 0.0
    %vm388 = vcmp.ge.f32.partialorder %v338, 0.0
    %vm389 = vcmp.ge.f32.partialorder %v340, 0.0
    %vm390 = vcmp.ge.f32.partialorder %v219, 0.0
    %vm391 = vcmp.ge.f32.partialorder %v221, 0.0
    %vm392 = vcmp.ge.f32.partialorder %v344, 0.0
    %vm393 = vcmp.ge.f32.partialorder %v346, 0.0
    %vm394 = vcmp.ge.f32.partialorder %v225, 0.0
    %vm395 = vcmp.ge.f32.partialorder %v227, 0.0
    %vm396 = vcmp.ge.f32.partialorder %v350, 0.0
    %vm397 = vcmp.ge.f32.partialorder %v352, 0.0
    %vm398 = vcmp.ge.f32.partialorder %v231, 0.0
    %vm399 = vcmp.ge.f32.partialorder %v233, 0.0
    %vm400 = vcmp.ge.f32.partialorder %v356, 0.0
    %vm401 = vcmp.ge.f32.partialorder %v358, 0.0
    %vm402 = vcmp.ge.f32.partialorder %v237, 0.0
    %vm403 = vcmp.ge.f32.partialorder %v239, 0.0
    %vm404 = vcmp.ge.f32.partialorder %v362, 0.0
    %vm405 = vcmp.ge.f32.partialorder %v364, 0.0
    %v406 = vld [vmem:[%s3] sm:$0xf]
    %v408 = vlaneseq
    %v409 = vshrl.u32 %v408, 7
    %v410 = vsub.s32 0, %v409
    %v411 = vrot.slane %v406, %v410
    %v412 = vlaneseq
    %v413 = vshrl.u32 %v412, 7
    %v414 = vsub.s32 1, %v413
    %v415 = vrot.slane %v406, %v414
    %v416 = vlaneseq
    %v417 = vshrl.u32 %v416, 7
    %v418 = vsub.s32 2, %v417
    %v419 = vrot.slane %v406, %v418
    %v420 = vlaneseq
    %v421 = vshrl.u32 %v420, 7
    %v422 = vsub.s32 3, %v421
    %v423 = vrot.slane %v406, %v422
    %v428 = vmul.f32 %v411, %v183
    %v429 = vmul.f32 %v415, %v185
    %v430 = vmul.f32 %v419, %v308
    %v431 = vmul.f32 %v423, %v310
    %v432 = vmul.f32 %v411, %v189
    %v433 = vmul.f32 %v415, %v191
    %v434 = vmul.f32 %v419, %v314
    %v435 = vmul.f32 %v423, %v316
    %v436 = vmul.f32 %v411, %v195
    %v437 = vmul.f32 %v415, %v197
    %v438 = vmul.f32 %v419, %v320
    %v439 = vmul.f32 %v423, %v322
    %v440 = vmul.f32 %v411, %v201
    %v441 = vmul.f32 %v415, %v203
    %v442 = vmul.f32 %v419, %v326
    %v443 = vmul.f32 %v423, %v328
    %v444 = vmul.f32 %v411, %v207
    %v445 = vmul.f32 %v415, %v209
    %v446 = vmul.f32 %v419, %v332
    %v447 = vmul.f32 %v423, %v334
    %v448 = vmul.f32 %v411, %v213
    %v449 = vmul.f32 %v415, %v215
    %v450 = vmul.f32 %v419, %v338
    %v451 = vmul.f32 %v423, %v340
    %v452 = vmul.f32 %v411, %v219
    %v453 = vmul.f32 %v415, %v221
    %v454 = vmul.f32 %v419, %v344
    %v455 = vmul.f32 %v423, %v346
    %v456 = vmul.f32 %v411, %v225
    %v457 = vmul.f32 %v415, %v227
    %v458 = vmul.f32 %v419, %v350
    %v459 = vmul.f32 %v423, %v352
    %v460 = vmul.f32 %v411, %v231
    %v461 = vmul.f32 %v415, %v233
    %v462 = vmul.f32 %v419, %v356
    %v463 = vmul.f32 %v423, %v358
    %v464 = vmul.f32 %v411, %v237
    %v465 = vmul.f32 %v415, %v239
    %v466 = vmul.f32 %v419, %v362
    %v467 = vmul.f32 %v423, %v364
    %v468 = vsel %vm366, %v183, %v428
    %v469 = vsel %vm367, %v185, %v429
    %v470 = vsel %vm368, %v308, %v430
    %v471 = vsel %vm369, %v310, %v431
    %v472 = vsel %vm370, %v189, %v432
    %v473 = vsel %vm371, %v191, %v433
    %v474 = vsel %vm372, %v314, %v434
    %v475 = vsel %vm373, %v316, %v435
    %v476 = vsel %vm374, %v195, %v436
    %v477 = vsel %vm375, %v197, %v437
    %v478 = vsel %vm376, %v320, %v438
    %v479 = vsel %vm377, %v322, %v439
    %v480 = vsel %vm378, %v201, %v440
    %v481 = vsel %vm379, %v203, %v441
    %v482 = vsel %vm380, %v326, %v442
    %v483 = vsel %vm381, %v328, %v443
    %v484 = vsel %vm382, %v207, %v444
    %v485 = vsel %vm383, %v209, %v445
    %v486 = vsel %vm384, %v332, %v446
    %v487 = vsel %vm385, %v334, %v447
    %v488 = vsel %vm386, %v213, %v448
    %v489 = vsel %vm387, %v215, %v449
    %v490 = vsel %vm388, %v338, %v450
    %v491 = vsel %vm389, %v340, %v451
    %v492 = vsel %vm390, %v219, %v452
    %v493 = vsel %vm391, %v221, %v453
    %v494 = vsel %vm392, %v344, %v454
    %v495 = vsel %vm393, %v346, %v455
    %v496 = vsel %vm394, %v225, %v456
    %v497 = vsel %vm395, %v227, %v457
    %v498 = vsel %vm396, %v350, %v458
    %v499 = vsel %vm397, %v352, %v459
    %v500 = vsel %vm398, %v231, %v460
    %v501 = vsel %vm399, %v233, %v461
    %v502 = vsel %vm400, %v356, %v462
    %v503 = vsel %vm401, %v358, %v463
    %v504 = vsel %vm402, %v237, %v464
    %v505 = vsel %vm403, %v239, %v465
    %v506 = vsel %vm404, %v362, %v466
    %v507 = vsel %vm405, %v364, %v467
    %s508 = sld [smem:[#allocation2]]
    %v509 = vld [vmem:[%s4] sm:$0xff]
    %v510 = vld [vmem:[%s4 + $0x8] sm:$0xff]
    %v511 = vld [vmem:[%s4 + $0x10] sm:$0xff]
    %v512 = vld [vmem:[%s4 + $0x18] sm:$0xff]
    %v513 = vld [vmem:[%s4 + $0x20] sm:$0xff]
    %v514 = vld [vmem:[%s4 + $0x28] sm:$0xff]
    %v515 = vld [vmem:[%s4 + $0x30] sm:$0xff]
    %v516 = vld [vmem:[%s4 + $0x38] sm:$0xff]
    %v517 = vld [vmem:[%s4 + $0x40] sm:$0xff]
    %v518 = vld [vmem:[%s4 + $0x48] sm:$0xff]
    %v519 = vld [vmem:[%s4 + $0x50] sm:$0xff]
    %v520 = vld [vmem:[%s4 + $0x58] sm:$0xff]
    %vm521 = vcmask 654336
    %v523 = vsel %vm521, %v509, 0
    %v526 = vsel %vm521, %v510, 0
    %v529 = vsel %vm521, %v511, 0
    %v532 = vsel %vm521, %v512, 0
    %v535 = vsel %vm521, %v513, 0
    %v538 = vsel %vm521, %v514, 0
    %v541 = vsel %vm521, %v515, 0
    %v544 = vsel %vm521, %v516, 0
    %v547 = vsel %vm521, %v517, 0
    %v550 = vsel %vm521, %v518, 0
    %v553 = vsel %vm521, %v519, 0
    %v556 = vsel %vm521, %v520, 0
    %558 = vmatprep.subr.mxu0 0.0
    %559 = vmatpush1.msra.mxu0 %v468
    %560 = vmatprep.subr.mxu0 0.0
    %561 = vmatpush1.msra.mxu0 %v472
    %562 = vmatprep.subr.mxu0 0.0
    %563 = vmatpush1.msra.mxu0 %v476
    %564 = vmatprep.subr.mxu0 0.0
    %565 = vmatpush1.msra.mxu0 %v480
    %566 = vmatprep.subr.mxu0 0.0
    %567 = vmatpush1.msra.mxu0 %v484
    %568 = vmatprep.subr.mxu0 0.0
    %569 = vmatpush1.msra.mxu0 %v488
    %570 = vmatprep.subr.mxu0 0.0
    %571 = vmatpush1.msra.mxu0 %v492
    %572 = vmatprep.subr.mxu0 0.0
    %573 = vmatpush1.msra.mxu0 %v496
    %574 = vmatprep.subr.mxu0 0.0
    %575 = vmatpush1.msra.mxu0 %v500
    %576 = vmatprep.subr.mxu0 0.0
    %577 = vmatpush1.msra.mxu0 %v504
    %578 = vmatprep.subr.mxu0 0.0
    %579 = vmatpush1.msra.mxu0 0.0
    %580 = vmatprep.subr.mxu0 0.0
    %581 = vmatpush1.msra.mxu0 0.0
    %582 = vmatprep.subr.mxu0 0.0
    %583 = vmatpush1.msra.mxu0 0.0
    %584 = vmatprep.subr.mxu0 0.0
    %585 = vmatpush1.msra.mxu0 0.0
    %586 = vmatprep.subr.mxu0 0.0
    %587 = vmatpush1.msra.mxu0 0.0
    %588 = vmatprep.subr.mxu0 0.0
    %589 = vmatpush1.msra.mxu0 0.0
    %590 = vmatprep.subr.mxu0 0.0
    %591 = vmatpush1.msra.mxu0 0.0
    %592 = vmatprep.subr.mxu0 0.0
    %593 = vmatpush1.msra.mxu0 0.0
    %594 = vmatprep.subr.mxu0 0.0
    %595 = vmatpush1.msra.mxu0 0.0
    %596 = vmatprep.subr.mxu0 0.0
    %597 = vmatpush1.msra.mxu0 0.0
    %598 = vmatprep.subr.mxu0 0.0
    %599 = vmatpush1.msra.mxu0 0.0
    %600 = vmatprep.subr.mxu0 0.0
    %601 = vmatpush1.msra.mxu0 0.0
    %602 = vmatprep.subr.mxu0 0.0
    %603 = vmatpush1.msra.mxu0 0.0
    %604 = vmatprep.subr.mxu0 0.0
    %605 = vmatpush1.msra.mxu0 0.0
    %606 = vmatprep.subr.mxu0 0.0
    %607 = vmatpush1.msra.mxu0 0.0
    %608 = vmatprep.subr.mxu0 0.0
    %609 = vmatpush1.msra.mxu0 0.0
    %610 = vmatprep.subr.mxu0 0.0
    %611 = vmatpush1.msra.mxu0 0.0
    %612 = vmatprep.subr.mxu0 0.0
    %613 = vmatpush1.msra.mxu0 0.0
    %614 = vmatprep.subr.mxu0 0.0
    %615 = vmatpush1.msra.mxu0 0.0
    %616 = vmatprep.subr.mxu0 0.0
    %617 = vmatpush1.msra.mxu0 0.0
    %618 = vmatprep.subr.mxu0 0.0
    %619 = vmatpush1.msra.mxu0 0.0
    %620 = vmatprep.subr.mxu0 0.0
    %621 = vmatpush1.msra.mxu0 0.0
    %622 = vmatprep.mubr.f32.mxu0 0.0
    %623 = vmatmul.mubr.f32.gmra.mrb[0].mxu0 %v523
    %v624 = vpop.f32.mrb[0].mxu0
    %v625 = vadd.f32 0.0, %v624
    %v626 = vpop.f32.mrb[0].mxu0
    %627 = vmatprep.mubr.f32.mxu0 0.0
    %628 = vmatmul.mubr.f32.gmra.mrb[0].mxu0 %v526
    %v629 = vpop.f32.mrb[0].mxu0
    %v630 = vadd.f32 0.0, %v629
    %v631 = vpop.f32.mrb[0].mxu0
    %632 = vmatprep.mubr.f32.mxu0 0.0
    %633 = vmatmul.mubr.f32.gmra.mrb[0].mxu0 %v529
    %v634 = vpop.f32.mrb[0].mxu0
    %v635 = vadd.f32 0.0, %v634
    %v636 = vpop.f32.mrb[0].mxu0
    %637 = vmatprep.mubr.f32.mxu0 0.0
    %638 = vmatmul.mubr.f32.gmra.mrb[0].mxu0 %v532
    %v639 = vpop.f32.mrb[0].mxu0
    %v640 = vadd.f32 0.0, %v639
    %v641 = vpop.f32.mrb[0].mxu0
    %642 = vmatprep.mubr.f32.mxu0 0.0
    %643 = vmatmul.mubr.f32.gmra.mrb[0].mxu0 %v535
    %v644 = vpop.f32.mrb[0].mxu0
    %v645 = vadd.f32 0.0, %v644
    %v646 = vpop.f32.mrb[0].mxu0
    %647 = vmatprep.mubr.f32.mxu0 0.0
    %648 = vmatmul.mubr.f32.gmra.mrb[0].mxu0 %v538
    %v649 = vpop.f32.mrb[0].mxu0
    %v650 = vadd.f32 0.0, %v649
    %v651 = vpop.f32.mrb[0].mxu0
    %652 = vmatprep.mubr.f32.mxu0 0.0
    %653 = vmatmul.mubr.f32.gmra.mrb[0].mxu0 %v541
    %v654 = vpop.f32.mrb[0].mxu0
    %v655 = vadd.f32 0.0, %v654
    %v656 = vpop.f32.mrb[0].mxu0
    %657 = vmatprep.mubr.f32.mxu0 0.0
    %658 = vmatmul.mubr.f32.gmra.mrb[0].mxu0 %v544
    %v659 = vpop.f32.mrb[0].mxu0
    %v660 = vadd.f32 0.0, %v659
    %v661 = vpop.f32.mrb[0].mxu0
    %662 = vmatprep.mubr.f32.mxu0 0.0
    %663 = vmatmul.mubr.f32.gmra.mrb[0].mxu0 %v547
    %v664 = vpop.f32.mrb[0].mxu0
    %v665 = vadd.f32 0.0, %v664
    %v666 = vpop.f32.mrb[0].mxu0
    %667 = vmatprep.mubr.f32.mxu0 0.0
    %668 = vmatmul.mubr.f32.gmra.mrb[0].mxu0 %v550
    %v669 = vpop.f32.mrb[0].mxu0
    %v670 = vadd.f32 0.0, %v669
    %v671 = vpop.f32.mrb[0].mxu0
    %672 = vmatprep.mubr.f32.mxu0 0.0
    %673 = vmatmul.mubr.f32.gmra.mrb[0].mxu0 %v553
    %v674 = vpop.f32.mrb[0].mxu0
    %v675 = vadd.f32 0.0, %v674
    %v676 = vpop.f32.mrb[0].mxu0
    %677 = vmatprep.mubr.f32.mxu0 0.0
    %678 = vmatmul.mubr.f32.gmra.mrb[0].mxu0 %v556
    %v679 = vpop.f32.mrb[0].mxu0
    %v680 = vadd.f32 0.0, %v679
    %v681 = vpop.f32.mrb[0].mxu0
    %682 = vdwg.mxu0
    %v683 = vmax.f32 %v625, %v645
    %v684 = vmax.f32 %v630, %v650
    %v685 = vmax.f32 %v635, %v655
    %v686 = vmax.f32 %v640, %v660
    %v687 = vmax.f32 %v683, %v665
    %v688 = vmax.f32 %v684, %v670
    %v689 = vmax.f32 %v685, %v675
    %v690 = vmax.f32 %v686, %v680
    %v691 = vld [vmem:[%s5] sm:$0xff]
    %v692 = vld [vmem:[%s5 + $0x8] sm:$0xff]
    %v693 = vld [vmem:[%s5 + $0x10] sm:$0xff]
    %v694 = vld [vmem:[%s5 + $0x18] sm:$0xff]
    %v695 = vmul.f32 %v687, %v691
    %v696 = vmul.f32 %v688, %v692
    %v697 = vmul.f32 %v689, %v693
    %v698 = vmul.f32 %v690, %v694
    %v699 = vld [vmem:[%s6] sm:$0xff]
    %v700 = vld [vmem:[%s6 + $0x8] sm:$0xff]
    %v701 = vld [vmem:[%s6 + $0x10] sm:$0xff]
    %v702 = vld [vmem:[%s6 + $0x18] sm:$0xff]
    %v703 = vadd.f32 %v695, %v699
    %v704 = vadd.f32 %v696, %v700
    %v705 = vadd.f32 %v697, %v701
    %v706 = vadd.f32 %v698, %v702
    %vm707 = vcmp.ge.f32.partialorder %v703, 0.0
    %vm708 = vcmp.ge.f32.partialorder %v704, 0.0
    %vm709 = vcmp.ge.f32.partialorder %v705, 0.0
    %vm710 = vcmp.ge.f32.partialorder %v706, 0.0
    %v711 = vstv %s508
    %v712 = vmul.f32 %v711, %v703
    %v713 = vmul.f32 %v711, %v704
    %v714 = vmul.f32 %v711, %v705
    %v715 = vmul.f32 %v711, %v706
    %v716 = vsel %vm707, %v703, %v712
    %v717 = vsel %vm708, %v704, %v713
    %v718 = vsel %vm709, %v705, %v714
    %v719 = vsel %vm710, %v706, %v715
    %v720 = vld [vmem:[%s7] sm:$0xff]
    %v721 = vld [vmem:[%s7 + $0x8] sm:$0xff]
    %v722 = vld [vmem:[%s7 + $0x10] sm:$0xff]
    %v723 = vld [vmem:[%s7 + $0x18] sm:$0xff]
    %v724 = vmul.f32 %v716, %v720
    %v725 = vmul.f32 %v717, %v721
    %v726 = vmul.f32 %v718, %v722
    %v727 = vmul.f32 %v719, %v723
    %728 = vadd.xlane.f32.xlu0 %v724
    %v729 = vpop.xlane.xlu0 %728
    %730 = vadd.xlane.f32.xlu0 %v725
    %v731 = vpop.xlane.xlu0 %730
    %732 = vadd.xlane.f32.xlu0 %v726
    %v733 = vpop.xlane.xlu0 %732
    %734 = vadd.xlane.f32.xlu0 %v727
    %v735 = vpop.xlane.xlu0 %734
    %s736 = scalar_lea.vmem %s7, 128
    %v737 = vld [vmem:[%s736] sm:$0xff]
    %v738 = vld [vmem:[%s736 + $0x8] sm:$0xff]
    %v739 = vld [vmem:[%s736 + $0x10] sm:$0xff]
    %v740 = vld [vmem:[%s736 + $0x18] sm:$0xff]
    %v741 = vmul.f32 %v716, %v737
    %v742 = vmul.f32 %v717, %v738
    %v743 = vmul.f32 %v718, %v739
    %v744 = vmul.f32 %v719, %v740
    %745 = vadd.xlane.f32.xlu0 %v741
    %v746 = vpop.xlane.xlu0 %745
    %747 = vadd.xlane.f32.xlu0 %v742
    %v748 = vpop.xlane.xlu0 %747
    %749 = vadd.xlane.f32.xlu0 %v743
    %v750 = vpop.xlane.xlu0 %749
    %751 = vadd.xlane.f32.xlu0 %v744
    %v752 = vpop.xlane.xlu0 %751
    %s753 = scalar_lea.vmem %s4, 96
    %v754 = vld [vmem:[%s753] sm:$0xff]
    %v755 = vld [vmem:[%s753 + $0x8] sm:$0xff]
    %v756 = vld [vmem:[%s753 + $0x10] sm:$0xff]
    %v757 = vld [vmem:[%s753 + $0x18] sm:$0xff]
    %v758 = vld [vmem:[%s753 + $0x20] sm:$0xff]
    %v759 = vld [vmem:[%s753 + $0x28] sm:$0xff]
    %v760 = vld [vmem:[%s753 + $0x30] sm:$0xff]
    %v761 = vld [vmem:[%s753 + $0x38] sm:$0xff]
    %v762 = vld [vmem:[%s753 + $0x40] sm:$0xff]
    %v763 = vld [vmem:[%s753 + $0x48] sm:$0xff]
    %v764 = vld [vmem:[%s753 + $0x50] sm:$0xff]
    %v765 = vld [vmem:[%s753 + $0x58] sm:$0xff]
    %v767 = vsel %vm521, %v754, 0
    %v770 = vsel %vm521, %v755, 0
    %v773 = vsel %vm521, %v756, 0
    %v776 = vsel %vm521, %v757, 0
    %v779 = vsel %vm521, %v758, 0
    %v782 = vsel %vm521, %v759, 0
    %v785 = vsel %vm521, %v760, 0
    %v788 = vsel %vm521, %v761, 0
    %v791 = vsel %vm521, %v762, 0
    %v794 = vsel %vm521, %v763, 0
    %v797 = vsel %vm521, %v764, 0
    %v800 = vsel %vm521, %v765, 0
    %802 = vmatprep.subr.mxu0 0.0
    %803 = vmatpush1.msra.mxu0 %v469
    %804 = vmatprep.subr.mxu0 0.0
    %805 = vmatpush1.msra.mxu0 %v473
    %806 = vmatprep.subr.mxu0 0.0
    %807 = vmatpush1.msra.mxu0 %v477
    %808 = vmatprep.subr.mxu0 0.0
    %809 = vmatpush1.msra.mxu0 %v481
    %810 = vmatprep.subr.mxu0 0.0
    %811 = vmatpush1.msra.mxu0 %v485
    %812 = vmatprep.subr.mxu0 0.0
    %813 = vmatpush1.msra.mxu0 %v489
    %814 = vmatprep.subr.mxu0 0.0
    %815 = vmatpush1.msra.mxu0 %v493
    %816 = vmatprep.subr.mxu0 0.0
    %817 = vmatpush1.msra.mxu0 %v497
    %818 = vmatprep.subr.mxu0 0.0
    %819 = vmatpush1.msra.mxu0 %v501
    %820 = vmatprep.subr.mxu0 0.0
    %821 = vmatpush1.msra.mxu0 %v505
    %822 = vmatprep.subr.mxu0 0.0
    %823 = vmatpush1.msra.mxu0 0.0
    %824 = vmatprep.subr.mxu0 0.0
    %825 = vmatpush1.msra.mxu0 0.0
    %826 = vmatprep.subr.mxu0 0.0
    %827 = vmatpush1.msra.mxu0 0.0
    %828 = vmatprep.subr.mxu0 0.0
    %829 = vmatpush1.msra.mxu0 0.0
    %830 = vmatprep.subr.mxu0 0.0
    %831 = vmatpush1.msra.mxu0 0.0
    %832 = vmatprep.subr.mxu0 0.0
    %833 = vmatpush1.msra.mxu0 0.0
    %834 = vmatprep.subr.mxu0 0.0
    %835 = vmatpush1.msra.mxu0 0.0
    %836 = vmatprep.subr.mxu0 0.0
    %837 = vmatpush1.msra.mxu0 0.0
    %838 = vmatprep.subr.mxu0 0.0
    %839 = vmatpush1.msra.mxu0 0.0
    %840 = vmatprep.subr.mxu0 0.0
    %841 = vmatpush1.msra.mxu0 0.0
    %842 = vmatprep.subr.mxu0 0.0
    %843 = vmatpush1.msra.mxu0 0.0
    %844 = vmatprep.subr.mxu0 0.0
    %845 = vmatpush1.msra.mxu0 0.0
    %846 = vmatprep.subr.mxu0 0.0
    %847 = vmatpush1.msra.mxu0 0.0
    %848 = vmatprep.subr.mxu0 0.0
    %849 = vmatpush1.msra.mxu0 0.0
    %850 = vmatprep.subr.mxu0 0.0
    %851 = vmatpush1.msra.mxu0 0.0
    %852 = vmatprep.subr.mxu0 0.0
    %853 = vmatpush1.msra.mxu0 0.0
    %854 = vmatprep.subr.mxu0 0.0
    %855 = vmatpush1.msra.mxu0 0.0
    %856 = vmatprep.subr.mxu0 0.0
    %857 = vmatpush1.msra.mxu0 0.0
    %858 = vmatprep.subr.mxu0 0.0
    %859 = vmatpush1.msra.mxu0 0.0
    %860 = vmatprep.subr.mxu0 0.0
    %861 = vmatpush1.msra.mxu0 0.0
    %862 = vmatprep.subr.mxu0 0.0
    %863 = vmatpush1.msra.mxu0 0.0
    %864 = vmatprep.subr.mxu0 0.0
    %865 = vmatpush1.msra.mxu0 0.0
    %866 = vmatprep.mubr.f32.mxu0 0.0
    %867 = vmatmul.mubr.f32.gmra.mrb[0].mxu0 %v767
    %v868 = vpop.f32.mrb[0].mxu0
    %v869 = vadd.f32 0.0, %v868
    %v870 = vpop.f32.mrb[0].mxu0
    %871 = vmatprep.mubr.f32.mxu0 0.0
    %872 = vmatmul.mubr.f32.gmra.mrb[0].mxu0 %v770
    %v873 = vpop.f32.mrb[0].mxu0
    %v874 = vadd.f32 0.0, %v873
    %v875 = vpop.f32.mrb[0].mxu0
    %876 = vmatprep.mubr.f32.mxu0 0.0
    %877 = vmatmul.mubr.f32.gmra.mrb[0].mxu0 %v773
    %v878 = vpop.f32.mrb[0].mxu0
    %v879 = vadd.f32 0.0, %v878
    %v880 = vpop.f32.mrb[0].mxu0
    %881 = vmatprep.mubr.f32.mxu0 0.0
    %882 = vmatmul.mubr.f32.gmra.mrb[0].mxu0 %v776
    %v883 = vpop.f32.mrb[0].mxu0
    %v884 = vadd.f32 0.0, %v883
    %v885 = vpop.f32.mrb[0].mxu0
    %886 = vmatprep.mubr.f32.mxu0 0.0
    %887 = vmatmul.mubr.f32.gmra.mrb[0].mxu0 %v779
    %v888 = vpop.f32.mrb[0].mxu0
    %v889 = vadd.f32 0.0, %v888
    %v890 = vpop.f32.mrb[0].mxu0
    %891 = vmatprep.mubr.f32.mxu0 0.0
    %892 = vmatmul.mubr.f32.gmra.mrb[0].mxu0 %v782
    %v893 = vpop.f32.mrb[0].mxu0
    %v894 = vadd.f32 0.0, %v893
    %v895 = vpop.f32.mrb[0].mxu0
    %896 = vmatprep.mubr.f32.mxu0 0.0
    %897 = vmatmul.mubr.f32.gmra.mrb[0].mxu0 %v785
    %v898 = vpop.f32.mrb[0].mxu0
    %v899 = vadd.f32 0.0, %v898
    %v900 = vpop.f32.mrb[0].mxu0
    %901 = vmatprep.mubr.f32.mxu0 0.0
    %902 = vmatmul.mubr.f32.gmra.mrb[0].mxu0 %v788
    %v903 = vpop.f32.mrb[0].mxu0
    %v904 = vadd.f32 0.0, %v903
    %v905 = vpop.f32.mrb[0].mxu0
    %906 = vmatprep.mubr.f32.mxu0 0.0
    %907 = vmatmul.mubr.f32.gmra.mrb[0].mxu0 %v791
    %v908 = vpop.f32.mrb[0].mxu0
    %v909 = vadd.f32 0.0, %v908
    %v910 = vpop.f32.mrb[0].mxu0
    %911 = vmatprep.mubr.f32.mxu0 0.0
    %912 = vmatmul.mubr.f32.gmra.mrb[0].mxu0 %v794
    %v913 = vpop.f32.mrb[0].mxu0
    %v914 = vadd.f32 0.0, %v913
    %v915 = vpop.f32.mrb[0].mxu0
    %916 = vmatprep.mubr.f32.mxu0 0.0
    %917 = vmatmul.mubr.f32.gmra.mrb[0].mxu0 %v797
    %v918 = vpop.f32.mrb[0].mxu0
    %v919 = vadd.f32 0.0, %v918
    %v920 = vpop.f32.mrb[0].mxu0
    %921 = vmatprep.mubr.f32.mxu0 0.0
    %922 = vmatmul.mubr.f32.gmra.mrb[0].mxu0 %v800
    %v923 = vpop.f32.mrb[0].mxu0
    %v924 = vadd.f32 0.0, %v923
    %v925 = vpop.f32.mrb[0].mxu0
    %926 = vdwg.mxu0
    %v927 = vmax.f32 %v869, %v889
    %v928 = vmax.f32 %v874, %v894
    %v929 = vmax.f32 %v879, %v899
    %v930 = vmax.f32 %v884, %v904
    %v931 = vmax.f32 %v927, %v909
    %v932 = vmax.f32 %v928, %v914
    %v933 = vmax.f32 %v929, %v919
    %v934 = vmax.f32 %v930, %v924
    %s935 = scalar_lea.vmem %s5, 32
    %v936 = vld [vmem:[%s935] sm:$0xff]
    %v937 = vld [vmem:[%s935 + $0x8] sm:$0xff]
    %v938 = vld [vmem:[%s935 + $0x10] sm:$0xff]
    %v939 = vld [vmem:[%s935 + $0x18] sm:$0xff]
    %v940 = vmul.f32 %v931, %v936
    %v941 = vmul.f32 %v932, %v937
    %v942 = vmul.f32 %v933, %v938
    %v943 = vmul.f32 %v934, %v939
    %s944 = scalar_lea.vmem %s6, 32
    %v945 = vld [vmem:[%s944] sm:$0xff]
    %v946 = vld [vmem:[%s944 + $0x8] sm:$0xff]
    %v947 = vld [vmem:[%s944 + $0x10] sm:$0xff]
    %v948 = vld [vmem:[%s944 + $0x18] sm:$0xff]
    %v949 = vadd.f32 %v940, %v945
    %v950 = vadd.f32 %v941, %v946
    %v951 = vadd.f32 %v942, %v947
    %v952 = vadd.f32 %v943, %v948
    %vm953 = vcmp.ge.f32.partialorder %v949, 0.0
    %vm954 = vcmp.ge.f32.partialorder %v950, 0.0
    %vm955 = vcmp.ge.f32.partialorder %v951, 0.0
    %vm956 = vcmp.ge.f32.partialorder %v952, 0.0
    %v957 = vmul.f32 %v711, %v949
    %v958 = vmul.f32 %v711, %v950
    %v959 = vmul.f32 %v711, %v951
    %v960 = vmul.f32 %v711, %v952
    %v961 = vsel %vm953, %v949, %v957
    %v962 = vsel %vm954, %v950, %v958
    %v963 = vsel %vm955, %v951, %v959
    %v964 = vsel %vm956, %v952, %v960
    %s965 = scalar_lea.vmem %s7, 32
    %v966 = vld [vmem:[%s965] sm:$0xff]
    %v967 = vld [vmem:[%s965 + $0x8] sm:$0xff]
    %v968 = vld [vmem:[%s965 + $0x10] sm:$0xff]
    %v969 = vld [vmem:[%s965 + $0x18] sm:$0xff]
    %v970 = vmul.f32 %v961, %v966
    %v971 = vmul.f32 %v962, %v967
    %v972 = vmul.f32 %v963, %v968
    %v973 = vmul.f32 %v964, %v969
    %974 = vadd.xlane.f32.xlu0 %v970
    %v975 = vpop.xlane.xlu0 %974
    %976 = vadd.xlane.f32.xlu0 %v971
    %v977 = vpop.xlane.xlu0 %976
    %978 = vadd.xlane.f32.xlu0 %v972
    %v979 = vpop.xlane.xlu0 %978
    %980 = vadd.xlane.f32.xlu0 %v973
    %v981 = vpop.xlane.xlu0 %980
    %v982 = vadd.f32 %v729, %v975
    %v983 = vadd.f32 %v731, %v977
    %v984 = vadd.f32 %v733, %v979
    %v985 = vadd.f32 %v735, %v981
    %s986 = scalar_lea.vmem %s7, 160
    %v987 = vld [vmem:[%s986] sm:$0xff]
    %v988 = vld [vmem:[%s986 + $0x8] sm:$0xff]
    %v989 = vld [vmem:[%s986 + $0x10] sm:$0xff]
    %v990 = vld [vmem:[%s986 + $0x18] sm:$0xff]
    %v991 = vmul.f32 %v961, %v987
    %v992 = vmul.f32 %v962, %v988
    %v993 = vmul.f32 %v963, %v989
    %v994 = vmul.f32 %v964, %v990
    %995 = vadd.xlane.f32.xlu0 %v991
    %v996 = vpop.xlane.xlu0 %995
    %997 = vadd.xlane.f32.xlu0 %v992
    %v998 = vpop.xlane.xlu0 %997
    %999 = vadd.xlane.f32.xlu0 %v993
    %v1000 = vpop.xlane.xlu0 %999
    %1001 = vadd.xlane.f32.xlu0 %v994
    %v1002 = vpop.xlane.xlu0 %1001
    %v1003 = vadd.f32 %v746, %v996
    %v1004 = vadd.f32 %v748, %v998
    %v1005 = vadd.f32 %v750, %v1000
    %v1006 = vadd.f32 %v752, %v1002
    %s1007 = scalar_lea.vmem %s4, 192
    %v1008 = vld [vmem:[%s1007] sm:$0xff]
    %v1009 = vld [vmem:[%s1007 + $0x8] sm:$0xff]
    %v1010 = vld [vmem:[%s1007 + $0x10] sm:$0xff]
    %v1011 = vld [vmem:[%s1007 + $0x18] sm:$0xff]
    %v1012 = vld [vmem:[%s1007 + $0x20] sm:$0xff]
    %v1013 = vld [vmem:[%s1007 + $0x28] sm:$0xff]
    %v1014 = vld [vmem:[%s1007 + $0x30] sm:$0xff]
    %v1015 = vld [vmem:[%s1007 + $0x38] sm:$0xff]
    %v1016 = vld [vmem:[%s1007 + $0x40] sm:$0xff]
    %v1017 = vld [vmem:[%s1007 + $0x48] sm:$0xff]
    %v1018 = vld [vmem:[%s1007 + $0x50] sm:$0xff]
    %v1019 = vld [vmem:[%s1007 + $0x58] sm:$0xff]
    %v1021 = vsel %vm521, %v1008, 0
    %v1024 = vsel %vm521, %v1009, 0
    %v1027 = vsel %vm521, %v1010, 0
    %v1030 = vsel %vm521, %v1011, 0
    %v1033 = vsel %vm521, %v1012, 0
    %v1036 = vsel %vm521, %v1013, 0
    %v1039 = vsel %vm521, %v1014, 0
    %v1042 = vsel %vm521, %v1015, 0
    %v1045 = vsel %vm521, %v1016, 0
    %v1048 = vsel %vm521, %v1017, 0
    %v1051 = vsel %vm521, %v1018, 0
    %v1054 = vsel %vm521, %v1019, 0
    %1056 = vmatprep.subr.mxu0 0.0
    %1057 = vmatpush1.msra.mxu0 %v470
    %1058 = vmatprep.subr.mxu0 0.0
    %1059 = vmatpush1.msra.mxu0 %v474
    %1060 = vmatprep.subr.mxu0 0.0
    %1061 = vmatpush1.msra.mxu0 %v478
    %1062 = vmatprep.subr.mxu0 0.0
    %1063 = vmatpush1.msra.mxu0 %v482
    %1064 = vmatprep.subr.mxu0 0.0
    %1065 = vmatpush1.msra.mxu0 %v486
    %1066 = vmatprep.subr.mxu0 0.0
    %1067 = vmatpush1.msra.mxu0 %v490
    %1068 = vmatprep.subr.mxu0 0.0
    %1069 = vmatpush1.msra.mxu0 %v494
    %1070 = vmatprep.subr.mxu0 0.0
    %1071 = vmatpush1.msra.mxu0 %v498
    %1072 = vmatprep.subr.mxu0 0.0
    %1073 = vmatpush1.msra.mxu0 %v502
    %1074 = vmatprep.subr.mxu0 0.0
    %1075 = vmatpush1.msra.mxu0 %v506
    %1076 = vmatprep.subr.mxu0 0.0
    %1077 = vmatpush1.msra.mxu0 0.0
    %1078 = vmatprep.subr.mxu0 0.0
    %1079 = vmatpush1.msra.mxu0 0.0
    %1080 = vmatprep.subr.mxu0 0.0
    %1081 = vmatpush1.msra.mxu0 0.0
    %1082 = vmatprep.subr.mxu0 0.0
    %1083 = vmatpush1.msra.mxu0 0.0
    %1084 = vmatprep.subr.mxu0 0.0
    %1085 = vmatpush1.msra.mxu0 0.0
    %1086 = vmatprep.subr.mxu0 0.0
    %1087 = vmatpush1.msra.mxu0 0.0
    %1088 = vmatprep.subr.mxu0 0.0
    %1089 = vmatpush1.msra.mxu0 0.0
    %1090 = vmatprep.subr.mxu0 0.0
    %1091 = vmatpush1.msra.mxu0 0.0
    %1092 = vmatprep.subr.mxu0 0.0
    %1093 = vmatpush1.msra.mxu0 0.0
    %1094 = vmatprep.subr.mxu0 0.0
    %1095 = vmatpush1.msra.mxu0 0.0
    %1096 = vmatprep.subr.mxu0 0.0
    %1097 = vmatpush1.msra.mxu0 0.0
    %1098 = vmatprep.subr.mxu0 0.0
    %1099 = vmatpush1.msra.mxu0 0.0
    %1100 = vmatprep.subr.mxu0 0.0
    %1101 = vmatpush1.msra.mxu0 0.0
    %1102 = vmatprep.subr.mxu0 0.0
    %1103 = vmatpush1.msra.mxu0 0.0
    %1104 = vmatprep.subr.mxu0 0.0
    %1105 = vmatpush1.msra.mxu0 0.0
    %1106 = vmatprep.subr.mxu0 0.0
    %1107 = vmatpush1.msra.mxu0 0.0
    %1108 = vmatprep.subr.mxu0 0.0
    %1109 = vmatpush1.msra.mxu0 0.0
    %1110 = vmatprep.subr.mxu0 0.0
    %1111 = vmatpush1.msra.mxu0 0.0
    %1112 = vmatprep.subr.mxu0 0.0
    %1113 = vmatpush1.msra.mxu0 0.0
    %1114 = vmatprep.subr.mxu0 0.0
    %1115 = vmatpush1.msra.mxu0 0.0
    %1116 = vmatprep.subr.mxu0 0.0
    %1117 = vmatpush1.msra.mxu0 0.0
    %1118 = vmatprep.subr.mxu0 0.0
    %1119 = vmatpush1.msra.mxu0 0.0
    %1120 = vmatprep.mubr.f32.mxu0 0.0
    %1121 = vmatmul.mubr.f32.gmra.mrb[0].mxu0 %v1021
    %v1122 = vpop.f32.mrb[0].mxu0
    %v1123 = vadd.f32 0.0, %v1122
    %v1124 = vpop.f32.mrb[0].mxu0
    %1125 = vmatprep.mubr.f32.mxu0 0.0
    %1126 = vmatmul.mubr.f32.gmra.mrb[0].mxu0 %v1024
    %v1127 = vpop.f32.mrb[0].mxu0
    %v1128 = vadd.f32 0.0, %v1127
    %v1129 = vpop.f32.mrb[0].mxu0
    %1130 = vmatprep.mubr.f32.mxu0 0.0
    %1131 = vmatmul.mubr.f32.gmra.mrb[0].mxu0 %v1027
    %v1132 = vpop.f32.mrb[0].mxu0
    %v1133 = vadd.f32 0.0, %v1132
    %v1134 = vpop.f32.mrb[0].mxu0
    %1135 = vmatprep.mubr.f32.mxu0 0.0
    %1136 = vmatmul.mubr.f32.gmra.mrb[0].mxu0 %v1030
    %v1137 = vpop.f32.mrb[0].mxu0
    %v1138 = vadd.f32 0.0, %v1137
    %v1139 = vpop.f32.mrb[0].mxu0
    %1140 = vmatprep.mubr.f32.mxu0 0.0
    %1141 = vmatmul.mubr.f32.gmra.mrb[0].mxu0 %v1033
    %v1142 = vpop.f32.mrb[0].mxu0
    %v1143 = vadd.f32 0.0, %v1142
    %v1144 = vpop.f32.mrb[0].mxu0
    %1145 = vmatprep.mubr.f32.mxu0 0.0
    %1146 = vmatmul.mubr.f32.gmra.mrb[0].mxu0 %v1036
    %v1147 = vpop.f32.mrb[0].mxu0
    %v1148 = vadd.f32 0.0, %v1147
    %v1149 = vpop.f32.mrb[0].mxu0
    %1150 = vmatprep.mubr.f32.mxu0 0.0
    %1151 = vmatmul.mubr.f32.gmra.mrb[0].mxu0 %v1039
    %v1152 = vpop.f32.mrb[0].mxu0
    %v1153 = vadd.f32 0.0, %v1152
    %v1154 = vpop.f32.mrb[0].mxu0
    %1155 = vmatprep.mubr.f32.mxu0 0.0
    %1156 = vmatmul.mubr.f32.gmra.mrb[0].mxu0 %v1042
    %v1157 = vpop.f32.mrb[0].mxu0
    %v1158 = vadd.f32 0.0, %v1157
    %v1159 = vpop.f32.mrb[0].mxu0
    %1160 = vmatprep.mubr.f32.mxu0 0.0
    %1161 = vmatmul.mubr.f32.gmra.mrb[0].mxu0 %v1045
    %v1162 = vpop.f32.mrb[0].mxu0
    %v1163 = vadd.f32 0.0, %v1162
    %v1164 = vpop.f32.mrb[0].mxu0
    %1165 = vmatprep.mubr.f32.mxu0 0.0
    %1166 = vmatmul.mubr.f32.gmra.mrb[0].mxu0 %v1048
    %v1167 = vpop.f32.mrb[0].mxu0
    %v1168 = vadd.f32 0.0, %v1167
    %v1169 = vpop.f32.mrb[0].mxu0
    %1170 = vmatprep.mubr.f32.mxu0 0.0
    %1171 = vmatmul.mubr.f32.gmra.mrb[0].mxu0 %v1051
    %v1172 = vpop.f32.mrb[0].mxu0
    %v1173 = vadd.f32 0.0, %v1172
    %v1174 = vpop.f32.mrb[0].mxu0
    %1175 = vmatprep.mubr.f32.mxu0 0.0
    %1176 = vmatmul.mubr.f32.gmra.mrb[0].mxu0 %v1054
    %v1177 = vpop.f32.mrb[0].mxu0
    %v1178 = vadd.f32 0.0, %v1177
    %v1179 = vpop.f32.mrb[0].mxu0
    %1180 = vdwg.mxu0
    %v1181 = vmax.f32 %v1123, %v1143
    %v1182 = vmax.f32 %v1128, %v1148
    %v1183 = vmax.f32 %v1133, %v1153
    %v1184 = vmax.f32 %v1138, %v1158
    %v1185 = vmax.f32 %v1181, %v1163
    %v1186 = vmax.f32 %v1182, %v1168
    %v1187 = vmax.f32 %v1183, %v1173
    %v1188 = vmax.f32 %v1184, %v1178
    %s1189 = scalar_lea.vmem %s5, 64
    %v1190 = vld [vmem:[%s1189] sm:$0xff]
    %v1191 = vld [vmem:[%s1189 + $0x8] sm:$0xff]
    %v1192 = vld [vmem:[%s1189 + $0x10] sm:$0xff]
    %v1193 = vld [vmem:[%s1189 + $0x18] sm:$0xff]
    %v1194 = vmul.f32 %v1185, %v1190
    %v1195 = vmul.f32 %v1186, %v1191
    %v1196 = vmul.f32 %v1187, %v1192
    %v1197 = vmul.f32 %v1188, %v1193
    %s1198 = scalar_lea.vmem %s6, 64
    %v1199 = vld [vmem:[%s1198] sm:$0xff]
    %v1200 = vld [vmem:[%s1198 + $0x8] sm:$0xff]
    %v1201 = vld [vmem:[%s1198 + $0x10] sm:$0xff]
    %v1202 = vld [vmem:[%s1198 + $0x18] sm:$0xff]
    %v1203 = vadd.f32 %v1194, %v1199
    %v1204 = vadd.f32 %v1195, %v1200
    %v1205 = vadd.f32 %v1196, %v1201
    %v1206 = vadd.f32 %v1197, %v1202
    %vm1207 = vcmp.ge.f32.partialorder %v1203, 0.0
    %vm1208 = vcmp.ge.f32.partialorder %v1204, 0.0
    %vm1209 = vcmp.ge.f32.partialorder %v1205, 0.0
    %vm1210 = vcmp.ge.f32.partialorder %v1206, 0.0
    %v1211 = vmul.f32 %v711, %v1203
    %v1212 = vmul.f32 %v711, %v1204
    %v1213 = vmul.f32 %v711, %v1205
    %v1214 = vmul.f32 %v711, %v1206
    %v1215 = vsel %vm1207, %v1203, %v1211
    %v1216 = vsel %vm1208, %v1204, %v1212
    %v1217 = vsel %vm1209, %v1205, %v1213
    %v1218 = vsel %vm1210, %v1206, %v1214
    %s1219 = scalar_lea.vmem %s7, 64
    %v1220 = vld [vmem:[%s1219] sm:$0xff]
    %v1221 = vld [vmem:[%s1219 + $0x8] sm:$0xff]
    %v1222 = vld [vmem:[%s1219 + $0x10] sm:$0xff]
    %v1223 = vld [vmem:[%s1219 + $0x18] sm:$0xff]
    %v1224 = vmul.f32 %v1215, %v1220
    %v1225 = vmul.f32 %v1216, %v1221
    %v1226 = vmul.f32 %v1217, %v1222
    %v1227 = vmul.f32 %v1218, %v1223
    %1228 = vadd.xlane.f32.xlu0 %v1224
    %v1229 = vpop.xlane.xlu0 %1228
    %1230 = vadd.xlane.f32.xlu0 %v1225
    %v1231 = vpop.xlane.xlu0 %1230
    %1232 = vadd.xlane.f32.xlu0 %v1226
    %v1233 = vpop.xlane.xlu0 %1232
    %1234 = vadd.xlane.f32.xlu0 %v1227
    %v1235 = vpop.xlane.xlu0 %1234
    %v1236 = vadd.f32 %v982, %v1229
    %v1237 = vadd.f32 %v983, %v1231
    %v1238 = vadd.f32 %v984, %v1233
    %v1239 = vadd.f32 %v985, %v1235
    %s1240 = scalar_lea.vmem %s7, 192
    %v1241 = vld [vmem:[%s1240] sm:$0xff]
    %v1242 = vld [vmem:[%s1240 + $0x8] sm:$0xff]
    %v1243 = vld [vmem:[%s1240 + $0x10] sm:$0xff]
    %v1244 = vld [vmem:[%s1240 + $0x18] sm:$0xff]
    %v1245 = vmul.f32 %v1215, %v1241
    %v1246 = vmul.f32 %v1216, %v1242
    %v1247 = vmul.f32 %v1217, %v1243
    %v1248 = vmul.f32 %v1218, %v1244
    %1249 = vadd.xlane.f32.xlu0 %v1245
    %v1250 = vpop.xlane.xlu0 %1249
    %1251 = vadd.xlane.f32.xlu0 %v1246
    %v1252 = vpop.xlane.xlu0 %1251
    %1253 = vadd.xlane.f32.xlu0 %v1247
    %v1254 = vpop.xlane.xlu0 %1253
    %1255 = vadd.xlane.f32.xlu0 %v1248
    %v1256 = vpop.xlane.xlu0 %1255
    %v1257 = vadd.f32 %v1003, %v1250
    %v1258 = vadd.f32 %v1004, %v1252
    %v1259 = vadd.f32 %v1005, %v1254
    %v1260 = vadd.f32 %v1006, %v1256
    %s1261 = scalar_lea.vmem %s4, 288
    %v1262 = vld [vmem:[%s1261] sm:$0xff]
    %v1263 = vld [vmem:[%s1261 + $0x8] sm:$0xff]
    %v1264 = vld [vmem:[%s1261 + $0x10] sm:$0xff]
    %v1265 = vld [vmem:[%s1261 + $0x18] sm:$0xff]
    %v1266 = vld [vmem:[%s1261 + $0x20] sm:$0xff]
    %v1267 = vld [vmem:[%s1261 + $0x28] sm:$0xff]
    %v1268 = vld [vmem:[%s1261 + $0x30] sm:$0xff]
    %v1269 = vld [vmem:[%s1261 + $0x38] sm:$0xff]
    %v1270 = vld [vmem:[%s1261 + $0x40] sm:$0xff]
    %v1271 = vld [vmem:[%s1261 + $0x48] sm:$0xff]
    %v1272 = vld [vmem:[%s1261 + $0x50] sm:$0xff]
    %v1273 = vld [vmem:[%s1261 + $0x58] sm:$0xff]
    %v1275 = vsel %vm521, %v1262, 0
    %v1278 = vsel %vm521, %v1263, 0
    %v1281 = vsel %vm521, %v1264, 0
    %v1284 = vsel %vm521, %v1265, 0
    %v1287 = vsel %vm521, %v1266, 0
    %v1290 = vsel %vm521, %v1267, 0
    %v1293 = vsel %vm521, %v1268, 0
    %v1296 = vsel %vm521, %v1269, 0
    %v1299 = vsel %vm521, %v1270, 0
    %v1302 = vsel %vm521, %v1271, 0
    %v1305 = vsel %vm521, %v1272, 0
    %v1308 = vsel %vm521, %v1273, 0
    %1310 = vmatprep.subr.mxu0 0.0
    %1311 = vmatpush1.msra.mxu0 %v471
    %1312 = vmatprep.subr.mxu0 0.0
    %1313 = vmatpush1.msra.mxu0 %v475
    %1314 = vmatprep.subr.mxu0 0.0
    %1315 = vmatpush1.msra.mxu0 %v479
    %1316 = vmatprep.subr.mxu0 0.0
    %1317 = vmatpush1.msra.mxu0 %v483
    %1318 = vmatprep.subr.mxu0 0.0
    %1319 = vmatpush1.msra.mxu0 %v487
    %1320 = vmatprep.subr.mxu0 0.0
    %1321 = vmatpush1.msra.mxu0 %v491
    %1322 = vmatprep.subr.mxu0 0.0
    %1323 = vmatpush1.msra.mxu0 %v495
    %1324 = vmatprep.subr.mxu0 0.0
    %1325 = vmatpush1.msra.mxu0 %v499
    %1326 = vmatprep.subr.mxu0 0.0
    %1327 = vmatpush1.msra.mxu0 %v503
    %1328 = vmatprep.subr.mxu0 0.0
    %1329 = vmatpush1.msra.mxu0 %v507
    %1330 = vmatprep.subr.mxu0 0.0
    %1331 = vmatpush1.msra.mxu0 0.0
    %1332 = vmatprep.subr.mxu0 0.0
    %1333 = vmatpush1.msra.mxu0 0.0
    %1334 = vmatprep.subr.mxu0 0.0
    %1335 = vmatpush1.msra.mxu0 0.0
    %1336 = vmatprep.subr.mxu0 0.0
    %1337 = vmatpush1.msra.mxu0 0.0
    %1338 = vmatprep.subr.mxu0 0.0
    %1339 = vmatpush1.msra.mxu0 0.0
    %1340 = vmatprep.subr.mxu0 0.0
    %1341 = vmatpush1.msra.mxu0 0.0
    %1342 = vmatprep.subr.mxu0 0.0
    %1343 = vmatpush1.msra.mxu0 0.0
    %1344 = vmatprep.subr.mxu0 0.0
    %1345 = vmatpush1.msra.mxu0 0.0
    %1346 = vmatprep.subr.mxu0 0.0
    %1347 = vmatpush1.msra.mxu0 0.0
    %1348 = vmatprep.subr.mxu0 0.0
    %1349 = vmatpush1.msra.mxu0 0.0
    %1350 = vmatprep.subr.mxu0 0.0
    %1351 = vmatpush1.msra.mxu0 0.0
    %1352 = vmatprep.subr.mxu0 0.0
    %1353 = vmatpush1.msra.mxu0 0.0
    %1354 = vmatprep.subr.mxu0 0.0
    %1355 = vmatpush1.msra.mxu0 0.0
    %1356 = vmatprep.subr.mxu0 0.0
    %1357 = vmatpush1.msra.mxu0 0.0
    %1358 = vmatprep.subr.mxu0 0.0
    %1359 = vmatpush1.msra.mxu0 0.0
    %1360 = vmatprep.subr.mxu0 0.0
    %1361 = vmatpush1.msra.mxu0 0.0
    %1362 = vmatprep.subr.mxu0 0.0
    %1363 = vmatpush1.msra.mxu0 0.0
    %1364 = vmatprep.subr.mxu0 0.0
    %1365 = vmatpush1.msra.mxu0 0.0
    %1366 = vmatprep.subr.mxu0 0.0
    %1367 = vmatpush1.msra.mxu0 0.0
    %1368 = vmatprep.subr.mxu0 0.0
    %1369 = vmatpush1.msra.mxu0 0.0
    %1370 = vmatprep.subr.mxu0 0.0
    %1371 = vmatpush1.msra.mxu0 0.0
    %1372 = vmatprep.subr.mxu0 0.0
    %1373 = vmatpush1.msra.mxu0 0.0
    %1374 = vmatprep.mubr.f32.mxu0 0.0
    %1375 = vmatmul.mubr.f32.gmra.mrb[0].mxu0 %v1275
    %v1376 = vpop.f32.mrb[0].mxu0
    %v1377 = vadd.f32 0.0, %v1376
    %v1378 = vpop.f32.mrb[0].mxu0
    %1379 = vmatprep.mubr.f32.mxu0 0.0
    %1380 = vmatmul.mubr.f32.gmra.mrb[0].mxu0 %v1278
    %v1381 = vpop.f32.mrb[0].mxu0
    %v1382 = vadd.f32 0.0, %v1381
    %v1383 = vpop.f32.mrb[0].mxu0
    %1384 = vmatprep.mubr.f32.mxu0 0.0
    %1385 = vmatmul.mubr.f32.gmra.mrb[0].mxu0 %v1281
    %v1386 = vpop.f32.mrb[0].mxu0
    %v1387 = vadd.f32 0.0, %v1386
    %v1388 = vpop.f32.mrb[0].mxu0
    %1389 = vmatprep.mubr.f32.mxu0 0.0
    %1390 = vmatmul.mubr.f32.gmra.mrb[0].mxu0 %v1284
    %v1391 = vpop.f32.mrb[0].mxu0
    %v1392 = vadd.f32 0.0, %v1391
    %v1393 = vpop.f32.mrb[0].mxu0
    %1394 = vmatprep.mubr.f32.mxu0 0.0
    %1395 = vmatmul.mubr.f32.gmra.mrb[0].mxu0 %v1287
    %v1396 = vpop.f32.mrb[0].mxu0
    %v1397 = vadd.f32 0.0, %v1396
    %v1398 = vpop.f32.mrb[0].mxu0
    %1399 = vmatprep.mubr.f32.mxu0 0.0
    %1400 = vmatmul.mubr.f32.gmra.mrb[0].mxu0 %v1290
    %v1401 = vpop.f32.mrb[0].mxu0
    %v1402 = vadd.f32 0.0, %v1401
    %v1403 = vpop.f32.mrb[0].mxu0
    %1404 = vmatprep.mubr.f32.mxu0 0.0
    %1405 = vmatmul.mubr.f32.gmra.mrb[0].mxu0 %v1293
    %v1406 = vpop.f32.mrb[0].mxu0
    %v1407 = vadd.f32 0.0, %v1406
    %v1408 = vpop.f32.mrb[0].mxu0
    %1409 = vmatprep.mubr.f32.mxu0 0.0
    %1410 = vmatmul.mubr.f32.gmra.mrb[0].mxu0 %v1296
    %v1411 = vpop.f32.mrb[0].mxu0
    %v1412 = vadd.f32 0.0, %v1411
    %v1413 = vpop.f32.mrb[0].mxu0
    %1414 = vmatprep.mubr.f32.mxu0 0.0
    %1415 = vmatmul.mubr.f32.gmra.mrb[0].mxu0 %v1299
    %v1416 = vpop.f32.mrb[0].mxu0
    %v1417 = vadd.f32 0.0, %v1416
    %v1418 = vpop.f32.mrb[0].mxu0
    %1419 = vmatprep.mubr.f32.mxu0 0.0
    %1420 = vmatmul.mubr.f32.gmra.mrb[0].mxu0 %v1302
    %v1421 = vpop.f32.mrb[0].mxu0
    %v1422 = vadd.f32 0.0, %v1421
    %v1423 = vpop.f32.mrb[0].mxu0
    %1424 = vmatprep.mubr.f32.mxu0 0.0
    %1425 = vmatmul.mubr.f32.gmra.mrb[0].mxu0 %v1305
    %v1426 = vpop.f32.mrb[0].mxu0
    %v1427 = vadd.f32 0.0, %v1426
    %v1428 = vpop.f32.mrb[0].mxu0
    %1429 = vmatprep.mubr.f32.mxu0 0.0
    %1430 = vmatmul.mubr.f32.gmra.mrb[0].mxu0 %v1308
    %v1431 = vpop.f32.mrb[0].mxu0
    %v1432 = vadd.f32 0.0, %v1431
    %v1433 = vpop.f32.mrb[0].mxu0
    %1434 = vdwg.mxu0
    %v1435 = vmax.f32 %v1377, %v1397
    %v1436 = vmax.f32 %v1382, %v1402
    %v1437 = vmax.f32 %v1387, %v1407
    %v1438 = vmax.f32 %v1392, %v1412
    %v1439 = vmax.f32 %v1435, %v1417
    %v1440 = vmax.f32 %v1436, %v1422
    %v1441 = vmax.f32 %v1437, %v1427
    %v1442 = vmax.f32 %v1438, %v1432
    %s1443 = scalar_lea.vmem %s5, 96
    %v1444 = vld [vmem:[%s1443] sm:$0xff]
    %v1445 = vld [vmem:[%s1443 + $0x8] sm:$0xff]
    %v1446 = vld [vmem:[%s1443 + $0x10] sm:$0xff]
    %v1447 = vld [vmem:[%s1443 + $0x18] sm:$0xff]
    %v1448 = vmul.f32 %v1439, %v1444
    %v1449 = vmul.f32 %v1440, %v1445
    %v1450 = vmul.f32 %v1441, %v1446
    %v1451 = vmul.f32 %v1442, %v1447
    %s1452 = scalar_lea.vmem %s6, 96
    %v1453 = vld [vmem:[%s1452] sm:$0xff]
    %v1454 = vld [vmem:[%s1452 + $0x8] sm:$0xff]
    %v1455 = vld [vmem:[%s1452 + $0x10] sm:$0xff]
    %v1456 = vld [vmem:[%s1452 + $0x18] sm:$0xff]
    %v1457 = vadd.f32 %v1448, %v1453
    %v1458 = vadd.f32 %v1449, %v1454
    %v1459 = vadd.f32 %v1450, %v1455
    %v1460 = vadd.f32 %v1451, %v1456
    %vm1461 = vcmp.ge.f32.partialorder %v1457, 0.0
    %vm1462 = vcmp.ge.f32.partialorder %v1458, 0.0
    %vm1463 = vcmp.ge.f32.partialorder %v1459, 0.0
    %vm1464 = vcmp.ge.f32.partialorder %v1460, 0.0
    %v1465 = vmul.f32 %v711, %v1457
    %v1466 = vmul.f32 %v711, %v1458
    %v1467 = vmul.f32 %v711, %v1459
    %v1468 = vmul.f32 %v711, %v1460
    %v1469 = vsel %vm1461, %v1457, %v1465
    %v1470 = vsel %vm1462, %v1458, %v1466
    %v1471 = vsel %vm1463, %v1459, %v1467
    %v1472 = vsel %vm1464, %v1460, %v1468
    %s1473 = scalar_lea.vmem %s7, 96
    %v1474 = vld [vmem:[%s1473] sm:$0xff]
    %v1475 = vld [vmem:[%s1473 + $0x8] sm:$0xff]
    %v1476 = vld [vmem:[%s1473 + $0x10] sm:$0xff]
    %v1477 = vld [vmem:[%s1473 + $0x18] sm:$0xff]
    %v1478 = vmul.f32 %v1469, %v1474
    %v1479 = vmul.f32 %v1470, %v1475
    %v1480 = vmul.f32 %v1471, %v1476
    %v1481 = vmul.f32 %v1472, %v1477
    %1482 = vadd.xlane.f32.xlu0 %v1478
    %v1483 = vpop.xlane.xlu0 %1482
    %1484 = vadd.xlane.f32.xlu0 %v1479
    %v1485 = vpop.xlane.xlu0 %1484
    %1486 = vadd.xlane.f32.xlu0 %v1480
    %v1487 = vpop.xlane.xlu0 %1486
    %1488 = vadd.xlane.f32.xlu0 %v1481
    %v1489 = vpop.xlane.xlu0 %1488
    %v1490 = vadd.f32 %v1236, %v1483
    %v1491 = vadd.f32 %v1237, %v1485
    %v1492 = vadd.f32 %v1238, %v1487
    %v1493 = vadd.f32 %v1239, %v1489
    %s1494 = scalar_lea.vmem %s7, 224
    %v1495 = vld [vmem:[%s1494] sm:$0xff]
    %v1496 = vld [vmem:[%s1494 + $0x8] sm:$0xff]
    %v1497 = vld [vmem:[%s1494 + $0x10] sm:$0xff]
    %v1498 = vld [vmem:[%s1494 + $0x18] sm:$0xff]
    %v1499 = vmul.f32 %v1469, %v1495
    %v1500 = vmul.f32 %v1470, %v1496
    %v1501 = vmul.f32 %v1471, %v1497
    %v1502 = vmul.f32 %v1472, %v1498
    %1503 = vadd.xlane.f32.xlu0 %v1499
    %v1504 = vpop.xlane.xlu0 %1503
    %1505 = vadd.xlane.f32.xlu0 %v1500
    %v1506 = vpop.xlane.xlu0 %1505
    %1507 = vadd.xlane.f32.xlu0 %v1501
    %v1508 = vpop.xlane.xlu0 %1507
    %1509 = vadd.xlane.f32.xlu0 %v1502
    %v1510 = vpop.xlane.xlu0 %1509
    %v1511 = vadd.f32 %v1257, %v1504
    %v1512 = vadd.f32 %v1258, %v1506
    %v1513 = vadd.f32 %v1259, %v1508
    %v1514 = vadd.f32 %v1260, %v1510
    %vm1515 = vcmask 7168
    %v1516 = vsel %vm1515, %v1490, %v1511
    %v1517 = vsel %vm1515, %v1491, %v1512
    %v1518 = vsel %vm1515, %v1492, %v1513
    %v1519 = vsel %vm1515, %v1493, %v1514
    %vm1520 = vcmask 15360
    %v1521 = vsel %vm1520, %v1516, 0.0
    %v1522 = vsel %vm1520, %v1517, 0.0
    %v1523 = vadd.f32 %v1521, %v1522
    %v1524 = vrot.slane %v1523, 4
    %v1525 = vadd.f32 %v1523, %v1524
    %v1526 = vrot.slane %v1525, 2
    %v1527 = vadd.f32 %v1525, %v1526
    %v1528 = vrot.slane %v1527, 1
    %v1529 = vadd.f32 %v1527, %v1528
    %v1530 = vld [vmem:[%s8] sm:$0x1]
    %v1531 = vadd.f32 %v1529, %v1530
    %vm1532 = vcmask 8192
    %v1533 = vsel %vm1532, %v1531, -inf
    %1534 = vmax.xlane.f32.xlu0 %v1533
    %v1535 = vpop.xlane.xlu0 %1534
    %v1536 = vsub.f32 %v1531, %v1535
    %v1537 = vmul.f32 %v1536, 1.442695
    %v1538 = vpow.pop %v1537
    %v1539 = vsel %vm1532, %v1538, 0.0
    %1540 = vadd.xlane.f32.xlu0 %v1539
    %v1541 = vpop.xlane.xlu0 %1540
    %v1542 = vrcp.pop %v1541
    %v1543 = vmul.f32 %v1538, %v1542
    %1544 = vst.msk [vmem:[#allocation3] sm:$0x1] %vm1532, %v1543
    %v1545 = vsel %vm1520, %v1518, 0.0
    %v1546 = vsel %vm1520, %v1519, 0.0
    %v1547 = vadd.f32 %v1545, %v1546
    %v1548 = vrot.slane %v1547, 4
    %v1549 = vadd.f32 %v1547, %v1548
    %v1550 = vrot.slane %v1549, 2
    %v1551 = vadd.f32 %v1549, %v1550
    %v1552 = vrot.slane %v1551, 1
    %v1553 = vadd.f32 %v1551, %v1552
    %v1554 = vld [vmem:[%s8] sm:$0x1]
    %v1555 = vadd.f32 %v1553, %v1554
    %v1556 = vsel %vm1532, %v1555, -inf
    %1557 = vmax.xlane.f32.xlu0 %v1556
    %v1558 = vpop.xlane.xlu0 %1557
    %v1559 = vsub.f32 %v1555, %v1558
    %v1560 = vmul.f32 %v1559, 1.442695
    %v1561 = vpow.pop %v1560
    %v1562 = vsel %vm1532, %v1561, 0.0
    %1563 = vadd.xlane.f32.xlu0 %v1562
    %v1564 = vpop.xlane.xlu0 %1563
    %v1565 = vrcp.pop %v1564
    %v1566 = vmul.f32 %v1561, %v1565
    %1567 = vst.msk [vmem:[#allocation3 + $0x1] sm:$0x1] %vm1532, %v1566
    // Predicated region
    $region42: #{dcnn_forward.1} parent=1 // pred_check
      _
    $region43: #{dcnn_forward.1} parent=1 // pred_check_branch
      %1569 = sbr.rel (0) target = $region45
    $region44: #{dcnn_forward.1} parent=1 // pred_region
      %s1571 = ssub.s32 32, 32
      %1572 = vsyncadd [#allocation4], %s1571
      %s1574 = sshll.u32 [#allocation3], 4
      %s1575 = int_to_ptr.vmem [resolvable:$true] %s1574
      %1577 = dma.vmem_to_hbm [thread:$0]  %s1575, 32, %s10, [#allocation4]
    $region45: #{dcnn_forward.1} parent=1 // pred_fallthru
      _
    // Predicated region
    $region46: #{dcnn_forward.1} parent=1 // pred_check
      _
    $region47: #{dcnn_forward.1} parent=1 // pred_check_branch
      %1579 = sbr.rel (0) target = $region49
    $region48: #{dcnn_forward.1} parent=1 // pred_region
      %1580 = dma.done [#allocation4], 32
    $region49: #{dcnn_forward.1} parent=1 // pred_fallthru
      _
    %1581 = vsyncpa [#allocation4], 1

</llo_original>
